<compile_context>
chip_gen: v6e
topology: v6e:2x2x1
jax: 0.10.0
libtpu: 0.0.40
codegen_flags: <defaults>
</compile_context>

<pallas_src>
import jax
import jax.numpy as jnp
import numpy as np
from jax import lax
from jax.experimental import pallas as pl
from jax.experimental.pallas import tpu as pltpu


# ----------------------------------------------------------------------------
# Fused DenseResidualBlock kernel
# ----------------------------------------------------------------------------
def _make_fused_drb_kernel(H, W, filters, cins, res_scale, compute_dtype):
    HW = H * W
    base = ((W + 1 + 127) // 128) * 128   # lane-aligned start of the interior
    n_layers = len(cins)

    # lane offsets of each layer's weights inside the packed (F, total) slab
    w_offsets = []
    off = 0
    for cin in cins:
        w_offsets.append(off)
        off += 9 * cin

    def kernel(x_ref, w_ref, b_ref, o_ref, feat_ref):
        # Zero the feature scratch so the flat-layout halo (one zero row above
        # and below the image + 1 guard element on each end) reads as zeros.
        feat_ref[...] = jnp.zeros_like(feat_ref)

        x = x_ref[0].astype(jnp.float32)                   # (F, HW), residual
        feat_ref[0:filters, pl.ds(base, HW)] = x           # rows [0, F)

        w_all = w_ref[...].astype(compute_dtype)           # (F, total_w)

        # Column masks for horizontal taps (left/right edge of each image row
        # must not read the neighbouring row's edge pixel).
        col = lax.broadcasted_iota(jnp.int32, (1, HW), 1) % W
        mask_left = col > 0          # valid output positions for dx = -1 taps
        mask_right = col < (W - 1)   # valid output positions for dx = +1 taps

        out = None
        for l in range(n_layers):                          # unrolled (5 layers)
            cin = cins[l]
            w_off = w_offsets[l]
            acc = jnp.zeros((filters, HW), jnp.float32)
            for ky in range(3):
                for kx in range(3):
                    k = ky * 3 + kx
                    wk = w_all[:, w_off + k * cin: w_off + (k + 1) * cin]
                    # shifted view of the flat padded feature map
                    s = base + (ky - 1) * W + (kx - 1)
                    patch = feat_ref[0:cin, pl.ds(s, HW)].astype(compute_dtype)
                    contrib = jnp.dot(wk, patch,
                                      preferred_element_type=jnp.float32)
                    if kx == 0:
                        contrib = jnp.where(mask_left, contrib, 0.0)
                    elif kx == 2:
                        contrib = jnp.where(mask_right, contrib, 0.0)
                    acc = acc + contrib
            acc = acc + b_ref[:, l:l + 1]                  # bias (F,1) -> lanes
            if l < n_layers - 1:
                # LeakyReLU (PyTorch default slope 0.01), append to the dense
                # concat: rows [cin, cin+F) of the VMEM-resident feature map.
                acc = jnp.where(acc >= 0, acc, 0.01 * acc)
                feat_ref[cin:cin + filters, pl.ds(base, HW)] = acc
            else:
                out = acc * res_scale + x                  # fused residual
        o_ref[0] = out.astype(o_ref.dtype)

    return kernel, base


def dense_residual_block(x_nchw, params, res_scale=0.2,
                         compute_dtype=jnp.float32):
    """Fused forward of DenseResidualBlock. x is NCHW (PyTorch convention)."""
    N, C0, H, W = x_nchw.shape
    filters = params[0][0].shape[-1]
    assert C0 == filters, "input channels must equal `filters`"
    HW = H * W
    n_layers = len(params)
    cins = [w.shape[2] for (w, _) in params]       # HWIO -> in-channels
    c_total = cins[-1]                             # width of the dense concat

    # Pack weights: HWIO (3,3,cin,F) -> (F, 9*cin), index (ky*3+kx)*cin + c.
    w_packed = jnp.concatenate(
        [jnp.transpose(w, (3, 0, 1, 2)).reshape(filters, 9 * w.shape[2])
         for (w, _) in params], axis=1)
    b_packed = jnp.stack([b for (_, b) in params], axis=1)   # (F, n_layers)
    total_w = w_packed.shape[1]

    # NCHW -> (N, C, H*W): pure reshape, lane dim = H*W (multiple of 128 here).
    x_flat = x_nchw.reshape(N, filters, HW)

    kernel, base = _make_fused_drb_kernel(H, W, filters, cins, res_scale,
                                          compute_dtype)
    flat_len = base + HW + W + 1
    flat_len = ((flat_len + 127) // 128) * 128     # lane-padded scratch width

    out_flat = pl.pallas_call(
        kernel,
        grid=(N,),
        in_specs=[
            pl.BlockSpec((1, filters, HW), lambda n: (n, 0, 0)),
            pl.BlockSpec((filters, total_w), lambda n: (0, 0)),
            pl.BlockSpec((filters, n_layers), lambda n: (0, 0)),
        ],
        out_specs=pl.BlockSpec((1, filters, HW), lambda n: (n, 0, 0)),
        out_shape=jax.ShapeDtypeStruct((N, filters, HW), x_nchw.dtype),
        scratch_shapes=[pltpu.VMEM((c_total, flat_len), jnp.float32)],
        compiler_params=pltpu.CompilerParams(
            dimension_semantics=("parallel",)),
    )(x_flat, w_packed, b_packed)

    return out_flat.reshape(N, filters, H, W)


# ----------------------------------------------------------------------------
# Pure-JAX reference (for correctness check)
# ----------------------------------------------------------------------------
def dense_residual_block_ref(x_nchw, params, res_scale=0.2):
    x = jnp.transpose(x_nchw, (0, 2, 3, 1))
    inputs = x
    out = None
    n_blocks = len(params)
    for i, (w, b) in enumerate(params):
        out = lax.conv_general_dilated(
            inputs, w, window_strides=(1, 1), padding="SAME",
            dimension_numbers=("NHWC", "HWIO", "NHWC"),
        ) + b.reshape(1, 1, 1, -1)
        if i != n_blocks - 1:
            out = jnp.where(out >= 0, out, 0.01 * out)
            inputs = jnp.concatenate([inputs, out], axis=-1)
    out = out * res_scale + x
    return jnp.transpose(out, (0, 3, 1, 2))


def init_params(key, filters):
    """Deterministic weights: 5 blocks, block i has in_features = i*filters."""
    params = []
    for i in range(1, 6):
        cin = i * filters
        key, kw, kb = jax.random.split(key, 3)
        fan_in = cin * 9
        bound = 1.0 / np.sqrt(fan_in)
        w = jax.random.uniform(kw, (3, 3, cin, filters), jnp.float32,
                               minval=-bound, maxval=bound)
        b = jax.random.uniform(kb, (filters,), jnp.float32,
                               minval=-bound, maxval=bound)
        params.append((w, b))
    return params


if __name__ == "__main__":
    filters = 4
    N, H, W = 2, 16, 16
    res_scale = 0.2

    key = jax.random.PRNGKey(0)
    key, kx = jax.random.split(key)
    x = jax.random.normal(kx, (N, filters, H, W), jnp.float32)  # NCHW
    params = init_params(key, filters)

    out = dense_residual_block(x, params, res_scale)
    out = jax.block_until_ready(out)

    ref = jax.block_until_ready(dense_residual_block_ref(x, params, res_scale))
    np.testing.assert_allclose(np.asarray(out), np.asarray(ref),
                               rtol=1e-4, atol=1e-4)
    assert out.shape == x.shape and out.dtype == x.dtype
    print("KERNEL_OK")
</pallas_src>

<mosaic_0001>
module attributes {stable_mosaic.version = 11 : i64} {
  func.func @kernel(%arg0: i32, %arg1: memref<1x4x256xf32, #tpu.memory_space<vmem>>, %arg2: memref<4x540xf32, #tpu.memory_space<vmem>>, %arg3: memref<4x5xf32, #tpu.memory_space<vmem>>, %arg4: memref<1x4x256xf32, #tpu.memory_space<vmem>>, %arg5: memref<20x512xf32, #tpu.memory_space<vmem>>) attributes {dimension_semantics = [#tpu.dimension_semantics<parallel>], iteration_bounds = array<i64: 2>, scalar_prefetch = 0 : i64, scratch_operands = 1 : i64, tpu.core_type = #tpu.core_type<tc>, window_params = [{transform_indices = @transform_0, window_bounds = array<i64: 1, 4, 256>}, {pipeline_mode = #tpu.pipeline_mode<synchronous>, transform_indices = @transform_1, window_bounds = array<i64: 4, 540>}, {pipeline_mode = #tpu.pipeline_mode<synchronous>, transform_indices = @transform_2, window_bounds = array<i64: 4, 5>}, {transform_indices = @transform_3, window_bounds = array<i64: 1, 4, 256>}]} {
    %cst = arith.constant 0.000000e+00 : f32
    %0 = vector.broadcast %cst : f32 to vector<20x512xf32>
    %c0 = arith.constant 0 : index
    %c0_0 = arith.constant 0 : index
    %1 = vector.load %arg5[%c0, %c0_0] : memref<20x512xf32, #tpu.memory_space<vmem>>, vector<20x512xf32>
    tpu.vector_store %arg5[%c0, %c0_0], %0 {strides = array<i32>} : memref<20x512xf32, #tpu.memory_space<vmem>>, vector<20x512xf32>,
    %c0_1 = arith.constant 0 : index
    %c0_2 = arith.constant 0 : index
    %c0_3 = arith.constant 0 : index
    %2 = vector.load %arg1[%c0_1, %c0_2, %c0_3] : memref<1x4x256xf32, #tpu.memory_space<vmem>>, vector<1x4x256xf32>
    %3 = vector.shape_cast %2 : vector<1x4x256xf32> to vector<4x256xf32>
    %c0_4 = arith.constant 0 : index
    %c128 = arith.constant 128 : index
    %4 = vector.load %arg5[%c0_4, %c128] : memref<20x512xf32, #tpu.memory_space<vmem>>, vector<4x256xf32>
    tpu.vector_store %arg5[%c0_4, %c128], %3 {strides = array<i32>} : memref<20x512xf32, #tpu.memory_space<vmem>>, vector<4x256xf32>,
    %c0_5 = arith.constant 0 : index
    %c0_6 = arith.constant 0 : index
    %5 = vector.load %arg2[%c0_5, %c0_6] : memref<4x540xf32, #tpu.memory_space<vmem>>, vector<4x540xf32>
    %6 = tpu.iota {dimensions = array<i32: 1>} : vector<1x256xi32>
    %c16_i32 = arith.constant 16 : i32
    %c0_i32 = arith.constant 0 : i32
    %7 = arith.cmpi eq, %c16_i32, %c0_i32 : i32
    %c1_i32 = arith.constant 1 : i32
    %8 = arith.select %7, %c1_i32, %c16_i32 : i32
    %9 = vector.broadcast %8 : i32 to vector<1x256xi32>
    %10 = arith.remsi %6, %9 : vector<1x256xi32>
    %c0_i32_7 = arith.constant 0 : i32
    %11 = vector.broadcast %c0_i32_7 : i32 to vector<1x256xi32>
    %12 = arith.cmpi ne, %10, %11 : vector<1x256xi32>
    %c0_i32_8 = arith.constant 0 : i32
    %13 = vector.broadcast %c0_i32_8 : i32 to vector<1x256xi32>
    %14 = arith.cmpi slt, %10, %13 : vector<1x256xi32>
    %c0_i32_9 = arith.constant 0 : i32
    %15 = arith.cmpi slt, %8, %c0_i32_9 : i32
    %16 = vector.broadcast %15 : i1 to vector<1x256xi1>
    %17 = vector.broadcast %16 : vector<1x256xi1> to vector<1x256xi1>
    %18 = arith.xori %14, %17 : vector<1x256xi1>
    %19 = arith.andi %18, %12 : vector<1x256xi1>
    %20 = vector.broadcast %8 : i32 to vector<1x256xi32>
    %21 = arith.addi %10, %20 : vector<1x256xi32>
    %22 = arith.select %19, %21, %10 : vector<1x256xi1>, vector<1x256xi32>
    %c0_i32_10 = arith.constant 0 : i32
    %23 = vector.broadcast %c0_i32_10 : i32 to vector<1x256xi32>
    %24 = arith.cmpi sgt, %22, %23 : vector<1x256xi32>
    %c15_i32 = arith.constant 15 : i32
    %25 = vector.broadcast %c15_i32 : i32 to vector<1x256xi32>
    %26 = arith.cmpi slt, %22, %25 : vector<1x256xi32>
    %cst_11 = arith.constant 0.000000e+00 : f32
    %27 = vector.broadcast %cst_11 : f32 to vector<4x256xf32>
    %28 = vector.extract_strided_slice %5 {offsets = [0, 0], sizes = [4, 4], strides = [1, 1]} : vector<4x540xf32> to vector<4x4xf32>
    %c0_12 = arith.constant 0 : index
    %c111 = arith.constant 111 : index
    %29 = vector.load %arg5[%c0_12, %c111] : memref<20x512xf32, #tpu.memory_space<vmem>>, vector<4x256xf32>
    %cst_13 = arith.constant dense<0.000000e+00> : vector<4x256xf32>
    %30 = tpu.matmul %28, %29, %cst_13 {dimension_numbers = #tpu.dot_dimension_numbers<[1], [0], [0], [1], [0, 0, 1, 1], [], []>} : vector<4x4xf32>, vector<4x256xf32>, vector<4x256xf32> -> vector<4x256xf32>
    %cst_14 = arith.constant 0.000000e+00 : f32
    %31 = vector.shape_cast %24 : vector<1x256xi1> to vector<1x256xi1>
    %32 = vector.broadcast %31 : vector<1x256xi1> to vector<4x256xi1>
    %33 = vector.broadcast %cst_14 : f32 to vector<4x256xf32>
    %34 = arith.select %32, %30, %33 : vector<4x256xi1>, vector<4x256xf32>
    %35 = arith.addf %27, %34 : vector<4x256xf32>
    %36 = vector.extract_strided_slice %5 {offsets = [0, 4], sizes = [4, 4], strides = [1, 1]} : vector<4x540xf32> to vector<4x4xf32>
    %c0_15 = arith.constant 0 : index
    %c112 = arith.constant 112 : index
    %37 = vector.load %arg5[%c0_15, %c112] : memref<20x512xf32, #tpu.memory_space<vmem>>, vector<4x256xf32>
    %cst_16 = arith.constant dense<0.000000e+00> : vector<4x256xf32>
    %38 = tpu.matmul %36, %37, %cst_16 {dimension_numbers = #tpu.dot_dimension_numbers<[1], [0], [0], [1], [0, 0, 1, 1], [], []>} : vector<4x4xf32>, vector<4x256xf32>, vector<4x256xf32> -> vector<4x256xf32>
    %39 = arith.addf %35, %38 : vector<4x256xf32>
    %40 = vector.extract_strided_slice %5 {offsets = [0, 8], sizes = [4, 4], strides = [1, 1]} : vector<4x540xf32> to vector<4x4xf32>
    %c0_17 = arith.constant 0 : index
    %c113 = arith.constant 113 : index
    %41 = vector.load %arg5[%c0_17, %c113] : memref<20x512xf32, #tpu.memory_space<vmem>>, vector<4x256xf32>
    %cst_18 = arith.constant dense<0.000000e+00> : vector<4x256xf32>
    %42 = tpu.matmul %40, %41, %cst_18 {dimension_numbers = #tpu.dot_dimension_numbers<[1], [0], [0], [1], [0, 0, 1, 1], [], []>} : vector<4x4xf32>, vector<4x256xf32>, vector<4x256xf32> -> vector<4x256xf32>
    %cst_19 = arith.constant 0.000000e+00 : f32
    %43 = vector.shape_cast %26 : vector<1x256xi1> to vector<1x256xi1>
    %44 = vector.broadcast %43 : vector<1x256xi1> to vector<4x256xi1>
    %45 = vector.broadcast %cst_19 : f32 to vector<4x256xf32>
    %46 = arith.select %44, %42, %45 : vector<4x256xi1>, vector<4x256xf32>
    %47 = arith.addf %39, %46 : vector<4x256xf32>
    %48 = vector.extract_strided_slice %5 {offsets = [0, 12], sizes = [4, 4], strides = [1, 1]} : vector<4x540xf32> to vector<4x4xf32>
    %c0_20 = arith.constant 0 : index
    %c127 = arith.constant 127 : index
    %49 = vector.load %arg5[%c0_20, %c127] : memref<20x512xf32, #tpu.memory_space<vmem>>, vector<4x256xf32>
    %cst_21 = arith.constant dense<0.000000e+00> : vector<4x256xf32>
    %50 = tpu.matmul %48, %49, %cst_21 {dimension_numbers = #tpu.dot_dimension_numbers<[1], [0], [0], [1], [0, 0, 1, 1], [], []>} : vector<4x4xf32>, vector<4x256xf32>, vector<4x256xf32> -> vector<4x256xf32>
    %cst_22 = arith.constant 0.000000e+00 : f32
    %51 = vector.shape_cast %24 : vector<1x256xi1> to vector<1x256xi1>
    %52 = vector.broadcast %51 : vector<1x256xi1> to vector<4x256xi1>
    %53 = vector.broadcast %cst_22 : f32 to vector<4x256xf32>
    %54 = arith.select %52, %50, %53 : vector<4x256xi1>, vector<4x256xf32>
    %55 = arith.addf %47, %54 : vector<4x256xf32>
    %56 = vector.extract_strided_slice %5 {offsets = [0, 16], sizes = [4, 4], strides = [1, 1]} : vector<4x540xf32> to vector<4x4xf32>
    %c0_23 = arith.constant 0 : index
    %c128_24 = arith.constant 128 : index
    %57 = vector.load %arg5[%c0_23, %c128_24] : memref<20x512xf32, #tpu.memory_space<vmem>>, vector<4x256xf32>
    %cst_25 = arith.constant dense<0.000000e+00> : vector<4x256xf32>
    %58 = tpu.matmul %56, %57, %cst_25 {dimension_numbers = #tpu.dot_dimension_numbers<[1], [0], [0], [1], [0, 0, 1, 1], [], []>} : vector<4x4xf32>, vector<4x256xf32>, vector<4x256xf32> -> vector<4x256xf32>
    %59 = arith.addf %55, %58 : vector<4x256xf32>
    %60 = vector.extract_strided_slice %5 {offsets = [0, 20], sizes = [4, 4], strides = [1, 1]} : vector<4x540xf32> to vector<4x4xf32>
    %c0_26 = arith.constant 0 : index
    %c129 = arith.constant 129 : index
    %61 = vector.load %arg5[%c0_26, %c129] : memref<20x512xf32, #tpu.memory_space<vmem>>, vector<4x256xf32>
    %cst_27 = arith.constant dense<0.000000e+00> : vector<4x256xf32>
    %62 = tpu.matmul %60, %61, %cst_27 {dimension_numbers = #tpu.dot_dimension_numbers<[1], [0], [0], [1], [0, 0, 1, 1], [], []>} : vector<4x4xf32>, vector<4x256xf32>, vector<4x256xf32> -> vector<4x256xf32>
    %cst_28 = arith.constant 0.000000e+00 : f32
    %63 = vector.shape_cast %26 : vector<1x256xi1> to vector<1x256xi1>
    %64 = vector.broadcast %63 : vector<1x256xi1> to vector<4x256xi1>
    %65 = vector.broadcast %cst_28 : f32 to vector<4x256xf32>
    %66 = arith.select %64, %62, %65 : vector<4x256xi1>, vector<4x256xf32>
    %67 = arith.addf %59, %66 : vector<4x256xf32>
    %68 = vector.extract_strided_slice %5 {offsets = [0, 24], sizes = [4, 4], strides = [1, 1]} : vector<4x540xf32> to vector<4x4xf32>
    %c0_29 = arith.constant 0 : index
    %c143 = arith.constant 143 : index
    %69 = vector.load %arg5[%c0_29, %c143] : memref<20x512xf32, #tpu.memory_space<vmem>>, vector<4x256xf32>
    %cst_30 = arith.constant dense<0.000000e+00> : vector<4x256xf32>
    %70 = tpu.matmul %68, %69, %cst_30 {dimension_numbers = #tpu.dot_dimension_numbers<[1], [0], [0], [1], [0, 0, 1, 1], [], []>} : vector<4x4xf32>, vector<4x256xf32>, vector<4x256xf32> -> vector<4x256xf32>
    %cst_31 = arith.constant 0.000000e+00 : f32
    %71 = vector.shape_cast %24 : vector<1x256xi1> to vector<1x256xi1>
    %72 = vector.broadcast %71 : vector<1x256xi1> to vector<4x256xi1>
    %73 = vector.broadcast %cst_31 : f32 to vector<4x256xf32>
    %74 = arith.select %72, %70, %73 : vector<4x256xi1>, vector<4x256xf32>
    %75 = arith.addf %67, %74 : vector<4x256xf32>
    %76 = vector.extract_strided_slice %5 {offsets = [0, 28], sizes = [4, 4], strides = [1, 1]} : vector<4x540xf32> to vector<4x4xf32>
    %c0_32 = arith.constant 0 : index
    %c144 = arith.constant 144 : index
    %77 = vector.load %arg5[%c0_32, %c144] : memref<20x512xf32, #tpu.memory_space<vmem>>, vector<4x256xf32>
    %cst_33 = arith.constant dense<0.000000e+00> : vector<4x256xf32>
    %78 = tpu.matmul %76, %77, %cst_33 {dimension_numbers = #tpu.dot_dimension_numbers<[1], [0], [0], [1], [0, 0, 1, 1], [], []>} : vector<4x4xf32>, vector<4x256xf32>, vector<4x256xf32> -> vector<4x256xf32>
    %79 = arith.addf %75, %78 : vector<4x256xf32>
    %80 = vector.extract_strided_slice %5 {offsets = [0, 32], sizes = [4, 4], strides = [1, 1]} : vector<4x540xf32> to vector<4x4xf32>
    %c0_34 = arith.constant 0 : index
    %c145 = arith.constant 145 : index
    %81 = vector.load %arg5[%c0_34, %c145] : memref<20x512xf32, #tpu.memory_space<vmem>>, vector<4x256xf32>
    %cst_35 = arith.constant dense<0.000000e+00> : vector<4x256xf32>
    %82 = tpu.matmul %80, %81, %cst_35 {dimension_numbers = #tpu.dot_dimension_numbers<[1], [0], [0], [1], [0, 0, 1, 1], [], []>} : vector<4x4xf32>, vector<4x256xf32>, vector<4x256xf32> -> vector<4x256xf32>
    %cst_36 = arith.constant 0.000000e+00 : f32
    %83 = vector.shape_cast %26 : vector<1x256xi1> to vector<1x256xi1>
    %84 = vector.broadcast %83 : vector<1x256xi1> to vector<4x256xi1>
    %85 = vector.broadcast %cst_36 : f32 to vector<4x256xf32>
    %86 = arith.select %84, %82, %85 : vector<4x256xi1>, vector<4x256xf32>
    %87 = arith.addf %79, %86 : vector<4x256xf32>
    %c0_37 = arith.constant 0 : index
    %c0_38 = arith.constant 0 : index
    %88 = vector.load %arg3[%c0_37, %c0_38] : memref<4x5xf32, #tpu.memory_space<vmem>>, vector<4x1xf32>
    %89 = vector.broadcast %88 : vector<4x1xf32> to vector<4x256xf32>
    %90 = arith.addf %87, %89 : vector<4x256xf32>
    %cst_39 = arith.constant 0.000000e+00 : f32
    %91 = vector.broadcast %cst_39 : f32 to vector<4x256xf32>
    %92 = arith.cmpf oge, %90, %91 : vector<4x256xf32>
    %cst_40 = arith.constant 0.00999999977 : f32
    %93 = vector.broadcast %cst_40 : f32 to vector<4x256xf32>
    %94 = arith.mulf %93, %90 : vector<4x256xf32>
    %95 = arith.select %92, %90, %94 : vector<4x256xi1>, vector<4x256xf32>
    %c4 = arith.constant 4 : index
    %c128_41 = arith.constant 128 : index
    %96 = vector.load %arg5[%c4, %c128_41] : memref<20x512xf32, #tpu.memory_space<vmem>>, vector<4x256xf32>
    tpu.vector_store %arg5[%c4, %c128_41], %95 {strides = array<i32>} : memref<20x512xf32, #tpu.memory_space<vmem>>, vector<4x256xf32>,
    %cst_42 = arith.constant 0.000000e+00 : f32
    %97 = vector.broadcast %cst_42 : f32 to vector<4x256xf32>
    %98 = vector.extract_strided_slice %5 {offsets = [0, 36], sizes = [4, 8], strides = [1, 1]} : vector<4x540xf32> to vector<4x8xf32>
    %c0_43 = arith.constant 0 : index
    %c111_44 = arith.constant 111 : index
    %99 = vector.load %arg5[%c0_43, %c111_44] : memref<20x512xf32, #tpu.memory_space<vmem>>, vector<8x256xf32>
    %cst_45 = arith.constant dense<0.000000e+00> : vector<4x256xf32>
    %100 = tpu.matmul %98, %99, %cst_45 {dimension_numbers = #tpu.dot_dimension_numbers<[1], [0], [0], [1], [0, 0, 1, 1], [], []>} : vector<4x8xf32>, vector<8x256xf32>, vector<4x256xf32> -> vector<4x256xf32>
    %cst_46 = arith.constant 0.000000e+00 : f32
    %101 = vector.shape_cast %24 : vector<1x256xi1> to vector<1x256xi1>
    %102 = vector.broadcast %101 : vector<1x256xi1> to vector<4x256xi1>
    %103 = vector.broadcast %cst_46 : f32 to vector<4x256xf32>
    %104 = arith.select %102, %100, %103 : vector<4x256xi1>, vector<4x256xf32>
    %105 = arith.addf %97, %104 : vector<4x256xf32>
    %106 = vector.extract_strided_slice %5 {offsets = [0, 44], sizes = [4, 8], strides = [1, 1]} : vector<4x540xf32> to vector<4x8xf32>
    %c0_47 = arith.constant 0 : index
    %c112_48 = arith.constant 112 : index
    %107 = vector.load %arg5[%c0_47, %c112_48] : memref<20x512xf32, #tpu.memory_space<vmem>>, vector<8x256xf32>
    %cst_49 = arith.constant dense<0.000000e+00> : vector<4x256xf32>
    %108 = tpu.matmul %106, %107, %cst_49 {dimension_numbers = #tpu.dot_dimension_numbers<[1], [0], [0], [1], [0, 0, 1, 1], [], []>} : vector<4x8xf32>, vector<8x256xf32>, vector<4x256xf32> -> vector<4x256xf32>
    %109 = arith.addf %105, %108 : vector<4x256xf32>
    %110 = vector.extract_strided_slice %5 {offsets = [0, 52], sizes = [4, 8], strides = [1, 1]} : vector<4x540xf32> to vector<4x8xf32>
    %c0_50 = arith.constant 0 : index
    %c113_51 = arith.constant 113 : index
    %111 = vector.load %arg5[%c0_50, %c113_51] : memref<20x512xf32, #tpu.memory_space<vmem>>, vector<8x256xf32>
    %cst_52 = arith.constant dense<0.000000e+00> : vector<4x256xf32>
    %112 = tpu.matmul %110, %111, %cst_52 {dimension_numbers = #tpu.dot_dimension_numbers<[1], [0], [0], [1], [0, 0, 1, 1], [], []>} : vector<4x8xf32>, vector<8x256xf32>, vector<4x256xf32> -> vector<4x256xf32>
    %cst_53 = arith.constant 0.000000e+00 : f32
    %113 = vector.shape_cast %26 : vector<1x256xi1> to vector<1x256xi1>
    %114 = vector.broadcast %113 : vector<1x256xi1> to vector<4x256xi1>
    %115 = vector.broadcast %cst_53 : f32 to vector<4x256xf32>
    %116 = arith.select %114, %112, %115 : vector<4x256xi1>, vector<4x256xf32>
    %117 = arith.addf %109, %116 : vector<4x256xf32>
    %118 = vector.extract_strided_slice %5 {offsets = [0, 60], sizes = [4, 8], strides = [1, 1]} : vector<4x540xf32> to vector<4x8xf32>
    %c0_54 = arith.constant 0 : index
    %c127_55 = arith.constant 127 : index
    %119 = vector.load %arg5[%c0_54, %c127_55] : memref<20x512xf32, #tpu.memory_space<vmem>>, vector<8x256xf32>
    %cst_56 = arith.constant dense<0.000000e+00> : vector<4x256xf32>
    %120 = tpu.matmul %118, %119, %cst_56 {dimension_numbers = #tpu.dot_dimension_numbers<[1], [0], [0], [1], [0, 0, 1, 1], [], []>} : vector<4x8xf32>, vector<8x256xf32>, vector<4x256xf32> -> vector<4x256xf32>
    %cst_57 = arith.constant 0.000000e+00 : f32
    %121 = vector.shape_cast %24 : vector<1x256xi1> to vector<1x256xi1>
    %122 = vector.broadcast %121 : vector<1x256xi1> to vector<4x256xi1>
    %123 = vector.broadcast %cst_57 : f32 to vector<4x256xf32>
    %124 = arith.select %122, %120, %123 : vector<4x256xi1>, vector<4x256xf32>
    %125 = arith.addf %117, %124 : vector<4x256xf32>
    %126 = vector.extract_strided_slice %5 {offsets = [0, 68], sizes = [4, 8], strides = [1, 1]} : vector<4x540xf32> to vector<4x8xf32>
    %c0_58 = arith.constant 0 : index
    %c128_59 = arith.constant 128 : index
    %127 = vector.load %arg5[%c0_58, %c128_59] : memref<20x512xf32, #tpu.memory_space<vmem>>, vector<8x256xf32>
    %cst_60 = arith.constant dense<0.000000e+00> : vector<4x256xf32>
    %128 = tpu.matmul %126, %127, %cst_60 {dimension_numbers = #tpu.dot_dimension_numbers<[1], [0], [0], [1], [0, 0, 1, 1], [], []>} : vector<4x8xf32>, vector<8x256xf32>, vector<4x256xf32> -> vector<4x256xf32>
    %129 = arith.addf %125, %128 : vector<4x256xf32>
    %130 = vector.extract_strided_slice %5 {offsets = [0, 76], sizes = [4, 8], strides = [1, 1]} : vector<4x540xf32> to vector<4x8xf32>
    %c0_61 = arith.constant 0 : index
    %c129_62 = arith.constant 129 : index
    %131 = vector.load %arg5[%c0_61, %c129_62] : memref<20x512xf32, #tpu.memory_space<vmem>>, vector<8x256xf32>
    %cst_63 = arith.constant dense<0.000000e+00> : vector<4x256xf32>
    %132 = tpu.matmul %130, %131, %cst_63 {dimension_numbers = #tpu.dot_dimension_numbers<[1], [0], [0], [1], [0, 0, 1, 1], [], []>} : vector<4x8xf32>, vector<8x256xf32>, vector<4x256xf32> -> vector<4x256xf32>
    %cst_64 = arith.constant 0.000000e+00 : f32
    %133 = vector.shape_cast %26 : vector<1x256xi1> to vector<1x256xi1>
    %134 = vector.broadcast %133 : vector<1x256xi1> to vector<4x256xi1>
    %135 = vector.broadcast %cst_64 : f32 to vector<4x256xf32>
    %136 = arith.select %134, %132, %135 : vector<4x256xi1>, vector<4x256xf32>
    %137 = arith.addf %129, %136 : vector<4x256xf32>
    %138 = vector.extract_strided_slice %5 {offsets = [0, 84], sizes = [4, 8], strides = [1, 1]} : vector<4x540xf32> to vector<4x8xf32>
    %c0_65 = arith.constant 0 : index
    %c143_66 = arith.constant 143 : index
    %139 = vector.load %arg5[%c0_65, %c143_66] : memref<20x512xf32, #tpu.memory_space<vmem>>, vector<8x256xf32>
    %cst_67 = arith.constant dense<0.000000e+00> : vector<4x256xf32>
    %140 = tpu.matmul %138, %139, %cst_67 {dimension_numbers = #tpu.dot_dimension_numbers<[1], [0], [0], [1], [0, 0, 1, 1], [], []>} : vector<4x8xf32>, vector<8x256xf32>, vector<4x256xf32> -> vector<4x256xf32>
    %cst_68 = arith.constant 0.000000e+00 : f32
    %141 = vector.shape_cast %24 : vector<1x256xi1> to vector<1x256xi1>
    %142 = vector.broadcast %141 : vector<1x256xi1> to vector<4x256xi1>
    %143 = vector.broadcast %cst_68 : f32 to vector<4x256xf32>
    %144 = arith.select %142, %140, %143 : vector<4x256xi1>, vector<4x256xf32>
    %145 = arith.addf %137, %144 : vector<4x256xf32>
    %146 = vector.extract_strided_slice %5 {offsets = [0, 92], sizes = [4, 8], strides = [1, 1]} : vector<4x540xf32> to vector<4x8xf32>
    %c0_69 = arith.constant 0 : index
    %c144_70 = arith.constant 144 : index
    %147 = vector.load %arg5[%c0_69, %c144_70] : memref<20x512xf32, #tpu.memory_space<vmem>>, vector<8x256xf32>
    %cst_71 = arith.constant dense<0.000000e+00> : vector<4x256xf32>
    %148 = tpu.matmul %146, %147, %cst_71 {dimension_numbers = #tpu.dot_dimension_numbers<[1], [0], [0], [1], [0, 0, 1, 1], [], []>} : vector<4x8xf32>, vector<8x256xf32>, vector<4x256xf32> -> vector<4x256xf32>
    %149 = arith.addf %145, %148 : vector<4x256xf32>
    %150 = vector.extract_strided_slice %5 {offsets = [0, 100], sizes = [4, 8], strides = [1, 1]} : vector<4x540xf32> to vector<4x8xf32>
    %c0_72 = arith.constant 0 : index
    %c145_73 = arith.constant 145 : index
    %151 = vector.load %arg5[%c0_72, %c145_73] : memref<20x512xf32, #tpu.memory_space<vmem>>, vector<8x256xf32>
    %cst_74 = arith.constant dense<0.000000e+00> : vector<4x256xf32>
    %152 = tpu.matmul %150, %151, %cst_74 {dimension_numbers = #tpu.dot_dimension_numbers<[1], [0], [0], [1], [0, 0, 1, 1], [], []>} : vector<4x8xf32>, vector<8x256xf32>, vector<4x256xf32> -> vector<4x256xf32>
    %cst_75 = arith.constant 0.000000e+00 : f32
    %153 = vector.shape_cast %26 : vector<1x256xi1> to vector<1x256xi1>
    %154 = vector.broadcast %153 : vector<1x256xi1> to vector<4x256xi1>
    %155 = vector.broadcast %cst_75 : f32 to vector<4x256xf32>
    %156 = arith.select %154, %152, %155 : vector<4x256xi1>, vector<4x256xf32>
    %157 = arith.addf %149, %156 : vector<4x256xf32>
    %c0_76 = arith.constant 0 : index
    %c1 = arith.constant 1 : index
    %158 = vector.load %arg3[%c0_76, %c1] : memref<4x5xf32, #tpu.memory_space<vmem>>, vector<4x1xf32>
    %159 = vector.broadcast %158 : vector<4x1xf32> to vector<4x256xf32>
    %160 = arith.addf %157, %159 : vector<4x256xf32>
    %cst_77 = arith.constant 0.000000e+00 : f32
    %161 = vector.broadcast %cst_77 : f32 to vector<4x256xf32>
    %162 = arith.cmpf oge, %160, %161 : vector<4x256xf32>
    %cst_78 = arith.constant 0.00999999977 : f32
    %163 = vector.broadcast %cst_78 : f32 to vector<4x256xf32>
    %164 = arith.mulf %163, %160 : vector<4x256xf32>
    %165 = arith.select %162, %160, %164 : vector<4x256xi1>, vector<4x256xf32>
    %c8 = arith.constant 8 : index
    %c128_79 = arith.constant 128 : index
    %166 = vector.load %arg5[%c8, %c128_79] : memref<20x512xf32, #tpu.memory_space<vmem>>, vector<4x256xf32>
    tpu.vector_store %arg5[%c8, %c128_79], %165 {strides = array<i32>} : memref<20x512xf32, #tpu.memory_space<vmem>>, vector<4x256xf32>,
    %cst_80 = arith.constant 0.000000e+00 : f32
    %167 = vector.broadcast %cst_80 : f32 to vector<4x256xf32>
    %168 = vector.extract_strided_slice %5 {offsets = [0, 108], sizes = [4, 12], strides = [1, 1]} : vector<4x540xf32> to vector<4x12xf32>
    %c0_81 = arith.constant 0 : index
    %c111_82 = arith.constant 111 : index
    %169 = vector.load %arg5[%c0_81, %c111_82] : memref<20x512xf32, #tpu.memory_space<vmem>>, vector<12x256xf32>
    %cst_83 = arith.constant dense<0.000000e+00> : vector<4x256xf32>
    %170 = tpu.matmul %168, %169, %cst_83 {dimension_numbers = #tpu.dot_dimension_numbers<[1], [0], [0], [1], [0, 0, 1, 1], [], []>} : vector<4x12xf32>, vector<12x256xf32>, vector<4x256xf32> -> vector<4x256xf32>
    %cst_84 = arith.constant 0.000000e+00 : f32
    %171 = vector.shape_cast %24 : vector<1x256xi1> to vector<1x256xi1>
    %172 = vector.broadcast %171 : vector<1x256xi1> to vector<4x256xi1>
    %173 = vector.broadcast %cst_84 : f32 to vector<4x256xf32>
    %174 = arith.select %172, %170, %173 : vector<4x256xi1>, vector<4x256xf32>
    %175 = arith.addf %167, %174 : vector<4x256xf32>
    %176 = vector.extract_strided_slice %5 {offsets = [0, 120], sizes = [4, 12], strides = [1, 1]} : vector<4x540xf32> to vector<4x12xf32>
    %c0_85 = arith.constant 0 : index
    %c112_86 = arith.constant 112 : index
    %177 = vector.load %arg5[%c0_85, %c112_86] : memref<20x512xf32, #tpu.memory_space<vmem>>, vector<12x256xf32>
    %cst_87 = arith.constant dense<0.000000e+00> : vector<4x256xf32>
    %178 = tpu.matmul %176, %177, %cst_87 {dimension_numbers = #tpu.dot_dimension_numbers<[1], [0], [0], [1], [0, 0, 1, 1], [], []>} : vector<4x12xf32>, vector<12x256xf32>, vector<4x256xf32> -> vector<4x256xf32>
    %179 = arith.addf %175, %178 : vector<4x256xf32>
    %180 = vector.extract_strided_slice %5 {offsets = [0, 132], sizes = [4, 12], strides = [1, 1]} : vector<4x540xf32> to vector<4x12xf32>
    %c0_88 = arith.constant 0 : index
    %c113_89 = arith.constant 113 : index
    %181 = vector.load %arg5[%c0_88, %c113_89] : memref<20x512xf32, #tpu.memory_space<vmem>>, vector<12x256xf32>
    %cst_90 = arith.constant dense<0.000000e+00> : vector<4x256xf32>
    %182 = tpu.matmul %180, %181, %cst_90 {dimension_numbers = #tpu.dot_dimension_numbers<[1], [0], [0], [1], [0, 0, 1, 1], [], []>} : vector<4x12xf32>, vector<12x256xf32>, vector<4x256xf32> -> vector<4x256xf32>
    %cst_91 = arith.constant 0.000000e+00 : f32
    %183 = vector.shape_cast %26 : vector<1x256xi1> to vector<1x256xi1>
    %184 = vector.broadcast %183 : vector<1x256xi1> to vector<4x256xi1>
    %185 = vector.broadcast %cst_91 : f32 to vector<4x256xf32>
    %186 = arith.select %184, %182, %185 : vector<4x256xi1>, vector<4x256xf32>
    %187 = arith.addf %179, %186 : vector<4x256xf32>
    %188 = vector.extract_strided_slice %5 {offsets = [0, 144], sizes = [4, 12], strides = [1, 1]} : vector<4x540xf32> to vector<4x12xf32>
    %c0_92 = arith.constant 0 : index
    %c127_93 = arith.constant 127 : index
    %189 = vector.load %arg5[%c0_92, %c127_93] : memref<20x512xf32, #tpu.memory_space<vmem>>, vector<12x256xf32>
    %cst_94 = arith.constant dense<0.000000e+00> : vector<4x256xf32>
    %190 = tpu.matmul %188, %189, %cst_94 {dimension_numbers = #tpu.dot_dimension_numbers<[1], [0], [0], [1], [0, 0, 1, 1], [], []>} : vector<4x12xf32>, vector<12x256xf32>, vector<4x256xf32> -> vector<4x256xf32>
    %cst_95 = arith.constant 0.000000e+00 : f32
    %191 = vector.shape_cast %24 : vector<1x256xi1> to vector<1x256xi1>
    %192 = vector.broadcast %191 : vector<1x256xi1> to vector<4x256xi1>
    %193 = vector.broadcast %cst_95 : f32 to vector<4x256xf32>
    %194 = arith.select %192, %190, %193 : vector<4x256xi1>, vector<4x256xf32>
    %195 = arith.addf %187, %194 : vector<4x256xf32>
    %196 = vector.extract_strided_slice %5 {offsets = [0, 156], sizes = [4, 12], strides = [1, 1]} : vector<4x540xf32> to vector<4x12xf32>
    %c0_96 = arith.constant 0 : index
    %c128_97 = arith.constant 128 : index
    %197 = vector.load %arg5[%c0_96, %c128_97] : memref<20x512xf32, #tpu.memory_space<vmem>>, vector<12x256xf32>
    %cst_98 = arith.constant dense<0.000000e+00> : vector<4x256xf32>
    %198 = tpu.matmul %196, %197, %cst_98 {dimension_numbers = #tpu.dot_dimension_numbers<[1], [0], [0], [1], [0, 0, 1, 1], [], []>} : vector<4x12xf32>, vector<12x256xf32>, vector<4x256xf32> -> vector<4x256xf32>
    %199 = arith.addf %195, %198 : vector<4x256xf32>
    %200 = vector.extract_strided_slice %5 {offsets = [0, 168], sizes = [4, 12], strides = [1, 1]} : vector<4x540xf32> to vector<4x12xf32>
    %c0_99 = arith.constant 0 : index
    %c129_100 = arith.constant 129 : index
    %201 = vector.load %arg5[%c0_99, %c129_100] : memref<20x512xf32, #tpu.memory_space<vmem>>, vector<12x256xf32>
    %cst_101 = arith.constant dense<0.000000e+00> : vector<4x256xf32>
    %202 = tpu.matmul %200, %201, %cst_101 {dimension_numbers = #tpu.dot_dimension_numbers<[1], [0], [0], [1], [0, 0, 1, 1], [], []>} : vector<4x12xf32>, vector<12x256xf32>, vector<4x256xf32> -> vector<4x256xf32>
    %cst_102 = arith.constant 0.000000e+00 : f32
    %203 = vector.shape_cast %26 : vector<1x256xi1> to vector<1x256xi1>
    %204 = vector.broadcast %203 : vector<1x256xi1> to vector<4x256xi1>
    %205 = vector.broadcast %cst_102 : f32 to vector<4x256xf32>
    %206 = arith.select %204, %202, %205 : vector<4x256xi1>, vector<4x256xf32>
    %207 = arith.addf %199, %206 : vector<4x256xf32>
    %208 = vector.extract_strided_slice %5 {offsets = [0, 180], sizes = [4, 12], strides = [1, 1]} : vector<4x540xf32> to vector<4x12xf32>
    %c0_103 = arith.constant 0 : index
    %c143_104 = arith.constant 143 : index
    %209 = vector.load %arg5[%c0_103, %c143_104] : memref<20x512xf32, #tpu.memory_space<vmem>>, vector<12x256xf32>
    %cst_105 = arith.constant dense<0.000000e+00> : vector<4x256xf32>
    %210 = tpu.matmul %208, %209, %cst_105 {dimension_numbers = #tpu.dot_dimension_numbers<[1], [0], [0], [1], [0, 0, 1, 1], [], []>} : vector<4x12xf32>, vector<12x256xf32>, vector<4x256xf32> -> vector<4x256xf32>
    %cst_106 = arith.constant 0.000000e+00 : f32
    %211 = vector.shape_cast %24 : vector<1x256xi1> to vector<1x256xi1>
    %212 = vector.broadcast %211 : vector<1x256xi1> to vector<4x256xi1>
    %213 = vector.broadcast %cst_106 : f32 to vector<4x256xf32>
    %214 = arith.select %212, %210, %213 : vector<4x256xi1>, vector<4x256xf32>
    %215 = arith.addf %207, %214 : vector<4x256xf32>
    %216 = vector.extract_strided_slice %5 {offsets = [0, 192], sizes = [4, 12], strides = [1, 1]} : vector<4x540xf32> to vector<4x12xf32>
    %c0_107 = arith.constant 0 : index
    %c144_108 = arith.constant 144 : index
    %217 = vector.load %arg5[%c0_107, %c144_108] : memref<20x512xf32, #tpu.memory_space<vmem>>, vector<12x256xf32>
    %cst_109 = arith.constant dense<0.000000e+00> : vector<4x256xf32>
    %218 = tpu.matmul %216, %217, %cst_109 {dimension_numbers = #tpu.dot_dimension_numbers<[1], [0], [0], [1], [0, 0, 1, 1], [], []>} : vector<4x12xf32>, vector<12x256xf32>, vector<4x256xf32> -> vector<4x256xf32>
    %219 = arith.addf %215, %218 : vector<4x256xf32>
    %220 = vector.extract_strided_slice %5 {offsets = [0, 204], sizes = [4, 12], strides = [1, 1]} : vector<4x540xf32> to vector<4x12xf32>
    %c0_110 = arith.constant 0 : index
    %c145_111 = arith.constant 145 : index
    %221 = vector.load %arg5[%c0_110, %c145_111] : memref<20x512xf32, #tpu.memory_space<vmem>>, vector<12x256xf32>
    %cst_112 = arith.constant dense<0.000000e+00> : vector<4x256xf32>
    %222 = tpu.matmul %220, %221, %cst_112 {dimension_numbers = #tpu.dot_dimension_numbers<[1], [0], [0], [1], [0, 0, 1, 1], [], []>} : vector<4x12xf32>, vector<12x256xf32>, vector<4x256xf32> -> vector<4x256xf32>
    %cst_113 = arith.constant 0.000000e+00 : f32
    %223 = vector.shape_cast %26 : vector<1x256xi1> to vector<1x256xi1>
    %224 = vector.broadcast %223 : vector<1x256xi1> to vector<4x256xi1>
    %225 = vector.broadcast %cst_113 : f32 to vector<4x256xf32>
    %226 = arith.select %224, %222, %225 : vector<4x256xi1>, vector<4x256xf32>
    %227 = arith.addf %219, %226 : vector<4x256xf32>
    %c0_114 = arith.constant 0 : index
    %c2 = arith.constant 2 : index
    %228 = vector.load %arg3[%c0_114, %c2] : memref<4x5xf32, #tpu.memory_space<vmem>>, vector<4x1xf32>
    %229 = vector.broadcast %228 : vector<4x1xf32> to vector<4x256xf32>
    %230 = arith.addf %227, %229 : vector<4x256xf32>
    %cst_115 = arith.constant 0.000000e+00 : f32
    %231 = vector.broadcast %cst_115 : f32 to vector<4x256xf32>
    %232 = arith.cmpf oge, %230, %231 : vector<4x256xf32>
    %cst_116 = arith.constant 0.00999999977 : f32
    %233 = vector.broadcast %cst_116 : f32 to vector<4x256xf32>
    %234 = arith.mulf %233, %230 : vector<4x256xf32>
    %235 = arith.select %232, %230, %234 : vector<4x256xi1>, vector<4x256xf32>
    %c12 = arith.constant 12 : index
    %c128_117 = arith.constant 128 : index
    %236 = vector.load %arg5[%c12, %c128_117] : memref<20x512xf32, #tpu.memory_space<vmem>>, vector<4x256xf32>
    tpu.vector_store %arg5[%c12, %c128_117], %235 {strides = array<i32>} : memref<20x512xf32, #tpu.memory_space<vmem>>, vector<4x256xf32>,
    %cst_118 = arith.constant 0.000000e+00 : f32
    %237 = vector.broadcast %cst_118 : f32 to vector<4x256xf32>
    %238 = vector.extract_strided_slice %5 {offsets = [0, 216], sizes = [4, 16], strides = [1, 1]} : vector<4x540xf32> to vector<4x16xf32>
    %c0_119 = arith.constant 0 : index
    %c111_120 = arith.constant 111 : index
    %239 = vector.load %arg5[%c0_119, %c111_120] : memref<20x512xf32, #tpu.memory_space<vmem>>, vector<16x256xf32>
    %cst_121 = arith.constant dense<0.000000e+00> : vector<4x256xf32>
    %240 = tpu.matmul %238, %239, %cst_121 {dimension_numbers = #tpu.dot_dimension_numbers<[1], [0], [0], [1], [0, 0, 1, 1], [], []>} : vector<4x16xf32>, vector<16x256xf32>, vector<4x256xf32> -> vector<4x256xf32>
    %cst_122 = arith.constant 0.000000e+00 : f32
    %241 = vector.shape_cast %24 : vector<1x256xi1> to vector<1x256xi1>
    %242 = vector.broadcast %241 : vector<1x256xi1> to vector<4x256xi1>
    %243 = vector.broadcast %cst_122 : f32 to vector<4x256xf32>
    %244 = arith.select %242, %240, %243 : vector<4x256xi1>, vector<4x256xf32>
    %245 = arith.addf %237, %244 : vector<4x256xf32>
    %246 = vector.extract_strided_slice %5 {offsets = [0, 232], sizes = [4, 16], strides = [1, 1]} : vector<4x540xf32> to vector<4x16xf32>
    %c0_123 = arith.constant 0 : index
    %c112_124 = arith.constant 112 : index
    %247 = vector.load %arg5[%c0_123, %c112_124] : memref<20x512xf32, #tpu.memory_space<vmem>>, vector<16x256xf32>
    %cst_125 = arith.constant dense<0.000000e+00> : vector<4x256xf32>
    %248 = tpu.matmul %246, %247, %cst_125 {dimension_numbers = #tpu.dot_dimension_numbers<[1], [0], [0], [1], [0, 0, 1, 1], [], []>} : vector<4x16xf32>, vector<16x256xf32>, vector<4x256xf32> -> vector<4x256xf32>
    %249 = arith.addf %245, %248 : vector<4x256xf32>
    %250 = vector.extract_strided_slice %5 {offsets = [0, 248], sizes = [4, 16], strides = [1, 1]} : vector<4x540xf32> to vector<4x16xf32>
    %c0_126 = arith.constant 0 : index
    %c113_127 = arith.constant 113 : index
    %251 = vector.load %arg5[%c0_126, %c113_127] : memref<20x512xf32, #tpu.memory_space<vmem>>, vector<16x256xf32>
    %cst_128 = arith.constant dense<0.000000e+00> : vector<4x256xf32>
    %252 = tpu.matmul %250, %251, %cst_128 {dimension_numbers = #tpu.dot_dimension_numbers<[1], [0], [0], [1], [0, 0, 1, 1], [], []>} : vector<4x16xf32>, vector<16x256xf32>, vector<4x256xf32> -> vector<4x256xf32>
    %cst_129 = arith.constant 0.000000e+00 : f32
    %253 = vector.shape_cast %26 : vector<1x256xi1> to vector<1x256xi1>
    %254 = vector.broadcast %253 : vector<1x256xi1> to vector<4x256xi1>
    %255 = vector.broadcast %cst_129 : f32 to vector<4x256xf32>
    %256 = arith.select %254, %252, %255 : vector<4x256xi1>, vector<4x256xf32>
    %257 = arith.addf %249, %256 : vector<4x256xf32>
    %258 = vector.extract_strided_slice %5 {offsets = [0, 264], sizes = [4, 16], strides = [1, 1]} : vector<4x540xf32> to vector<4x16xf32>
    %c0_130 = arith.constant 0 : index
    %c127_131 = arith.constant 127 : index
    %259 = vector.load %arg5[%c0_130, %c127_131] : memref<20x512xf32, #tpu.memory_space<vmem>>, vector<16x256xf32>
    %cst_132 = arith.constant dense<0.000000e+00> : vector<4x256xf32>
    %260 = tpu.matmul %258, %259, %cst_132 {dimension_numbers = #tpu.dot_dimension_numbers<[1], [0], [0], [1], [0, 0, 1, 1], [], []>} : vector<4x16xf32>, vector<16x256xf32>, vector<4x256xf32> -> vector<4x256xf32>
    %cst_133 = arith.constant 0.000000e+00 : f32
    %261 = vector.shape_cast %24 : vector<1x256xi1> to vector<1x256xi1>
    %262 = vector.broadcast %261 : vector<1x256xi1> to vector<4x256xi1>
    %263 = vector.broadcast %cst_133 : f32 to vector<4x256xf32>
    %264 = arith.select %262, %260, %263 : vector<4x256xi1>, vector<4x256xf32>
    %265 = arith.addf %257, %264 : vector<4x256xf32>
    %266 = vector.extract_strided_slice %5 {offsets = [0, 280], sizes = [4, 16], strides = [1, 1]} : vector<4x540xf32> to vector<4x16xf32>
    %c0_134 = arith.constant 0 : index
    %c128_135 = arith.constant 128 : index
    %267 = vector.load %arg5[%c0_134, %c128_135] : memref<20x512xf32, #tpu.memory_space<vmem>>, vector<16x256xf32>
    %cst_136 = arith.constant dense<0.000000e+00> : vector<4x256xf32>
    %268 = tpu.matmul %266, %267, %cst_136 {dimension_numbers = #tpu.dot_dimension_numbers<[1], [0], [0], [1], [0, 0, 1, 1], [], []>} : vector<4x16xf32>, vector<16x256xf32>, vector<4x256xf32> -> vector<4x256xf32>
    %269 = arith.addf %265, %268 : vector<4x256xf32>
    %270 = vector.extract_strided_slice %5 {offsets = [0, 296], sizes = [4, 16], strides = [1, 1]} : vector<4x540xf32> to vector<4x16xf32>
    %c0_137 = arith.constant 0 : index
    %c129_138 = arith.constant 129 : index
    %271 = vector.load %arg5[%c0_137, %c129_138] : memref<20x512xf32, #tpu.memory_space<vmem>>, vector<16x256xf32>
    %cst_139 = arith.constant dense<0.000000e+00> : vector<4x256xf32>
    %272 = tpu.matmul %270, %271, %cst_139 {dimension_numbers = #tpu.dot_dimension_numbers<[1], [0], [0], [1], [0, 0, 1, 1], [], []>} : vector<4x16xf32>, vector<16x256xf32>, vector<4x256xf32> -> vector<4x256xf32>
    %cst_140 = arith.constant 0.000000e+00 : f32
    %273 = vector.shape_cast %26 : vector<1x256xi1> to vector<1x256xi1>
    %274 = vector.broadcast %273 : vector<1x256xi1> to vector<4x256xi1>
    %275 = vector.broadcast %cst_140 : f32 to vector<4x256xf32>
    %276 = arith.select %274, %272, %275 : vector<4x256xi1>, vector<4x256xf32>
    %277 = arith.addf %269, %276 : vector<4x256xf32>
    %278 = vector.extract_strided_slice %5 {offsets = [0, 312], sizes = [4, 16], strides = [1, 1]} : vector<4x540xf32> to vector<4x16xf32>
    %c0_141 = arith.constant 0 : index
    %c143_142 = arith.constant 143 : index
    %279 = vector.load %arg5[%c0_141, %c143_142] : memref<20x512xf32, #tpu.memory_space<vmem>>, vector<16x256xf32>
    %cst_143 = arith.constant dense<0.000000e+00> : vector<4x256xf32>
    %280 = tpu.matmul %278, %279, %cst_143 {dimension_numbers = #tpu.dot_dimension_numbers<[1], [0], [0], [1], [0, 0, 1, 1], [], []>} : vector<4x16xf32>, vector<16x256xf32>, vector<4x256xf32> -> vector<4x256xf32>
    %cst_144 = arith.constant 0.000000e+00 : f32
    %281 = vector.shape_cast %24 : vector<1x256xi1> to vector<1x256xi1>
    %282 = vector.broadcast %281 : vector<1x256xi1> to vector<4x256xi1>
    %283 = vector.broadcast %cst_144 : f32 to vector<4x256xf32>
    %284 = arith.select %282, %280, %283 : vector<4x256xi1>, vector<4x256xf32>
    %285 = arith.addf %277, %284 : vector<4x256xf32>
    %286 = vector.extract_strided_slice %5 {offsets = [0, 328], sizes = [4, 16], strides = [1, 1]} : vector<4x540xf32> to vector<4x16xf32>
    %c0_145 = arith.constant 0 : index
    %c144_146 = arith.constant 144 : index
    %287 = vector.load %arg5[%c0_145, %c144_146] : memref<20x512xf32, #tpu.memory_space<vmem>>, vector<16x256xf32>
    %cst_147 = arith.constant dense<0.000000e+00> : vector<4x256xf32>
    %288 = tpu.matmul %286, %287, %cst_147 {dimension_numbers = #tpu.dot_dimension_numbers<[1], [0], [0], [1], [0, 0, 1, 1], [], []>} : vector<4x16xf32>, vector<16x256xf32>, vector<4x256xf32> -> vector<4x256xf32>
    %289 = arith.addf %285, %288 : vector<4x256xf32>
    %290 = vector.extract_strided_slice %5 {offsets = [0, 344], sizes = [4, 16], strides = [1, 1]} : vector<4x540xf32> to vector<4x16xf32>
    %c0_148 = arith.constant 0 : index
    %c145_149 = arith.constant 145 : index
    %291 = vector.load %arg5[%c0_148, %c145_149] : memref<20x512xf32, #tpu.memory_space<vmem>>, vector<16x256xf32>
    %cst_150 = arith.constant dense<0.000000e+00> : vector<4x256xf32>
    %292 = tpu.matmul %290, %291, %cst_150 {dimension_numbers = #tpu.dot_dimension_numbers<[1], [0], [0], [1], [0, 0, 1, 1], [], []>} : vector<4x16xf32>, vector<16x256xf32>, vector<4x256xf32> -> vector<4x256xf32>
    %cst_151 = arith.constant 0.000000e+00 : f32
    %293 = vector.shape_cast %26 : vector<1x256xi1> to vector<1x256xi1>
    %294 = vector.broadcast %293 : vector<1x256xi1> to vector<4x256xi1>
    %295 = vector.broadcast %cst_151 : f32 to vector<4x256xf32>
    %296 = arith.select %294, %292, %295 : vector<4x256xi1>, vector<4x256xf32>
    %297 = arith.addf %289, %296 : vector<4x256xf32>
    %c0_152 = arith.constant 0 : index
    %c3 = arith.constant 3 : index
    %298 = vector.load %arg3[%c0_152, %c3] : memref<4x5xf32, #tpu.memory_space<vmem>>, vector<4x1xf32>
    %299 = vector.broadcast %298 : vector<4x1xf32> to vector<4x256xf32>
    %300 = arith.addf %297, %299 : vector<4x256xf32>
    %cst_153 = arith.constant 0.000000e+00 : f32
    %301 = vector.broadcast %cst_153 : f32 to vector<4x256xf32>
    %302 = arith.cmpf oge, %300, %301 : vector<4x256xf32>
    %cst_154 = arith.constant 0.00999999977 : f32
    %303 = vector.broadcast %cst_154 : f32 to vector<4x256xf32>
    %304 = arith.mulf %303, %300 : vector<4x256xf32>
    %305 = arith.select %302, %300, %304 : vector<4x256xi1>, vector<4x256xf32>
    %c16 = arith.constant 16 : index
    %c128_155 = arith.constant 128 : index
    %306 = vector.load %arg5[%c16, %c128_155] : memref<20x512xf32, #tpu.memory_space<vmem>>, vector<4x256xf32>
    tpu.vector_store %arg5[%c16, %c128_155], %305 {strides = array<i32>} : memref<20x512xf32, #tpu.memory_space<vmem>>, vector<4x256xf32>,
    %cst_156 = arith.constant 0.000000e+00 : f32
    %307 = vector.broadcast %cst_156 : f32 to vector<4x256xf32>
    %308 = vector.extract_strided_slice %5 {offsets = [0, 360], sizes = [4, 20], strides = [1, 1]} : vector<4x540xf32> to vector<4x20xf32>
    %c0_157 = arith.constant 0 : index
    %c111_158 = arith.constant 111 : index
    %309 = vector.load %arg5[%c0_157, %c111_158] : memref<20x512xf32, #tpu.memory_space<vmem>>, vector<20x256xf32>
    %cst_159 = arith.constant dense<0.000000e+00> : vector<4x256xf32>
    %310 = tpu.matmul %308, %309, %cst_159 {dimension_numbers = #tpu.dot_dimension_numbers<[1], [0], [0], [1], [0, 0, 1, 1], [], []>} : vector<4x20xf32>, vector<20x256xf32>, vector<4x256xf32> -> vector<4x256xf32>
    %cst_160 = arith.constant 0.000000e+00 : f32
    %311 = vector.shape_cast %24 : vector<1x256xi1> to vector<1x256xi1>
    %312 = vector.broadcast %311 : vector<1x256xi1> to vector<4x256xi1>
    %313 = vector.broadcast %cst_160 : f32 to vector<4x256xf32>
    %314 = arith.select %312, %310, %313 : vector<4x256xi1>, vector<4x256xf32>
    %315 = arith.addf %307, %314 : vector<4x256xf32>
    %316 = vector.extract_strided_slice %5 {offsets = [0, 380], sizes = [4, 20], strides = [1, 1]} : vector<4x540xf32> to vector<4x20xf32>
    %c0_161 = arith.constant 0 : index
    %c112_162 = arith.constant 112 : index
    %317 = vector.load %arg5[%c0_161, %c112_162] : memref<20x512xf32, #tpu.memory_space<vmem>>, vector<20x256xf32>
    %cst_163 = arith.constant dense<0.000000e+00> : vector<4x256xf32>
    %318 = tpu.matmul %316, %317, %cst_163 {dimension_numbers = #tpu.dot_dimension_numbers<[1], [0], [0], [1], [0, 0, 1, 1], [], []>} : vector<4x20xf32>, vector<20x256xf32>, vector<4x256xf32> -> vector<4x256xf32>
    %319 = arith.addf %315, %318 : vector<4x256xf32>
    %320 = vector.extract_strided_slice %5 {offsets = [0, 400], sizes = [4, 20], strides = [1, 1]} : vector<4x540xf32> to vector<4x20xf32>
    %c0_164 = arith.constant 0 : index
    %c113_165 = arith.constant 113 : index
    %321 = vector.load %arg5[%c0_164, %c113_165] : memref<20x512xf32, #tpu.memory_space<vmem>>, vector<20x256xf32>
    %cst_166 = arith.constant dense<0.000000e+00> : vector<4x256xf32>
    %322 = tpu.matmul %320, %321, %cst_166 {dimension_numbers = #tpu.dot_dimension_numbers<[1], [0], [0], [1], [0, 0, 1, 1], [], []>} : vector<4x20xf32>, vector<20x256xf32>, vector<4x256xf32> -> vector<4x256xf32>
    %cst_167 = arith.constant 0.000000e+00 : f32
    %323 = vector.shape_cast %26 : vector<1x256xi1> to vector<1x256xi1>
    %324 = vector.broadcast %323 : vector<1x256xi1> to vector<4x256xi1>
    %325 = vector.broadcast %cst_167 : f32 to vector<4x256xf32>
    %326 = arith.select %324, %322, %325 : vector<4x256xi1>, vector<4x256xf32>
    %327 = arith.addf %319, %326 : vector<4x256xf32>
    %328 = vector.extract_strided_slice %5 {offsets = [0, 420], sizes = [4, 20], strides = [1, 1]} : vector<4x540xf32> to vector<4x20xf32>
    %c0_168 = arith.constant 0 : index
    %c127_169 = arith.constant 127 : index
    %329 = vector.load %arg5[%c0_168, %c127_169] : memref<20x512xf32, #tpu.memory_space<vmem>>, vector<20x256xf32>
    %cst_170 = arith.constant dense<0.000000e+00> : vector<4x256xf32>
    %330 = tpu.matmul %328, %329, %cst_170 {dimension_numbers = #tpu.dot_dimension_numbers<[1], [0], [0], [1], [0, 0, 1, 1], [], []>} : vector<4x20xf32>, vector<20x256xf32>, vector<4x256xf32> -> vector<4x256xf32>
    %cst_171 = arith.constant 0.000000e+00 : f32
    %331 = vector.shape_cast %24 : vector<1x256xi1> to vector<1x256xi1>
    %332 = vector.broadcast %331 : vector<1x256xi1> to vector<4x256xi1>
    %333 = vector.broadcast %cst_171 : f32 to vector<4x256xf32>
    %334 = arith.select %332, %330, %333 : vector<4x256xi1>, vector<4x256xf32>
    %335 = arith.addf %327, %334 : vector<4x256xf32>
    %336 = vector.extract_strided_slice %5 {offsets = [0, 440], sizes = [4, 20], strides = [1, 1]} : vector<4x540xf32> to vector<4x20xf32>
    %c0_172 = arith.constant 0 : index
    %c128_173 = arith.constant 128 : index
    %337 = vector.load %arg5[%c0_172, %c128_173] : memref<20x512xf32, #tpu.memory_space<vmem>>, vector<20x256xf32>
    %cst_174 = arith.constant dense<0.000000e+00> : vector<4x256xf32>
    %338 = tpu.matmul %336, %337, %cst_174 {dimension_numbers = #tpu.dot_dimension_numbers<[1], [0], [0], [1], [0, 0, 1, 1], [], []>} : vector<4x20xf32>, vector<20x256xf32>, vector<4x256xf32> -> vector<4x256xf32>
    %339 = arith.addf %335, %338 : vector<4x256xf32>
    %340 = vector.extract_strided_slice %5 {offsets = [0, 460], sizes = [4, 20], strides = [1, 1]} : vector<4x540xf32> to vector<4x20xf32>
    %c0_175 = arith.constant 0 : index
    %c129_176 = arith.constant 129 : index
    %341 = vector.load %arg5[%c0_175, %c129_176] : memref<20x512xf32, #tpu.memory_space<vmem>>, vector<20x256xf32>
    %cst_177 = arith.constant dense<0.000000e+00> : vector<4x256xf32>
    %342 = tpu.matmul %340, %341, %cst_177 {dimension_numbers = #tpu.dot_dimension_numbers<[1], [0], [0], [1], [0, 0, 1, 1], [], []>} : vector<4x20xf32>, vector<20x256xf32>, vector<4x256xf32> -> vector<4x256xf32>
    %cst_178 = arith.constant 0.000000e+00 : f32
    %343 = vector.shape_cast %26 : vector<1x256xi1> to vector<1x256xi1>
    %344 = vector.broadcast %343 : vector<1x256xi1> to vector<4x256xi1>
    %345 = vector.broadcast %cst_178 : f32 to vector<4x256xf32>
    %346 = arith.select %344, %342, %345 : vector<4x256xi1>, vector<4x256xf32>
    %347 = arith.addf %339, %346 : vector<4x256xf32>
    %348 = vector.extract_strided_slice %5 {offsets = [0, 480], sizes = [4, 20], strides = [1, 1]} : vector<4x540xf32> to vector<4x20xf32>
    %c0_179 = arith.constant 0 : index
    %c143_180 = arith.constant 143 : index
    %349 = vector.load %arg5[%c0_179, %c143_180] : memref<20x512xf32, #tpu.memory_space<vmem>>, vector<20x256xf32>
    %cst_181 = arith.constant dense<0.000000e+00> : vector<4x256xf32>
    %350 = tpu.matmul %348, %349, %cst_181 {dimension_numbers = #tpu.dot_dimension_numbers<[1], [0], [0], [1], [0, 0, 1, 1], [], []>} : vector<4x20xf32>, vector<20x256xf32>, vector<4x256xf32> -> vector<4x256xf32>
    %cst_182 = arith.constant 0.000000e+00 : f32
    %351 = vector.shape_cast %24 : vector<1x256xi1> to vector<1x256xi1>
    %352 = vector.broadcast %351 : vector<1x256xi1> to vector<4x256xi1>
    %353 = vector.broadcast %cst_182 : f32 to vector<4x256xf32>
    %354 = arith.select %352, %350, %353 : vector<4x256xi1>, vector<4x256xf32>
    %355 = arith.addf %347, %354 : vector<4x256xf32>
    %356 = vector.extract_strided_slice %5 {offsets = [0, 500], sizes = [4, 20], strides = [1, 1]} : vector<4x540xf32> to vector<4x20xf32>
    %c0_183 = arith.constant 0 : index
    %c144_184 = arith.constant 144 : index
    %357 = vector.load %arg5[%c0_183, %c144_184] : memref<20x512xf32, #tpu.memory_space<vmem>>, vector<20x256xf32>
    %cst_185 = arith.constant dense<0.000000e+00> : vector<4x256xf32>
    %358 = tpu.matmul %356, %357, %cst_185 {dimension_numbers = #tpu.dot_dimension_numbers<[1], [0], [0], [1], [0, 0, 1, 1], [], []>} : vector<4x20xf32>, vector<20x256xf32>, vector<4x256xf32> -> vector<4x256xf32>
    %359 = arith.addf %355, %358 : vector<4x256xf32>
    %360 = vector.extract_strided_slice %5 {offsets = [0, 520], sizes = [4, 20], strides = [1, 1]} : vector<4x540xf32> to vector<4x20xf32>
    %c0_186 = arith.constant 0 : index
    %c145_187 = arith.constant 145 : index
    %361 = vector.load %arg5[%c0_186, %c145_187] : memref<20x512xf32, #tpu.memory_space<vmem>>, vector<20x256xf32>
    %cst_188 = arith.constant dense<0.000000e+00> : vector<4x256xf32>
    %362 = tpu.matmul %360, %361, %cst_188 {dimension_numbers = #tpu.dot_dimension_numbers<[1], [0], [0], [1], [0, 0, 1, 1], [], []>} : vector<4x20xf32>, vector<20x256xf32>, vector<4x256xf32> -> vector<4x256xf32>
    %cst_189 = arith.constant 0.000000e+00 : f32
    %363 = vector.shape_cast %26 : vector<1x256xi1> to vector<1x256xi1>
    %364 = vector.broadcast %363 : vector<1x256xi1> to vector<4x256xi1>
    %365 = vector.broadcast %cst_189 : f32 to vector<4x256xf32>
    %366 = arith.select %364, %362, %365 : vector<4x256xi1>, vector<4x256xf32>
    %367 = arith.addf %359, %366 : vector<4x256xf32>
    %c0_190 = arith.constant 0 : index
    %c4_191 = arith.constant 4 : index
    %368 = vector.load %arg3[%c0_190, %c4_191] : memref<4x5xf32, #tpu.memory_space<vmem>>, vector<4x1xf32>
    %369 = vector.broadcast %368 : vector<4x1xf32> to vector<4x256xf32>
    %370 = arith.addf %367, %369 : vector<4x256xf32>
    %cst_192 = arith.constant 2.000000e-01 : f32
    %371 = vector.broadcast %cst_192 : f32 to vector<4x256xf32>
    %372 = arith.mulf %370, %371 : vector<4x256xf32>
    %373 = arith.addf %372, %3 : vector<4x256xf32>
    %c0_193 = arith.constant 0 : index
    %c0_194 = arith.constant 0 : index
    %c0_195 = arith.constant 0 : index
    %374 = vector.load %arg4[%c0_193, %c0_194, %c0_195] : memref<1x4x256xf32, #tpu.memory_space<vmem>>, vector<1x4x256xf32>
    %375 = vector.shape_cast %374 : vector<1x4x256xf32> to vector<4x256xf32>
    %376 = vector.shape_cast %373 : vector<4x256xf32> to vector<1x4x256xf32>
    tpu.vector_store %arg4[%c0_193, %c0_194, %c0_195], %376 {strides = array<i32>} : memref<1x4x256xf32, #tpu.memory_space<vmem>>, vector<1x4x256xf32>,
    return
  }
  func.func @transform_0(%arg0: i32) -> (i32, i32, i32) {
    %c0_i32 = arith.constant 0 : i32
    %c0_i32_0 = arith.constant 0 : i32
    %c0_i32_1 = arith.constant 0 : i32
    return %arg0, %c0_i32, %c0_i32_0 : i32, i32, i32
  }
  func.func @transform_1(%arg0: i32) -> (i32, i32) {
    %c0_i32 = arith.constant 0 : i32
    %c0_i32_0 = arith.constant 0 : i32
    %c0_i32_1 = arith.constant 0 : i32
    return %c0_i32, %c0_i32_0 : i32, i32
  }
  func.func @transform_2(%arg0: i32) -> (i32, i32) {
    %c0_i32 = arith.constant 0 : i32
    %c0_i32_0 = arith.constant 0 : i32
    %c0_i32_1 = arith.constant 0 : i32
    return %c0_i32, %c0_i32_0 : i32, i32
  }
  func.func @transform_3(%arg0: i32) -> (i32, i32, i32) {
    %c0_i32 = arith.constant 0 : i32
    %c0_i32_0 = arith.constant 0 : i32
    %c0_i32_1 = arith.constant 0 : i32
    return %arg0, %c0_i32, %c0_i32_0 : i32, i32, i32
  }
}

</mosaic_0001>

<llo_original>
// kernel: tpu_custom_call.1
$region0: #{tpu_custom_call.1}
  #allocation0 [shape = 'u32[]', space=smem, size = 0x4, offset = 0x4, fixed_abs, tag = 'smem constant byte address 0x4 - core index']
  #allocation1 [shape = 'u32[144,128]{1,0:T(1,128)}', space=vmem, size = 0x12000, scoped, tag = 'internal scratch']
  #allocation2 [shape = 'f32[20,512]{1,0:T(8,128)}', space=vmem, size = 0xc000, scoped, tag = 'scratch operand']
  %s0 = inlined_call_operand.hbm [shape: f32[2,4,256], index: 0, kind: input, shape index: {}]
  %s1 = inlined_call_operand.hbm [shape: f32[4,540], index: 1, kind: input, shape index: {}]
  %s2 = inlined_call_operand.hbm [shape: f32[4,5], index: 2, kind: input, shape index: {}]
  %s3 = inlined_call_operand.hbm [shape: f32[2,4,256], index: 3, kind: output, shape index: {}]
  %s4 = sld [smem:[#allocation0]]
  $region57: #{tpu_custom_call.1} parent=0
    _
  %s6 = ssub.s32 1, %s4
  %s7 = scalar_select 0, %s6, %s4
  $region1: #{tpu_custom_call.1} parent=0
    #allocation3 [shape = 'u8[8192]{0}', space=vmem, size = 0x2000, scoped, tag = 'input window, operand 0']
    #allocation4 [shape = 's32[2]{0}', space=sflag, size = 0x8, scoped, tag = 'scoped memory for tpu_custom_call.1']
    #allocation5 [shape = 's32[2]{0}', space=sflag, size = 0x8, scoped, tag = 'scoped memory for tpu_custom_call.1']
    #allocation6 [shape = 'u8[10240]{0}', space=vmem, size = 0x2800, scoped, tag = 'input window, operand 1, single buffered']
    #allocation7 [shape = 's32[1]{0}', space=sflag, size = 0x4, scoped, tag = 'scoped memory for tpu_custom_call.1']
    #allocation8 [shape = 'u8[2048]{0}', space=vmem, size = 0x800, scoped, tag = 'input window, operand 2, single buffered']
    #allocation9 [shape = 'u8[8192]{0}', space=vmem, size = 0x2000, scoped, tag = 'output window, operand 0']
    %8 = vsyncpa [#allocation4], 0
    %s9 = scalar_lea.sflag [#allocation4], 1
    %10 = vsyncpa %s9, 0
    %11 = vsyncpa [#allocation7], 0
    %12 = vsyncpa [#allocation5], 0
    %s13 = scalar_lea.sflag [#allocation5], 1
    %14 = vsyncpa %s13, 0
    loop: start=0, step=1, limit=4
    $region2: #{tpu_custom_call.1} parent=1 // loop_pre_header
      _
    $region3: #{tpu_custom_call.1} parent=1 // loop_header
      %s16 = sphi 0, %s20
      %p17 = scmp.ge.s32.totalorder %s16, 4
      %s26 = sphi 0, %s28
      %s29 = sphi 0, %s26
      %s30 = sphi 0, %s29
      %s46 = sphi 0, %s30
      %s50 = sphi 0, %s50
      %s52 = sphi 0, %s50
      %s53 = sphi 0, %s52
      %s67 = sphi 0, %s53
      %s71 = sphi 0, %s71
      %s73 = sphi 0, %s71
      %s74 = sphi 0, %s73
      %s88 = sphi 0, %s74
      %s94 = sphi 0, %s96
      %s97 = sphi 0, %s94
      %s98 = sphi 0, %s97
      %s114 = sphi 0, %s98
    $region4: #{tpu_custom_call.1} parent=1 // loop_header_branch
      %19 = sbr.rel (%p17) target = $region8
    $region5: #{tpu_custom_call.1} parent=1 // loop_body
      %s21 = ssub.s32 %s16, 1
      %s22 = ssub.s32 %s16, 2
      %s23 = sadd.s32 %s16, 1
      %s24 = ssub.s32 %s16, %s23
      %p25 = scmp.eq.s32.totalorder %s24, 0
      %s27 = sadd.s32 %s26, 1
      %s28 = scalar_select %p25, %s26, %s27
      %p31 = pneg %p25
      %p32 = scmp.eq.s32.totalorder %s16, 1
      %p33 = por %p31, %p32
      %p34 = scmp.ne.s32.totalorder %s26, %s29
      %p35 = scmp.eq.s32.totalorder %s16, 0
      %p36 = por %p34, %p35
      %p37 = scmp.ne.s32.totalorder %s26, %s29
      %p38 = scmp.eq.s32.totalorder %s21, 1
      %p39 = por %p37, %p38
      %p40 = scmp.ne.s32.totalorder %s29, %s30
      %p41 = scmp.eq.s32.totalorder %s21, 0
      %p42 = por %p40, %p41
      %p43 = scmp.ne.s32.totalorder %s29, %s30
      %p44 = scmp.eq.s32.totalorder %s22, 1
      %p45 = por %p43, %p44
      %p47 = scmp.ne.s32.totalorder %s30, %s46
      %p48 = scmp.eq.s32.totalorder %s22, 0
      %p49 = por %p47, %p48
      %s51 = sadd.s32 %s50, 1
      %p54 = scmp.eq.s32.totalorder %s16, 1
      %p55 = scmp.ne.s32.totalorder %s50, %s52
      %p56 = scmp.eq.s32.totalorder %s16, 0
      %p57 = por %p55, %p56
      %p58 = scmp.ne.s32.totalorder %s50, %s52
      %p59 = scmp.eq.s32.totalorder %s21, 1
      %p60 = por %p58, %p59
      %p61 = scmp.ne.s32.totalorder %s52, %s53
      %p62 = scmp.eq.s32.totalorder %s21, 0
      %p63 = por %p61, %p62
      %p64 = scmp.ne.s32.totalorder %s52, %s53
      %p65 = scmp.eq.s32.totalorder %s22, 1
      %p66 = por %p64, %p65
      %p68 = scmp.ne.s32.totalorder %s53, %s67
      %p69 = scmp.eq.s32.totalorder %s22, 0
      %p70 = por %p68, %p69
      %s72 = sadd.s32 %s71, 1
      %p75 = scmp.eq.s32.totalorder %s16, 1
      %p76 = scmp.ne.s32.totalorder %s71, %s73
      %p77 = scmp.eq.s32.totalorder %s16, 0
      %p78 = por %p76, %p77
      %p79 = scmp.ne.s32.totalorder %s71, %s73
      %p80 = scmp.eq.s32.totalorder %s21, 1
      %p81 = por %p79, %p80
      %p82 = scmp.ne.s32.totalorder %s73, %s74
      %p83 = scmp.eq.s32.totalorder %s21, 0
      %p84 = por %p82, %p83
      %p85 = scmp.ne.s32.totalorder %s73, %s74
      %p86 = scmp.eq.s32.totalorder %s22, 1
      %p87 = por %p85, %p86
      %p89 = scmp.ne.s32.totalorder %s74, %s88
      %p90 = scmp.eq.s32.totalorder %s22, 0
      %p91 = por %p89, %p90
      %s92 = ssub.s32 %s16, %s23
      %p93 = scmp.eq.s32.totalorder %s92, 0
      %s95 = sadd.s32 %s94, 1
      %s96 = scalar_select %p93, %s94, %s95
      %p99 = pneg %p93
      %p100 = scmp.eq.s32.totalorder %s16, 1
      %p101 = por %p99, %p100
      %p102 = scmp.ne.s32.totalorder %s94, %s97
      %p103 = scmp.eq.s32.totalorder %s16, 0
      %p104 = por %p102, %p103
      %p105 = scmp.ne.s32.totalorder %s94, %s97
      %p106 = scmp.eq.s32.totalorder %s21, 1
      %p107 = por %p105, %p106
      %p108 = scmp.ne.s32.totalorder %s97, %s98
      %p109 = scmp.eq.s32.totalorder %s21, 0
      %p110 = por %p108, %p109
      %p111 = scmp.ne.s32.totalorder %s97, %s98
      %p112 = scmp.eq.s32.totalorder %s22, 1
      %p113 = por %p111, %p112
      %p115 = scmp.ne.s32.totalorder %s98, %s114
      %p116 = scmp.eq.s32.totalorder %s22, 0
      %p117 = por %p115, %p116
      %p118 = scmp.le.s32.totalorder 1, %s16
      %p119 = scmp.lt.s32.totalorder %s16, 3
      %p120 = pnand %p118, %p119
      %p121 = pneg %p120
      // Predicated region
      $region9: #{tpu_custom_call.1} parent=5 // pred_check
        _
      $region10: #{tpu_custom_call.1} parent=5 // pred_check_branch
        %123 = sbr.rel (%p120) target = $region12
      $region11: #{tpu_custom_call.1} parent=5 // pred_region
        %s124 = ssub.s32 %s16, 1
        // Predicated region
        $region13: #{tpu_custom_call.1} parent=11 // pred_check
          %p125 = pneg %p63
        $region14: #{tpu_custom_call.1} parent=11 // pred_check_branch
          %127 = sbr.rel (%p125) target = $region16
        $region15: #{tpu_custom_call.1} parent=11 // pred_region
          %s129 = ssub.s32 320, 320
          %130 = vsyncadd [#allocation7], %s129
          %s132 = sshll.u32 [#allocation6], 4
          %s133 = int_to_ptr.vmem [resolvable:$true] %s132
          %135 = dma.hbm_to_vmem [thread:$0]  %s1, 320, %s133, [#allocation7]
        $region16: #{tpu_custom_call.1} parent=11 // pred_fallthru
          _
        // Predicated region
        $region17: #{tpu_custom_call.1} parent=11 // pred_check
          %p136 = pneg %p84
        $region18: #{tpu_custom_call.1} parent=11 // pred_check_branch
          %138 = sbr.rel (%p136) target = $region20
        $region19: #{tpu_custom_call.1} parent=11 // pred_region
          %s140 = ssub.s32 64, 64
          %141 = vsyncadd [#allocation7], %s140
          %s143 = sshll.u32 [#allocation8], 4
          %s144 = int_to_ptr.vmem [resolvable:$true] %s143
          %146 = dma.hbm_to_vmem [thread:$0]  %s2, 64, %s144, [#allocation7]
        $region20: #{tpu_custom_call.1} parent=11 // pred_fallthru
          _
      $region12: #{tpu_custom_call.1} parent=5 // pred_fallthru
        _
      %p147 = scmp.lt.s32.totalorder %s16, 2
      // Predicated region
      $region21: #{tpu_custom_call.1} parent=5 // pred_check
        %p148 = pneg %p147
      $region22: #{tpu_custom_call.1} parent=5 // pred_check_branch
        %150 = sbr.rel (%p148) target = $region24
      $region23: #{tpu_custom_call.1} parent=5 // pred_region
        // Predicated region
        $region25: #{tpu_custom_call.1} parent=23 // pred_check
          %p151 = pneg %p36
        $region26: #{tpu_custom_call.1} parent=23 // pred_check_branch
          %153 = sbr.rel (%p151) target = $region28
        $region27: #{tpu_custom_call.1} parent=23 // pred_region
          %s154 = sand.u32 %s26, 1
          %s155 = scalar_lea.sflag [#allocation4], %s154
          %s156 = sand.u32 %s26, 1
          %s157 = smul.addr %s156, 8
          %s158 = scalar_lea.vmem [#allocation3], %s157
          %s160 = ssub.s32 128, 128
          %161 = vsyncadd %s155, %s160
          %s162 = smul.addr %s16, 2
          %s163 = smul.addr %s162, 64
          %s164 = scalar_lea.hbm %s0, %s163
          %s166 = sshll.u32 %s158, 4
          %s167 = int_to_ptr.vmem [resolvable:$true] %s166
          %169 = dma.hbm_to_vmem [thread:$0]  %s164, 128, %s167, %s155
        $region28: #{tpu_custom_call.1} parent=23 // pred_fallthru
          _
      $region24: #{tpu_custom_call.1} parent=5 // pred_fallthru
        _
      %p170 = scmp.le.s32.totalorder 1, %s16
      %p171 = scmp.lt.s32.totalorder %s16, 3
      %p172 = pnand %p170, %p171
      %p173 = pneg %p172
      // Predicated region
      $region29: #{tpu_custom_call.1} parent=5 // pred_check
        _
      $region30: #{tpu_custom_call.1} parent=5 // pred_check_branch
        %175 = sbr.rel (%p172) target = $region32
      $region31: #{tpu_custom_call.1} parent=5 // pred_region
        %s176 = ssub.s32 %s16, 1
        %s177 = sand.u32 %s29, 1
        %s178 = scalar_lea.sflag [#allocation4], %s177
        %s179 = sand.u32 %s29, 1
        %s180 = smul.addr %s179, 8
        %s181 = scalar_lea.vmem [#allocation3], %s180
        // Predicated region
        $region33: #{tpu_custom_call.1} parent=31 // pred_check
          %p182 = pneg %p42
        $region34: #{tpu_custom_call.1} parent=31 // pred_check_branch
          %184 = sbr.rel (%p182) target = $region36
        $region35: #{tpu_custom_call.1} parent=31 // pred_region
          %185 = dma.done %s178, 128
        $region36: #{tpu_custom_call.1} parent=31 // pred_fallthru
          _
        // Predicated region
        $region37: #{tpu_custom_call.1} parent=31 // pred_check
          %p186 = pneg %p63
        $region38: #{tpu_custom_call.1} parent=31 // pred_check_branch
          %188 = sbr.rel (%p186) target = $region40
        $region39: #{tpu_custom_call.1} parent=31 // pred_region
          %189 = dma.done [#allocation7], 320
        $region40: #{tpu_custom_call.1} parent=31 // pred_fallthru
          _
        // Predicated region
        $region41: #{tpu_custom_call.1} parent=31 // pred_check
          %p190 = pneg %p84
        $region42: #{tpu_custom_call.1} parent=31 // pred_check_branch
          %192 = sbr.rel (%p190) target = $region44
        $region43: #{tpu_custom_call.1} parent=31 // pred_region
          %193 = dma.done [#allocation7], 64
        $region44: #{tpu_custom_call.1} parent=31 // pred_fallthru
          _
        %s194 = sand.u32 %s29, 1
        %s195 = scalar_lea.sflag [#allocation4], %s194
        %s196 = sand.u32 %s29, 1
        %s197 = smul.addr %s196, 8
        %s198 = scalar_lea.vmem [#allocation3], %s197
        %p199 = pneg %p42
        %p200 = pneg %p39
        %p201 = pneg %p63
        %p202 = pneg %p60
        %p203 = pneg %p84
        %p204 = pneg %p81
        %p205 = pneg %p110
        %p206 = pneg %p107
        %s207 = sand.u32 %s97, 1
        %s208 = scalar_lea.sflag [#allocation5], %s207
        %s209 = sand.u32 %s97, 1
        %s210 = smul.addr %s209, 8
        %s211 = scalar_lea.vmem [#allocation9], %s210
        %212 = vst [vmem:[#allocation2] sm:$0xff] 0.0
        %213 = vst [vmem:[#allocation2 + $0x8] sm:$0xff] 0.0
        %214 = vst [vmem:[#allocation2 + $0x10] sm:$0xff] 0.0
        %215 = vst [vmem:[#allocation2 + $0x18] sm:$0xff] 0.0
        %216 = vst [vmem:[#allocation2 + $0x20] sm:$0xff] 0.0
        %217 = vst [vmem:[#allocation2 + $0x28] sm:$0xff] 0.0
        %218 = vst [vmem:[#allocation2 + $0x30] sm:$0xff] 0.0
        %219 = vst [vmem:[#allocation2 + $0x38] sm:$0xff] 0.0
        %220 = vst [vmem:[#allocation2 + $0x40] sm:$0xf] 0.0
        %221 = vst [vmem:[#allocation2 + $0x48] sm:$0xf] 0.0
        %222 = vst [vmem:[#allocation2 + $0x50] sm:$0xf] 0.0
        %223 = vst [vmem:[#allocation2 + $0x58] sm:$0xf] 0.0
        %v224 = vld [vmem:[%s181] sm:$0xff]
        %v226 = vcombine.high %v224, %v224
        %228 = vst [vmem:[#allocation2 + $0x8] sm:$0xf] %v224
        %229 = vst [vmem:[#allocation2 + $0x10] sm:$0xf] %v226
        %v230 = vld [vmem:[#allocation6] sm:$0xff]
        %v231 = vld [vmem:[#allocation6 + $0x8] sm:$0xff]
        %v232 = vld [vmem:[#allocation6 + $0x10] sm:$0xf]
        %v233 = vlaneseq
        %v234 = vand.u32 %v233, 127
        %v235 = vadd.s32 %v234, 128
        %vm236 = vcmp.lt.s32.totalorder %v234, 0
        %v237 = vsub.s32 0, %v234
        %v238 = vsel %vm236, %v237, %v234
        %v239 = vshrl.u32 %v238, 4
        %v240 = vand.u32 %v238, 15
        %v241 = vsub.s32 0, %v240
        %v242 = vsel %vm236, %v241, %v240
        %vm243 = vcmp.lt.s32.totalorder %v235, 0
        %v244 = vsub.s32 0, %v235
        %v245 = vsel %vm243, %v244, %v235
        %v246 = vshrl.u32 %v245, 4
        %v247 = vand.u32 %v245, 15
        %v248 = vsub.s32 0, %v247
        %v249 = vsel %vm243, %v248, %v247
        %vm250 = vcmp.ne.s32.totalorder %v242, 0
        %vm251 = vcmp.ne.s32.totalorder %v249, 0
        %vm252 = vcmp.lt.s32.totalorder %v242, 0
        %vm253 = vcmp.lt.s32.totalorder %v249, 0
        %vm254 = vmand %vm252, %vm250
        %vm255 = vmand %vm253, %vm251
        %v256 = vadd.s32 %v242, 16
        %v257 = vadd.s32 %v249, 16
        %v258 = vsel %vm254, %v256, %v242
        %v259 = vsel %vm255, %v257, %v249
        %vm260 = vcmp.gt.s32.totalorder %v258, 0
        %vm261 = vcmp.gt.s32.totalorder %v259, 0
        %vm262 = vcmp.lt.s32.totalorder %v258, 15
        %vm263 = vcmp.lt.s32.totalorder %v259, 15
        %v264 = vld [vmem:[#allocation2] sm:$0xf]
        %v265 = vld [vmem:[#allocation2 + $0x8] sm:$0xf]
        %v266 = vld [vmem:[#allocation2 + $0x10] sm:$0xf]
        %270 = vrot.lane.b32.xlu0 %v264, 17
        %v271 = vpop.permute.xlu0 %270
        %272 = vrot.lane.b32.xlu0 %v265, 17
        %v273 = vpop.permute.xlu0 %272
        %274 = vrot.lane.b32.xlu0 %v266, 17
        %v275 = vpop.permute.xlu0 %274
        %vm276 = vcmask 138240
        %v277 = vsel %vm276, %v271, %v273
        %v278 = vsel %vm276, %v273, %v275
        %vm279 = vcmask 31744
        %v281 = vsel %vm279, %v230, 0
        %vm283 = vcmask 1043456
        %v284 = vsel %vm283, %v277, 0
        %v286 = vsel %vm283, %v278, 0
        %288 = vmatprep.subr.mxu0 0.0
        %289 = vmatpush1.msra.mxu0 0.0
        %290 = vmatprep.subr.mxu0 0.0
        %291 = vmatpush1.msra.mxu0 0.0
        %292 = vmatprep.subr.mxu0 0.0
        %293 = vmatpush1.msra.mxu0 0.0
        %294 = vmatprep.subr.mxu0 0.0
        %295 = vmatpush1.msra.mxu0 0.0
        %296 = vmatprep.subr.mxu0 0.0
        %297 = vmatpush1.msra.mxu0 0.0
        %298 = vmatprep.subr.mxu0 0.0
        %299 = vmatpush1.msra.mxu0 0.0
        %300 = vmatprep.subr.mxu0 0.0
        %301 = vmatpush1.msra.mxu0 0.0
        %302 = vmatprep.subr.mxu0 0.0
        %303 = vmatpush1.msra.mxu0 0.0
        %304 = vmatprep.subr.mxu0 0.0
        %305 = vmatpush1.msra.mxu0 0.0
        %306 = vmatprep.subr.mxu0 0.0
        %307 = vmatpush1.msra.mxu0 0.0
        %308 = vmatprep.subr.mxu0 0.0
        %309 = vmatpush1.msra.mxu0 0.0
        %310 = vmatprep.subr.mxu0 0.0
        %311 = vmatpush1.msra.mxu0 0.0
        %312 = vmatprep.subr.mxu0 0.0
        %313 = vmatpush1.msra.mxu0 0.0
        %314 = vmatprep.subr.mxu0 0.0
        %315 = vmatpush1.msra.mxu0 0.0
        %316 = vmatprep.subr.mxu0 0.0
        %317 = vmatpush1.msra.mxu0 0.0
        %318 = vmatprep.subr.mxu0 %v286
        %319 = vmatpush1.msra.mxu0 %v284
        %320 = vmatprep.subr.mxu0 0.0
        %321 = vmatpush2.msra.mxu0 0.0
        %322 = vmatprep.subr.mxu0 0.0
        %323 = vmatpush2.msra.mxu0 0.0
        %324 = vmatprep.subr.mxu0 0.0
        %325 = vmatpush2.msra.mxu0 0.0
        %326 = vmatprep.subr.mxu0 0.0
        %327 = vmatpush2.msra.mxu0 0.0
        %328 = vmatprep.subr.mxu0 0.0
        %329 = vmatpush2.msra.mxu0 0.0
        %330 = vmatprep.subr.mxu0 0.0
        %331 = vmatpush2.msra.mxu0 0.0
        %332 = vmatprep.subr.mxu0 0.0
        %333 = vmatpush2.msra.mxu0 0.0
        %334 = vmatprep.subr.mxu0 0.0
        %335 = vmatpush2.msra.mxu0 0.0
        %336 = vmatprep.subr.mxu0 0.0
        %337 = vmatpush2.msra.mxu0 0.0
        %338 = vmatprep.subr.mxu0 0.0
        %339 = vmatpush2.msra.mxu0 0.0
        %340 = vmatprep.subr.mxu0 0.0
        %341 = vmatpush2.msra.mxu0 0.0
        %342 = vmatprep.subr.mxu0 0.0
        %343 = vmatpush2.msra.mxu0 0.0
        %344 = vmatprep.subr.mxu0 0.0
        %345 = vmatpush2.msra.mxu0 0.0
        %346 = vmatprep.subr.mxu0 0.0
        %347 = vmatpush2.msra.mxu0 0.0
        %348 = vmatprep.subr.mxu0 0.0
        %349 = vmatpush2.msra.mxu0 0.0
        %350 = vmatprep.subr.mxu0 0.0
        %351 = vmatpush2.msra.mxu0 0.0
        %352 = vmatprep.mubr.f32.mxu0 0.0
        %353 = vmatmul.mubr.f32.gmra.mxu0 %v281
        %v354 = vpop.f32.mrf.mxu0
        %v355 = vadd.f32 0.0, %v354
        %v356 = vpop.f32.mrf.mxu0
        %v357 = vadd.f32 0.0, %v356
        %358 = vdwg.mxu0
        %v359 = vsel %vm260, 1, 0
        %v360 = vsel %vm261, 1, 0
        %vm361 = vcmp.eq.s32.totalorder %v359, 1
        %vm362 = vcmp.eq.s32.totalorder %v360, 1
        %v363 = vsel %vm361, %v355, 0.0
        %v364 = vsel %vm362, %v357, 0.0
        %v365 = vadd.f32 %v363, 0.0
        %v366 = vadd.f32 %v364, 0.0
        %367 = vrot.lane.b32.xlu0 %v230, 124
        %v368 = vpop.permute.xlu0 %367
        %369 = vrot.lane.b32.xlu0 %v264, 16
        %v370 = vpop.permute.xlu0 %369
        %371 = vrot.lane.b32.xlu0 %v265, 16
        %v372 = vpop.permute.xlu0 %371
        %373 = vrot.lane.b32.xlu0 %v266, 16
        %v374 = vpop.permute.xlu0 %373
        %vm375 = vcmask 130048
        %v376 = vsel %vm375, %v370, %v372
        %v377 = vsel %vm375, %v372, %v374
        %v378 = vsel %vm279, %v368, 0
        %v380 = vsel %vm283, %v376, 0
        %v382 = vsel %vm283, %v377, 0
        %384 = vmatprep.subr.mxu0 0.0
        %385 = vmatpush1.msra.mxu0 0.0
        %386 = vmatprep.subr.mxu0 0.0
        %387 = vmatpush1.msra.mxu0 0.0
        %388 = vmatprep.subr.mxu0 0.0
        %389 = vmatpush1.msra.mxu0 0.0
        %390 = vmatprep.subr.mxu0 0.0
        %391 = vmatpush1.msra.mxu0 0.0
        %392 = vmatprep.subr.mxu0 0.0
        %393 = vmatpush1.msra.mxu0 0.0
        %394 = vmatprep.subr.mxu0 0.0
        %395 = vmatpush1.msra.mxu0 0.0
        %396 = vmatprep.subr.mxu0 0.0
        %397 = vmatpush1.msra.mxu0 0.0
        %398 = vmatprep.subr.mxu0 0.0
        %399 = vmatpush1.msra.mxu0 0.0
        %400 = vmatprep.subr.mxu0 0.0
        %401 = vmatpush1.msra.mxu0 0.0
        %402 = vmatprep.subr.mxu0 0.0
        %403 = vmatpush1.msra.mxu0 0.0
        %404 = vmatprep.subr.mxu0 0.0
        %405 = vmatpush1.msra.mxu0 0.0
        %406 = vmatprep.subr.mxu0 0.0
        %407 = vmatpush1.msra.mxu0 0.0
        %408 = vmatprep.subr.mxu0 0.0
        %409 = vmatpush1.msra.mxu0 0.0
        %410 = vmatprep.subr.mxu0 0.0
        %411 = vmatpush1.msra.mxu0 0.0
        %412 = vmatprep.subr.mxu0 0.0
        %413 = vmatpush1.msra.mxu0 0.0
        %414 = vmatprep.subr.mxu0 %v382
        %415 = vmatpush1.msra.mxu0 %v380
        %416 = vmatprep.subr.mxu0 0.0
        %417 = vmatpush2.msra.mxu0 0.0
        %418 = vmatprep.subr.mxu0 0.0
        %419 = vmatpush2.msra.mxu0 0.0
        %420 = vmatprep.subr.mxu0 0.0
        %421 = vmatpush2.msra.mxu0 0.0
        %422 = vmatprep.subr.mxu0 0.0
        %423 = vmatpush2.msra.mxu0 0.0
        %424 = vmatprep.subr.mxu0 0.0
        %425 = vmatpush2.msra.mxu0 0.0
        %426 = vmatprep.subr.mxu0 0.0
        %427 = vmatpush2.msra.mxu0 0.0
        %428 = vmatprep.subr.mxu0 0.0
        %429 = vmatpush2.msra.mxu0 0.0
        %430 = vmatprep.subr.mxu0 0.0
        %431 = vmatpush2.msra.mxu0 0.0
        %432 = vmatprep.subr.mxu0 0.0
        %433 = vmatpush2.msra.mxu0 0.0
        %434 = vmatprep.subr.mxu0 0.0
        %435 = vmatpush2.msra.mxu0 0.0
        %436 = vmatprep.subr.mxu0 0.0
        %437 = vmatpush2.msra.mxu0 0.0
        %438 = vmatprep.subr.mxu0 0.0
        %439 = vmatpush2.msra.mxu0 0.0
        %440 = vmatprep.subr.mxu0 0.0
        %441 = vmatpush2.msra.mxu0 0.0
        %442 = vmatprep.subr.mxu0 0.0
        %443 = vmatpush2.msra.mxu0 0.0
        %444 = vmatprep.subr.mxu0 0.0
        %445 = vmatpush2.msra.mxu0 0.0
        %446 = vmatprep.subr.mxu0 0.0
        %447 = vmatpush2.msra.mxu0 0.0
        %448 = vmatprep.mubr.f32.mxu0 0.0
        %449 = vmatmul.mubr.f32.gmra.mxu0 %v378
        %v450 = vpop.f32.mrf.mxu0
        %v451 = vadd.f32 0.0, %v450
        %v452 = vpop.f32.mrf.mxu0
        %v453 = vadd.f32 0.0, %v452
        %454 = vdwg.mxu0
        %v455 = vadd.f32 %v365, %v451
        %v456 = vadd.f32 %v366, %v453
        %v457 = vld [vmem:[#allocation2] sm:$0xf]
        %v458 = vld [vmem:[#allocation2 + $0x8] sm:$0xf]
        %v459 = vld [vmem:[#allocation2 + $0x10] sm:$0xf]
        %460 = vrot.lane.b32.xlu0 %v230, 120
        %v461 = vpop.permute.xlu0 %460
        %465 = vrot.lane.b32.xlu0 %v457, 15
        %v466 = vpop.permute.xlu0 %465
        %467 = vrot.lane.b32.xlu0 %v458, 15
        %v468 = vpop.permute.xlu0 %467
        %469 = vrot.lane.b32.xlu0 %v459, 15
        %v470 = vpop.permute.xlu0 %469
        %vm471 = vcmask 121856
        %v472 = vsel %vm471, %v466, %v468
        %v473 = vsel %vm471, %v468, %v470
        %v474 = vsel %vm279, %v461, 0
        %v476 = vsel %vm283, %v472, 0
        %v478 = vsel %vm283, %v473, 0
        %480 = vmatprep.subr.mxu0 0.0
        %481 = vmatpush1.msra.mxu0 0.0
        %482 = vmatprep.subr.mxu0 0.0
        %483 = vmatpush1.msra.mxu0 0.0
        %484 = vmatprep.subr.mxu0 0.0
        %485 = vmatpush1.msra.mxu0 0.0
        %486 = vmatprep.subr.mxu0 0.0
        %487 = vmatpush1.msra.mxu0 0.0
        %488 = vmatprep.subr.mxu0 0.0
        %489 = vmatpush1.msra.mxu0 0.0
        %490 = vmatprep.subr.mxu0 0.0
        %491 = vmatpush1.msra.mxu0 0.0
        %492 = vmatprep.subr.mxu0 0.0
        %493 = vmatpush1.msra.mxu0 0.0
        %494 = vmatprep.subr.mxu0 0.0
        %495 = vmatpush1.msra.mxu0 0.0
        %496 = vmatprep.subr.mxu0 0.0
        %497 = vmatpush1.msra.mxu0 0.0
        %498 = vmatprep.subr.mxu0 0.0
        %499 = vmatpush1.msra.mxu0 0.0
        %500 = vmatprep.subr.mxu0 0.0
        %501 = vmatpush1.msra.mxu0 0.0
        %502 = vmatprep.subr.mxu0 0.0
        %503 = vmatpush1.msra.mxu0 0.0
        %504 = vmatprep.subr.mxu0 0.0
        %505 = vmatpush1.msra.mxu0 0.0
        %506 = vmatprep.subr.mxu0 0.0
        %507 = vmatpush1.msra.mxu0 0.0
        %508 = vmatprep.subr.mxu0 0.0
        %509 = vmatpush1.msra.mxu0 0.0
        %510 = vmatprep.subr.mxu0 %v478
        %511 = vmatpush1.msra.mxu0 %v476
        %512 = vmatprep.subr.mxu0 0.0
        %513 = vmatpush2.msra.mxu0 0.0
        %514 = vmatprep.subr.mxu0 0.0
        %515 = vmatpush2.msra.mxu0 0.0
        %516 = vmatprep.subr.mxu0 0.0
        %517 = vmatpush2.msra.mxu0 0.0
        %518 = vmatprep.subr.mxu0 0.0
        %519 = vmatpush2.msra.mxu0 0.0
        %520 = vmatprep.subr.mxu0 0.0
        %521 = vmatpush2.msra.mxu0 0.0
        %522 = vmatprep.subr.mxu0 0.0
        %523 = vmatpush2.msra.mxu0 0.0
        %524 = vmatprep.subr.mxu0 0.0
        %525 = vmatpush2.msra.mxu0 0.0
        %526 = vmatprep.subr.mxu0 0.0
        %527 = vmatpush2.msra.mxu0 0.0
        %528 = vmatprep.subr.mxu0 0.0
        %529 = vmatpush2.msra.mxu0 0.0
        %530 = vmatprep.subr.mxu0 0.0
        %531 = vmatpush2.msra.mxu0 0.0
        %532 = vmatprep.subr.mxu0 0.0
        %533 = vmatpush2.msra.mxu0 0.0
        %534 = vmatprep.subr.mxu0 0.0
        %535 = vmatpush2.msra.mxu0 0.0
        %536 = vmatprep.subr.mxu0 0.0
        %537 = vmatpush2.msra.mxu0 0.0
        %538 = vmatprep.subr.mxu0 0.0
        %539 = vmatpush2.msra.mxu0 0.0
        %540 = vmatprep.subr.mxu0 0.0
        %541 = vmatpush2.msra.mxu0 0.0
        %542 = vmatprep.subr.mxu0 0.0
        %543 = vmatpush2.msra.mxu0 0.0
        %544 = vmatprep.mubr.f32.mxu0 0.0
        %545 = vmatmul.mubr.f32.gmra.mxu0 %v474
        %v546 = vpop.f32.mrf.mxu0
        %v547 = vadd.f32 0.0, %v546
        %v548 = vpop.f32.mrf.mxu0
        %v549 = vadd.f32 0.0, %v548
        %550 = vdwg.mxu0
        %v551 = vsel %vm262, 1, 0
        %v552 = vsel %vm263, 1, 0
        %vm553 = vcmp.eq.s32.totalorder %v551, 1
        %vm554 = vcmp.eq.s32.totalorder %v552, 1
        %v555 = vsel %vm553, %v547, 0.0
        %v556 = vsel %vm554, %v549, 0.0
        %v557 = vadd.f32 %v455, %v555
        %v558 = vadd.f32 %v456, %v556
        %v559 = vld [vmem:[#allocation2] sm:$0xf]
        %v560 = vld [vmem:[#allocation2 + $0x8] sm:$0xf]
        %v561 = vld [vmem:[#allocation2 + $0x10] sm:$0xf]
        %562 = vrot.lane.b32.xlu0 %v230, 116
        %v563 = vpop.permute.xlu0 %562
        %567 = vrot.lane.b32.xlu0 %v559, 1
        %v568 = vpop.permute.xlu0 %567
        %569 = vrot.lane.b32.xlu0 %v560, 1
        %v570 = vpop.permute.xlu0 %569
        %571 = vrot.lane.b32.xlu0 %v561, 1
        %v572 = vpop.permute.xlu0 %571
        %vm573 = vcmask 7168
        %v574 = vsel %vm573, %v568, %v570
        %v575 = vsel %vm573, %v570, %v572
        %v576 = vsel %vm279, %v563, 0
        %v578 = vsel %vm283, %v574, 0
        %v580 = vsel %vm283, %v575, 0
        %582 = vmatprep.subr.mxu0 0.0
        %583 = vmatpush1.msra.mxu0 0.0
        %584 = vmatprep.subr.mxu0 0.0
        %585 = vmatpush1.msra.mxu0 0.0
        %586 = vmatprep.subr.mxu0 0.0
        %587 = vmatpush1.msra.mxu0 0.0
        %588 = vmatprep.subr.mxu0 0.0
        %589 = vmatpush1.msra.mxu0 0.0
        %590 = vmatprep.subr.mxu0 0.0
        %591 = vmatpush1.msra.mxu0 0.0
        %592 = vmatprep.subr.mxu0 0.0
        %593 = vmatpush1.msra.mxu0 0.0
        %594 = vmatprep.subr.mxu0 0.0
        %595 = vmatpush1.msra.mxu0 0.0
        %596 = vmatprep.subr.mxu0 0.0
        %597 = vmatpush1.msra.mxu0 0.0
        %598 = vmatprep.subr.mxu0 0.0
        %599 = vmatpush1.msra.mxu0 0.0
        %600 = vmatprep.subr.mxu0 0.0
        %601 = vmatpush1.msra.mxu0 0.0
        %602 = vmatprep.subr.mxu0 0.0
        %603 = vmatpush1.msra.mxu0 0.0
        %604 = vmatprep.subr.mxu0 0.0
        %605 = vmatpush1.msra.mxu0 0.0
        %606 = vmatprep.subr.mxu0 0.0
        %607 = vmatpush1.msra.mxu0 0.0
        %608 = vmatprep.subr.mxu0 0.0
        %609 = vmatpush1.msra.mxu0 0.0
        %610 = vmatprep.subr.mxu0 0.0
        %611 = vmatpush1.msra.mxu0 0.0
        %612 = vmatprep.subr.mxu0 %v580
        %613 = vmatpush1.msra.mxu0 %v578
        %614 = vmatprep.subr.mxu0 0.0
        %615 = vmatpush2.msra.mxu0 0.0
        %616 = vmatprep.subr.mxu0 0.0
        %617 = vmatpush2.msra.mxu0 0.0
        %618 = vmatprep.subr.mxu0 0.0
        %619 = vmatpush2.msra.mxu0 0.0
        %620 = vmatprep.subr.mxu0 0.0
        %621 = vmatpush2.msra.mxu0 0.0
        %622 = vmatprep.subr.mxu0 0.0
        %623 = vmatpush2.msra.mxu0 0.0
        %624 = vmatprep.subr.mxu0 0.0
        %625 = vmatpush2.msra.mxu0 0.0
        %626 = vmatprep.subr.mxu0 0.0
        %627 = vmatpush2.msra.mxu0 0.0
        %628 = vmatprep.subr.mxu0 0.0
        %629 = vmatpush2.msra.mxu0 0.0
        %630 = vmatprep.subr.mxu0 0.0
        %631 = vmatpush2.msra.mxu0 0.0
        %632 = vmatprep.subr.mxu0 0.0
        %633 = vmatpush2.msra.mxu0 0.0
        %634 = vmatprep.subr.mxu0 0.0
        %635 = vmatpush2.msra.mxu0 0.0
        %636 = vmatprep.subr.mxu0 0.0
        %637 = vmatpush2.msra.mxu0 0.0
        %638 = vmatprep.subr.mxu0 0.0
        %639 = vmatpush2.msra.mxu0 0.0
        %640 = vmatprep.subr.mxu0 0.0
        %641 = vmatpush2.msra.mxu0 0.0
        %642 = vmatprep.subr.mxu0 0.0
        %643 = vmatpush2.msra.mxu0 0.0
        %644 = vmatprep.subr.mxu0 0.0
        %645 = vmatpush2.msra.mxu0 0.0
        %646 = vmatprep.mubr.f32.mxu0 0.0
        %647 = vmatmul.mubr.f32.gmra.mxu0 %v576
        %v648 = vpop.f32.mrf.mxu0
        %v649 = vadd.f32 0.0, %v648
        %v650 = vpop.f32.mrf.mxu0
        %v651 = vadd.f32 0.0, %v650
        %652 = vdwg.mxu0
        %v653 = vsel %vm361, %v649, 0.0
        %v654 = vsel %vm362, %v651, 0.0
        %v655 = vadd.f32 %v557, %v653
        %v656 = vadd.f32 %v558, %v654
        %v657 = vld [vmem:[#allocation2 + $0x8] sm:$0xf]
        %v658 = vld [vmem:[#allocation2 + $0x10] sm:$0xf]
        %659 = vrot.lane.b32.xlu0 %v230, 112
        %v660 = vpop.permute.xlu0 %659
        %v661 = vsel %vm279, %v660, 0
        %v664 = vsel %vm283, %v657, 0
        %v667 = vsel %vm283, %v658, 0
        %669 = vmatprep.subr.mxu0 0.0
        %670 = vmatpush1.msra.mxu0 0.0
        %671 = vmatprep.subr.mxu0 0.0
        %672 = vmatpush1.msra.mxu0 0.0
        %673 = vmatprep.subr.mxu0 0.0
        %674 = vmatpush1.msra.mxu0 0.0
        %675 = vmatprep.subr.mxu0 0.0
        %676 = vmatpush1.msra.mxu0 0.0
        %677 = vmatprep.subr.mxu0 0.0
        %678 = vmatpush1.msra.mxu0 0.0
        %679 = vmatprep.subr.mxu0 0.0
        %680 = vmatpush1.msra.mxu0 0.0
        %681 = vmatprep.subr.mxu0 0.0
        %682 = vmatpush1.msra.mxu0 0.0
        %683 = vmatprep.subr.mxu0 0.0
        %684 = vmatpush1.msra.mxu0 0.0
        %685 = vmatprep.subr.mxu0 0.0
        %686 = vmatpush1.msra.mxu0 0.0
        %687 = vmatprep.subr.mxu0 0.0
        %688 = vmatpush1.msra.mxu0 0.0
        %689 = vmatprep.subr.mxu0 0.0
        %690 = vmatpush1.msra.mxu0 0.0
        %691 = vmatprep.subr.mxu0 0.0
        %692 = vmatpush1.msra.mxu0 0.0
        %693 = vmatprep.subr.mxu0 0.0
        %694 = vmatpush1.msra.mxu0 0.0
        %695 = vmatprep.subr.mxu0 0.0
        %696 = vmatpush1.msra.mxu0 0.0
        %697 = vmatprep.subr.mxu0 0.0
        %698 = vmatpush1.msra.mxu0 0.0
        %699 = vmatprep.subr.mxu0 %v667
        %700 = vmatpush1.msra.mxu0 %v664
        %701 = vmatprep.subr.mxu0 0.0
        %702 = vmatpush2.msra.mxu0 0.0
        %703 = vmatprep.subr.mxu0 0.0
        %704 = vmatpush2.msra.mxu0 0.0
        %705 = vmatprep.subr.mxu0 0.0
        %706 = vmatpush2.msra.mxu0 0.0
        %707 = vmatprep.subr.mxu0 0.0
        %708 = vmatpush2.msra.mxu0 0.0
        %709 = vmatprep.subr.mxu0 0.0
        %710 = vmatpush2.msra.mxu0 0.0
        %711 = vmatprep.subr.mxu0 0.0
        %712 = vmatpush2.msra.mxu0 0.0
        %713 = vmatprep.subr.mxu0 0.0
        %714 = vmatpush2.msra.mxu0 0.0
        %715 = vmatprep.subr.mxu0 0.0
        %716 = vmatpush2.msra.mxu0 0.0
        %717 = vmatprep.subr.mxu0 0.0
        %718 = vmatpush2.msra.mxu0 0.0
        %719 = vmatprep.subr.mxu0 0.0
        %720 = vmatpush2.msra.mxu0 0.0
        %721 = vmatprep.subr.mxu0 0.0
        %722 = vmatpush2.msra.mxu0 0.0
        %723 = vmatprep.subr.mxu0 0.0
        %724 = vmatpush2.msra.mxu0 0.0
        %725 = vmatprep.subr.mxu0 0.0
        %726 = vmatpush2.msra.mxu0 0.0
        %727 = vmatprep.subr.mxu0 0.0
        %728 = vmatpush2.msra.mxu0 0.0
        %729 = vmatprep.subr.mxu0 0.0
        %730 = vmatpush2.msra.mxu0 0.0
        %731 = vmatprep.subr.mxu0 0.0
        %732 = vmatpush2.msra.mxu0 0.0
        %733 = vmatprep.mubr.f32.mxu0 0.0
        %734 = vmatmul.mubr.f32.gmra.mxu0 %v661
        %v735 = vpop.f32.mrf.mxu0
        %v736 = vadd.f32 0.0, %v735
        %v737 = vpop.f32.mrf.mxu0
        %v738 = vadd.f32 0.0, %v737
        %739 = vdwg.mxu0
        %v740 = vadd.f32 %v655, %v736
        %v741 = vadd.f32 %v656, %v738
        %v742 = vld [vmem:[#allocation2 + $0x8] sm:$0xf]
        %v743 = vld [vmem:[#allocation2 + $0x10] sm:$0xf]
        %v744 = vld [vmem:[#allocation2 + $0x18] sm:$0xf]
        %745 = vrot.lane.b32.xlu0 %v230, 108
        %v746 = vpop.permute.xlu0 %745
        %750 = vrot.lane.b32.xlu0 %v742, 127
        %v751 = vpop.permute.xlu0 %750
        %752 = vrot.lane.b32.xlu0 %v743, 127
        %v753 = vpop.permute.xlu0 %752
        %754 = vrot.lane.b32.xlu0 %v744, 127
        %v755 = vpop.permute.xlu0 %754
        %vm756 = vcmask 1039360
        %v757 = vsel %vm756, %v751, %v753
        %v758 = vsel %vm756, %v753, %v755
        %v759 = vsel %vm279, %v746, 0
        %v761 = vsel %vm283, %v757, 0
        %v763 = vsel %vm283, %v758, 0
        %765 = vmatprep.subr.mxu0 0.0
        %766 = vmatpush1.msra.mxu0 0.0
        %767 = vmatprep.subr.mxu0 0.0
        %768 = vmatpush1.msra.mxu0 0.0
        %769 = vmatprep.subr.mxu0 0.0
        %770 = vmatpush1.msra.mxu0 0.0
        %771 = vmatprep.subr.mxu0 0.0
        %772 = vmatpush1.msra.mxu0 0.0
        %773 = vmatprep.subr.mxu0 0.0
        %774 = vmatpush1.msra.mxu0 0.0
        %775 = vmatprep.subr.mxu0 0.0
        %776 = vmatpush1.msra.mxu0 0.0
        %777 = vmatprep.subr.mxu0 0.0
        %778 = vmatpush1.msra.mxu0 0.0
        %779 = vmatprep.subr.mxu0 0.0
        %780 = vmatpush1.msra.mxu0 0.0
        %781 = vmatprep.subr.mxu0 0.0
        %782 = vmatpush1.msra.mxu0 0.0
        %783 = vmatprep.subr.mxu0 0.0
        %784 = vmatpush1.msra.mxu0 0.0
        %785 = vmatprep.subr.mxu0 0.0
        %786 = vmatpush1.msra.mxu0 0.0
        %787 = vmatprep.subr.mxu0 0.0
        %788 = vmatpush1.msra.mxu0 0.0
        %789 = vmatprep.subr.mxu0 0.0
        %790 = vmatpush1.msra.mxu0 0.0
        %791 = vmatprep.subr.mxu0 0.0
        %792 = vmatpush1.msra.mxu0 0.0
        %793 = vmatprep.subr.mxu0 0.0
        %794 = vmatpush1.msra.mxu0 0.0
        %795 = vmatprep.subr.mxu0 %v763
        %796 = vmatpush1.msra.mxu0 %v761
        %797 = vmatprep.subr.mxu0 0.0
        %798 = vmatpush2.msra.mxu0 0.0
        %799 = vmatprep.subr.mxu0 0.0
        %800 = vmatpush2.msra.mxu0 0.0
        %801 = vmatprep.subr.mxu0 0.0
        %802 = vmatpush2.msra.mxu0 0.0
        %803 = vmatprep.subr.mxu0 0.0
        %804 = vmatpush2.msra.mxu0 0.0
        %805 = vmatprep.subr.mxu0 0.0
        %806 = vmatpush2.msra.mxu0 0.0
        %807 = vmatprep.subr.mxu0 0.0
        %808 = vmatpush2.msra.mxu0 0.0
        %809 = vmatprep.subr.mxu0 0.0
        %810 = vmatpush2.msra.mxu0 0.0
        %811 = vmatprep.subr.mxu0 0.0
        %812 = vmatpush2.msra.mxu0 0.0
        %813 = vmatprep.subr.mxu0 0.0
        %814 = vmatpush2.msra.mxu0 0.0
        %815 = vmatprep.subr.mxu0 0.0
        %816 = vmatpush2.msra.mxu0 0.0
        %817 = vmatprep.subr.mxu0 0.0
        %818 = vmatpush2.msra.mxu0 0.0
        %819 = vmatprep.subr.mxu0 0.0
        %820 = vmatpush2.msra.mxu0 0.0
        %821 = vmatprep.subr.mxu0 0.0
        %822 = vmatpush2.msra.mxu0 0.0
        %823 = vmatprep.subr.mxu0 0.0
        %824 = vmatpush2.msra.mxu0 0.0
        %825 = vmatprep.subr.mxu0 0.0
        %826 = vmatpush2.msra.mxu0 0.0
        %827 = vmatprep.subr.mxu0 0.0
        %828 = vmatpush2.msra.mxu0 0.0
        %829 = vmatprep.mubr.f32.mxu0 0.0
        %830 = vmatmul.mubr.f32.gmra.mxu0 %v759
        %v831 = vpop.f32.mrf.mxu0
        %v832 = vadd.f32 0.0, %v831
        %v833 = vpop.f32.mrf.mxu0
        %v834 = vadd.f32 0.0, %v833
        %835 = vdwg.mxu0
        %v836 = vsel %vm553, %v832, 0.0
        %v837 = vsel %vm554, %v834, 0.0
        %v838 = vadd.f32 %v740, %v836
        %v839 = vadd.f32 %v741, %v837
        %v840 = vld [vmem:[#allocation2 + $0x8] sm:$0xf]
        %v841 = vld [vmem:[#allocation2 + $0x10] sm:$0xf]
        %v842 = vld [vmem:[#allocation2 + $0x18] sm:$0xf]
        %843 = vrot.lane.b32.xlu0 %v230, 104
        %v844 = vpop.permute.xlu0 %843
        %848 = vrot.lane.b32.xlu0 %v840, 113
        %v849 = vpop.permute.xlu0 %848
        %850 = vrot.lane.b32.xlu0 %v841, 113
        %v851 = vpop.permute.xlu0 %850
        %852 = vrot.lane.b32.xlu0 %v842, 113
        %v853 = vpop.permute.xlu0 %852
        %vm854 = vcmask 924672
        %v855 = vsel %vm854, %v849, %v851
        %v856 = vsel %vm854, %v851, %v853
        %v857 = vsel %vm279, %v844, 0
        %v859 = vsel %vm283, %v855, 0
        %v861 = vsel %vm283, %v856, 0
        %863 = vmatprep.subr.mxu0 0.0
        %864 = vmatpush1.msra.mxu0 0.0
        %865 = vmatprep.subr.mxu0 0.0
        %866 = vmatpush1.msra.mxu0 0.0
        %867 = vmatprep.subr.mxu0 0.0
        %868 = vmatpush1.msra.mxu0 0.0
        %869 = vmatprep.subr.mxu0 0.0
        %870 = vmatpush1.msra.mxu0 0.0
        %871 = vmatprep.subr.mxu0 0.0
        %872 = vmatpush1.msra.mxu0 0.0
        %873 = vmatprep.subr.mxu0 0.0
        %874 = vmatpush1.msra.mxu0 0.0
        %875 = vmatprep.subr.mxu0 0.0
        %876 = vmatpush1.msra.mxu0 0.0
        %877 = vmatprep.subr.mxu0 0.0
        %878 = vmatpush1.msra.mxu0 0.0
        %879 = vmatprep.subr.mxu0 0.0
        %880 = vmatpush1.msra.mxu0 0.0
        %881 = vmatprep.subr.mxu0 0.0
        %882 = vmatpush1.msra.mxu0 0.0
        %883 = vmatprep.subr.mxu0 0.0
        %884 = vmatpush1.msra.mxu0 0.0
        %885 = vmatprep.subr.mxu0 0.0
        %886 = vmatpush1.msra.mxu0 0.0
        %887 = vmatprep.subr.mxu0 0.0
        %888 = vmatpush1.msra.mxu0 0.0
        %889 = vmatprep.subr.mxu0 0.0
        %890 = vmatpush1.msra.mxu0 0.0
        %891 = vmatprep.subr.mxu0 0.0
        %892 = vmatpush1.msra.mxu0 0.0
        %893 = vmatprep.subr.mxu0 %v861
        %894 = vmatpush1.msra.mxu0 %v859
        %895 = vmatprep.subr.mxu0 0.0
        %896 = vmatpush2.msra.mxu0 0.0
        %897 = vmatprep.subr.mxu0 0.0
        %898 = vmatpush2.msra.mxu0 0.0
        %899 = vmatprep.subr.mxu0 0.0
        %900 = vmatpush2.msra.mxu0 0.0
        %901 = vmatprep.subr.mxu0 0.0
        %902 = vmatpush2.msra.mxu0 0.0
        %903 = vmatprep.subr.mxu0 0.0
        %904 = vmatpush2.msra.mxu0 0.0
        %905 = vmatprep.subr.mxu0 0.0
        %906 = vmatpush2.msra.mxu0 0.0
        %907 = vmatprep.subr.mxu0 0.0
        %908 = vmatpush2.msra.mxu0 0.0
        %909 = vmatprep.subr.mxu0 0.0
        %910 = vmatpush2.msra.mxu0 0.0
        %911 = vmatprep.subr.mxu0 0.0
        %912 = vmatpush2.msra.mxu0 0.0
        %913 = vmatprep.subr.mxu0 0.0
        %914 = vmatpush2.msra.mxu0 0.0
        %915 = vmatprep.subr.mxu0 0.0
        %916 = vmatpush2.msra.mxu0 0.0
        %917 = vmatprep.subr.mxu0 0.0
        %918 = vmatpush2.msra.mxu0 0.0
        %919 = vmatprep.subr.mxu0 0.0
        %920 = vmatpush2.msra.mxu0 0.0
        %921 = vmatprep.subr.mxu0 0.0
        %922 = vmatpush2.msra.mxu0 0.0
        %923 = vmatprep.subr.mxu0 0.0
        %924 = vmatpush2.msra.mxu0 0.0
        %925 = vmatprep.subr.mxu0 0.0
        %926 = vmatpush2.msra.mxu0 0.0
        %927 = vmatprep.mubr.f32.mxu0 0.0
        %928 = vmatmul.mubr.f32.gmra.mxu0 %v857
        %v929 = vpop.f32.mrf.mxu0
        %v930 = vadd.f32 0.0, %v929
        %v931 = vpop.f32.mrf.mxu0
        %v932 = vadd.f32 0.0, %v931
        %933 = vdwg.mxu0
        %v934 = vsel %vm361, %v930, 0.0
        %v935 = vsel %vm362, %v932, 0.0
        %v936 = vadd.f32 %v838, %v934
        %v937 = vadd.f32 %v839, %v935
        %v938 = vld [vmem:[#allocation2 + $0x8] sm:$0xf]
        %v939 = vld [vmem:[#allocation2 + $0x10] sm:$0xf]
        %v940 = vld [vmem:[#allocation2 + $0x18] sm:$0xf]
        %941 = vrot.lane.b32.xlu0 %v230, 100
        %v942 = vpop.permute.xlu0 %941
        %946 = vrot.lane.b32.xlu0 %v938, 112
        %v947 = vpop.permute.xlu0 %946
        %948 = vrot.lane.b32.xlu0 %v939, 112
        %v949 = vpop.permute.xlu0 %948
        %950 = vrot.lane.b32.xlu0 %v940, 112
        %v951 = vpop.permute.xlu0 %950
        %vm952 = vcmask 916480
        %v953 = vsel %vm952, %v947, %v949
        %v954 = vsel %vm952, %v949, %v951
        %v955 = vsel %vm279, %v942, 0
        %v957 = vsel %vm283, %v953, 0
        %v959 = vsel %vm283, %v954, 0
        %961 = vmatprep.subr.mxu0 0.0
        %962 = vmatpush1.msra.mxu0 0.0
        %963 = vmatprep.subr.mxu0 0.0
        %964 = vmatpush1.msra.mxu0 0.0
        %965 = vmatprep.subr.mxu0 0.0
        %966 = vmatpush1.msra.mxu0 0.0
        %967 = vmatprep.subr.mxu0 0.0
        %968 = vmatpush1.msra.mxu0 0.0
        %969 = vmatprep.subr.mxu0 0.0
        %970 = vmatpush1.msra.mxu0 0.0
        %971 = vmatprep.subr.mxu0 0.0
        %972 = vmatpush1.msra.mxu0 0.0
        %973 = vmatprep.subr.mxu0 0.0
        %974 = vmatpush1.msra.mxu0 0.0
        %975 = vmatprep.subr.mxu0 0.0
        %976 = vmatpush1.msra.mxu0 0.0
        %977 = vmatprep.subr.mxu0 0.0
        %978 = vmatpush1.msra.mxu0 0.0
        %979 = vmatprep.subr.mxu0 0.0
        %980 = vmatpush1.msra.mxu0 0.0
        %981 = vmatprep.subr.mxu0 0.0
        %982 = vmatpush1.msra.mxu0 0.0
        %983 = vmatprep.subr.mxu0 0.0
        %984 = vmatpush1.msra.mxu0 0.0
        %985 = vmatprep.subr.mxu0 0.0
        %986 = vmatpush1.msra.mxu0 0.0
        %987 = vmatprep.subr.mxu0 0.0
        %988 = vmatpush1.msra.mxu0 0.0
        %989 = vmatprep.subr.mxu0 0.0
        %990 = vmatpush1.msra.mxu0 0.0
        %991 = vmatprep.subr.mxu0 %v959
        %992 = vmatpush1.msra.mxu0 %v957
        %993 = vmatprep.subr.mxu0 0.0
        %994 = vmatpush2.msra.mxu0 0.0
        %995 = vmatprep.subr.mxu0 0.0
        %996 = vmatpush2.msra.mxu0 0.0
        %997 = vmatprep.subr.mxu0 0.0
        %998 = vmatpush2.msra.mxu0 0.0
        %999 = vmatprep.subr.mxu0 0.0
        %1000 = vmatpush2.msra.mxu0 0.0
        %1001 = vmatprep.subr.mxu0 0.0
        %1002 = vmatpush2.msra.mxu0 0.0
        %1003 = vmatprep.subr.mxu0 0.0
        %1004 = vmatpush2.msra.mxu0 0.0
        %1005 = vmatprep.subr.mxu0 0.0
        %1006 = vmatpush2.msra.mxu0 0.0
        %1007 = vmatprep.subr.mxu0 0.0
        %1008 = vmatpush2.msra.mxu0 0.0
        %1009 = vmatprep.subr.mxu0 0.0
        %1010 = vmatpush2.msra.mxu0 0.0
        %1011 = vmatprep.subr.mxu0 0.0
        %1012 = vmatpush2.msra.mxu0 0.0
        %1013 = vmatprep.subr.mxu0 0.0
        %1014 = vmatpush2.msra.mxu0 0.0
        %1015 = vmatprep.subr.mxu0 0.0
        %1016 = vmatpush2.msra.mxu0 0.0
        %1017 = vmatprep.subr.mxu0 0.0
        %1018 = vmatpush2.msra.mxu0 0.0
        %1019 = vmatprep.subr.mxu0 0.0
        %1020 = vmatpush2.msra.mxu0 0.0
        %1021 = vmatprep.subr.mxu0 0.0
        %1022 = vmatpush2.msra.mxu0 0.0
        %1023 = vmatprep.subr.mxu0 0.0
        %1024 = vmatpush2.msra.mxu0 0.0
        %1025 = vmatprep.mubr.f32.mxu0 0.0
        %1026 = vmatmul.mubr.f32.gmra.mxu0 %v955
        %v1027 = vpop.f32.mrf.mxu0
        %v1028 = vadd.f32 0.0, %v1027
        %v1029 = vpop.f32.mrf.mxu0
        %v1030 = vadd.f32 0.0, %v1029
        %1031 = vdwg.mxu0
        %v1032 = vadd.f32 %v936, %v1028
        %v1033 = vadd.f32 %v937, %v1030
        %v1034 = vld [vmem:[#allocation2 + $0x8] sm:$0xf]
        %v1035 = vld [vmem:[#allocation2 + $0x10] sm:$0xf]
        %v1036 = vld [vmem:[#allocation2 + $0x18] sm:$0xf]
        %1037 = vrot.lane.b32.xlu0 %v230, 96
        %v1038 = vpop.permute.xlu0 %1037
        %1042 = vrot.lane.b32.xlu0 %v1034, 111
        %v1043 = vpop.permute.xlu0 %1042
        %1044 = vrot.lane.b32.xlu0 %v1035, 111
        %v1045 = vpop.permute.xlu0 %1044
        %1046 = vrot.lane.b32.xlu0 %v1036, 111
        %v1047 = vpop.permute.xlu0 %1046
        %vm1048 = vcmask 908288
        %v1049 = vsel %vm1048, %v1043, %v1045
        %v1050 = vsel %vm1048, %v1045, %v1047
        %v1051 = vsel %vm279, %v1038, 0
        %v1053 = vsel %vm283, %v1049, 0
        %v1055 = vsel %vm283, %v1050, 0
        %1057 = vmatprep.subr.mxu0 0.0
        %1058 = vmatpush1.msra.mxu0 0.0
        %1059 = vmatprep.subr.mxu0 0.0
        %1060 = vmatpush1.msra.mxu0 0.0
        %1061 = vmatprep.subr.mxu0 0.0
        %1062 = vmatpush1.msra.mxu0 0.0
        %1063 = vmatprep.subr.mxu0 0.0
        %1064 = vmatpush1.msra.mxu0 0.0
        %1065 = vmatprep.subr.mxu0 0.0
        %1066 = vmatpush1.msra.mxu0 0.0
        %1067 = vmatprep.subr.mxu0 0.0
        %1068 = vmatpush1.msra.mxu0 0.0
        %1069 = vmatprep.subr.mxu0 0.0
        %1070 = vmatpush1.msra.mxu0 0.0
        %1071 = vmatprep.subr.mxu0 0.0
        %1072 = vmatpush1.msra.mxu0 0.0
        %1073 = vmatprep.subr.mxu0 0.0
        %1074 = vmatpush1.msra.mxu0 0.0
        %1075 = vmatprep.subr.mxu0 0.0
        %1076 = vmatpush1.msra.mxu0 0.0
        %1077 = vmatprep.subr.mxu0 0.0
        %1078 = vmatpush1.msra.mxu0 0.0
        %1079 = vmatprep.subr.mxu0 0.0
        %1080 = vmatpush1.msra.mxu0 0.0
        %1081 = vmatprep.subr.mxu0 0.0
        %1082 = vmatpush1.msra.mxu0 0.0
        %1083 = vmatprep.subr.mxu0 0.0
        %1084 = vmatpush1.msra.mxu0 0.0
        %1085 = vmatprep.subr.mxu0 0.0
        %1086 = vmatpush1.msra.mxu0 0.0
        %1087 = vmatprep.subr.mxu0 %v1055
        %1088 = vmatpush1.msra.mxu0 %v1053
        %1089 = vmatprep.subr.mxu0 0.0
        %1090 = vmatpush2.msra.mxu0 0.0
        %1091 = vmatprep.subr.mxu0 0.0
        %1092 = vmatpush2.msra.mxu0 0.0
        %1093 = vmatprep.subr.mxu0 0.0
        %1094 = vmatpush2.msra.mxu0 0.0
        %1095 = vmatprep.subr.mxu0 0.0
        %1096 = vmatpush2.msra.mxu0 0.0
        %1097 = vmatprep.subr.mxu0 0.0
        %1098 = vmatpush2.msra.mxu0 0.0
        %1099 = vmatprep.subr.mxu0 0.0
        %1100 = vmatpush2.msra.mxu0 0.0
        %1101 = vmatprep.subr.mxu0 0.0
        %1102 = vmatpush2.msra.mxu0 0.0
        %1103 = vmatprep.subr.mxu0 0.0
        %1104 = vmatpush2.msra.mxu0 0.0
        %1105 = vmatprep.subr.mxu0 0.0
        %1106 = vmatpush2.msra.mxu0 0.0
        %1107 = vmatprep.subr.mxu0 0.0
        %1108 = vmatpush2.msra.mxu0 0.0
        %1109 = vmatprep.subr.mxu0 0.0
        %1110 = vmatpush2.msra.mxu0 0.0
        %1111 = vmatprep.subr.mxu0 0.0
        %1112 = vmatpush2.msra.mxu0 0.0
        %1113 = vmatprep.subr.mxu0 0.0
        %1114 = vmatpush2.msra.mxu0 0.0
        %1115 = vmatprep.subr.mxu0 0.0
        %1116 = vmatpush2.msra.mxu0 0.0
        %1117 = vmatprep.subr.mxu0 0.0
        %1118 = vmatpush2.msra.mxu0 0.0
        %1119 = vmatprep.subr.mxu0 0.0
        %1120 = vmatpush2.msra.mxu0 0.0
        %1121 = vmatprep.mubr.f32.mxu0 0.0
        %1122 = vmatmul.mubr.f32.gmra.mxu0 %v1051
        %v1123 = vpop.f32.mrf.mxu0
        %v1124 = vadd.f32 0.0, %v1123
        %v1125 = vpop.f32.mrf.mxu0
        %v1126 = vadd.f32 0.0, %v1125
        %1127 = vdwg.mxu0
        %v1128 = vsel %vm553, %v1124, 0.0
        %v1129 = vsel %vm554, %v1126, 0.0
        %v1130 = vadd.f32 %v1032, %v1128
        %v1131 = vadd.f32 %v1033, %v1129
        %v1132 = vld [vmem:[#allocation8] sm:$0xf]
        %1134 = vset.pattern.permute.xlu0 0
        %1135 = vperm.xlu0 %1134, %v1132
        %v1136 = vpop.permute.xlu0 %1135
        %v1138 = vadd.f32 %v1130, %v1136
        %v1139 = vadd.f32 %v1131, %v1136
        %vm1140 = vcmp.ge.f32.partialorder %v1138, 0.0
        %vm1141 = vcmp.ge.f32.partialorder %v1139, 0.0
        %v1142 = vmul.f32 %v1138, 0.01
        %v1143 = vmul.f32 %v1139, 0.01
        %v1144 = vsel %vm1140, %v1138, %v1142
        %v1145 = vsel %vm1141, %v1139, %v1143
        %v1148 = vrot.slane %v1144, 4
        %v1149 = vrot.slane %v1145, 4
        %1152 = vst [vmem:[#allocation2 + $0x8] sm:$0xf0] %v1148
        %1153 = vst [vmem:[#allocation2 + $0x10] sm:$0xf0] %v1149
        %v1154 = vld [vmem:[#allocation2] sm:$0xff]
        %v1155 = vld [vmem:[#allocation2 + $0x8] sm:$0xff]
        %v1156 = vld [vmem:[#allocation2 + $0x10] sm:$0xff]
        %1157 = vrot.lane.b32.xlu0 %v230, 92
        %v1158 = vpop.permute.xlu0 %1157
        %1162 = vrot.lane.b32.xlu0 %v1154, 17
        %v1163 = vpop.permute.xlu0 %1162
        %1164 = vrot.lane.b32.xlu0 %v1155, 17
        %v1165 = vpop.permute.xlu0 %1164
        %1166 = vrot.lane.b32.xlu0 %v1156, 17
        %v1167 = vpop.permute.xlu0 %1166
        %v1168 = vsel %vm276, %v1163, %v1165
        %v1169 = vsel %vm276, %v1165, %v1167
        %vm1172 = vcmask 64512
        %v1173 = vsel %vm1172, %v1158, 0
        %1175 = vmatprep.subr.mxu0 0.0
        %1176 = vmatpush1.msra.mxu0 0.0
        %1177 = vmatprep.subr.mxu0 0.0
        %1178 = vmatpush1.msra.mxu0 0.0
        %1179 = vmatprep.subr.mxu0 0.0
        %1180 = vmatpush1.msra.mxu0 0.0
        %1181 = vmatprep.subr.mxu0 0.0
        %1182 = vmatpush1.msra.mxu0 0.0
        %1183 = vmatprep.subr.mxu0 0.0
        %1184 = vmatpush1.msra.mxu0 0.0
        %1185 = vmatprep.subr.mxu0 0.0
        %1186 = vmatpush1.msra.mxu0 0.0
        %1187 = vmatprep.subr.mxu0 0.0
        %1188 = vmatpush1.msra.mxu0 0.0
        %1189 = vmatprep.subr.mxu0 0.0
        %1190 = vmatpush1.msra.mxu0 0.0
        %1191 = vmatprep.subr.mxu0 0.0
        %1192 = vmatpush1.msra.mxu0 0.0
        %1193 = vmatprep.subr.mxu0 0.0
        %1194 = vmatpush1.msra.mxu0 0.0
        %1195 = vmatprep.subr.mxu0 0.0
        %1196 = vmatpush1.msra.mxu0 0.0
        %1197 = vmatprep.subr.mxu0 0.0
        %1198 = vmatpush1.msra.mxu0 0.0
        %1199 = vmatprep.subr.mxu0 0.0
        %1200 = vmatpush1.msra.mxu0 0.0
        %1201 = vmatprep.subr.mxu0 0.0
        %1202 = vmatpush1.msra.mxu0 0.0
        %1203 = vmatprep.subr.mxu0 0.0
        %1204 = vmatpush1.msra.mxu0 0.0
        %1205 = vmatprep.subr.mxu0 %v1169
        %1206 = vmatpush1.msra.mxu0 %v1168
        %1207 = vmatprep.subr.mxu0 0.0
        %1208 = vmatpush2.msra.mxu0 0.0
        %1209 = vmatprep.subr.mxu0 0.0
        %1210 = vmatpush2.msra.mxu0 0.0
        %1211 = vmatprep.subr.mxu0 0.0
        %1212 = vmatpush2.msra.mxu0 0.0
        %1213 = vmatprep.subr.mxu0 0.0
        %1214 = vmatpush2.msra.mxu0 0.0
        %1215 = vmatprep.subr.mxu0 0.0
        %1216 = vmatpush2.msra.mxu0 0.0
        %1217 = vmatprep.subr.mxu0 0.0
        %1218 = vmatpush2.msra.mxu0 0.0
        %1219 = vmatprep.subr.mxu0 0.0
        %1220 = vmatpush2.msra.mxu0 0.0
        %1221 = vmatprep.subr.mxu0 0.0
        %1222 = vmatpush2.msra.mxu0 0.0
        %1223 = vmatprep.subr.mxu0 0.0
        %1224 = vmatpush2.msra.mxu0 0.0
        %1225 = vmatprep.subr.mxu0 0.0
        %1226 = vmatpush2.msra.mxu0 0.0
        %1227 = vmatprep.subr.mxu0 0.0
        %1228 = vmatpush2.msra.mxu0 0.0
        %1229 = vmatprep.subr.mxu0 0.0
        %1230 = vmatpush2.msra.mxu0 0.0
        %1231 = vmatprep.subr.mxu0 0.0
        %1232 = vmatpush2.msra.mxu0 0.0
        %1233 = vmatprep.subr.mxu0 0.0
        %1234 = vmatpush2.msra.mxu0 0.0
        %1235 = vmatprep.subr.mxu0 0.0
        %1236 = vmatpush2.msra.mxu0 0.0
        %1237 = vmatprep.subr.mxu0 0.0
        %1238 = vmatpush2.msra.mxu0 0.0
        %1239 = vmatprep.mubr.f32.mxu0 0.0
        %1240 = vmatmul.mubr.f32.gmra.mxu0 %v1173
        %v1241 = vpop.f32.mrf.mxu0
        %v1242 = vadd.f32 0.0, %v1241
        %v1243 = vpop.f32.mrf.mxu0
        %v1244 = vadd.f32 0.0, %v1243
        %1245 = vdwg.mxu0
        %v1246 = vsel %vm361, %v1242, 0.0
        %v1247 = vsel %vm362, %v1244, 0.0
        %v1248 = vadd.f32 %v1246, 0.0
        %v1249 = vadd.f32 %v1247, 0.0
        %v1250 = vld [vmem:[#allocation2] sm:$0xff]
        %v1251 = vld [vmem:[#allocation2 + $0x8] sm:$0xff]
        %v1252 = vld [vmem:[#allocation2 + $0x10] sm:$0xff]
        %1253 = vrot.lane.b32.xlu0 %v230, 84
        %v1254 = vpop.permute.xlu0 %1253
        %1258 = vrot.lane.b32.xlu0 %v1250, 16
        %v1259 = vpop.permute.xlu0 %1258
        %1260 = vrot.lane.b32.xlu0 %v1251, 16
        %v1261 = vpop.permute.xlu0 %1260
        %1262 = vrot.lane.b32.xlu0 %v1252, 16
        %v1263 = vpop.permute.xlu0 %1262
        %v1264 = vsel %vm375, %v1259, %v1261
        %v1265 = vsel %vm375, %v1261, %v1263
        %v1268 = vsel %vm1172, %v1254, 0
        %1270 = vmatprep.subr.mxu0 0.0
        %1271 = vmatpush1.msra.mxu0 0.0
        %1272 = vmatprep.subr.mxu0 0.0
        %1273 = vmatpush1.msra.mxu0 0.0
        %1274 = vmatprep.subr.mxu0 0.0
        %1275 = vmatpush1.msra.mxu0 0.0
        %1276 = vmatprep.subr.mxu0 0.0
        %1277 = vmatpush1.msra.mxu0 0.0
        %1278 = vmatprep.subr.mxu0 0.0
        %1279 = vmatpush1.msra.mxu0 0.0
        %1280 = vmatprep.subr.mxu0 0.0
        %1281 = vmatpush1.msra.mxu0 0.0
        %1282 = vmatprep.subr.mxu0 0.0
        %1283 = vmatpush1.msra.mxu0 0.0
        %1284 = vmatprep.subr.mxu0 0.0
        %1285 = vmatpush1.msra.mxu0 0.0
        %1286 = vmatprep.subr.mxu0 0.0
        %1287 = vmatpush1.msra.mxu0 0.0
        %1288 = vmatprep.subr.mxu0 0.0
        %1289 = vmatpush1.msra.mxu0 0.0
        %1290 = vmatprep.subr.mxu0 0.0
        %1291 = vmatpush1.msra.mxu0 0.0
        %1292 = vmatprep.subr.mxu0 0.0
        %1293 = vmatpush1.msra.mxu0 0.0
        %1294 = vmatprep.subr.mxu0 0.0
        %1295 = vmatpush1.msra.mxu0 0.0
        %1296 = vmatprep.subr.mxu0 0.0
        %1297 = vmatpush1.msra.mxu0 0.0
        %1298 = vmatprep.subr.mxu0 0.0
        %1299 = vmatpush1.msra.mxu0 0.0
        %1300 = vmatprep.subr.mxu0 %v1265
        %1301 = vmatpush1.msra.mxu0 %v1264
        %1302 = vmatprep.subr.mxu0 0.0
        %1303 = vmatpush2.msra.mxu0 0.0
        %1304 = vmatprep.subr.mxu0 0.0
        %1305 = vmatpush2.msra.mxu0 0.0
        %1306 = vmatprep.subr.mxu0 0.0
        %1307 = vmatpush2.msra.mxu0 0.0
        %1308 = vmatprep.subr.mxu0 0.0
        %1309 = vmatpush2.msra.mxu0 0.0
        %1310 = vmatprep.subr.mxu0 0.0
        %1311 = vmatpush2.msra.mxu0 0.0
        %1312 = vmatprep.subr.mxu0 0.0
        %1313 = vmatpush2.msra.mxu0 0.0
        %1314 = vmatprep.subr.mxu0 0.0
        %1315 = vmatpush2.msra.mxu0 0.0
        %1316 = vmatprep.subr.mxu0 0.0
        %1317 = vmatpush2.msra.mxu0 0.0
        %1318 = vmatprep.subr.mxu0 0.0
        %1319 = vmatpush2.msra.mxu0 0.0
        %1320 = vmatprep.subr.mxu0 0.0
        %1321 = vmatpush2.msra.mxu0 0.0
        %1322 = vmatprep.subr.mxu0 0.0
        %1323 = vmatpush2.msra.mxu0 0.0
        %1324 = vmatprep.subr.mxu0 0.0
        %1325 = vmatpush2.msra.mxu0 0.0
        %1326 = vmatprep.subr.mxu0 0.0
        %1327 = vmatpush2.msra.mxu0 0.0
        %1328 = vmatprep.subr.mxu0 0.0
        %1329 = vmatpush2.msra.mxu0 0.0
        %1330 = vmatprep.subr.mxu0 0.0
        %1331 = vmatpush2.msra.mxu0 0.0
        %1332 = vmatprep.subr.mxu0 0.0
        %1333 = vmatpush2.msra.mxu0 0.0
        %1334 = vmatprep.mubr.f32.mxu0 0.0
        %1335 = vmatmul.mubr.f32.gmra.mxu0 %v1268
        %v1336 = vpop.f32.mrf.mxu0
        %v1337 = vadd.f32 0.0, %v1336
        %v1338 = vpop.f32.mrf.mxu0
        %v1339 = vadd.f32 0.0, %v1338
        %1340 = vdwg.mxu0
        %v1341 = vadd.f32 %v1248, %v1337
        %v1342 = vadd.f32 %v1249, %v1339
        %v1343 = vld [vmem:[#allocation2] sm:$0xff]
        %v1344 = vld [vmem:[#allocation2 + $0x8] sm:$0xff]
        %v1345 = vld [vmem:[#allocation2 + $0x10] sm:$0xff]
        %1346 = vrot.lane.b32.xlu0 %v230, 76
        %v1347 = vpop.permute.xlu0 %1346
        %1351 = vrot.lane.b32.xlu0 %v1343, 15
        %v1352 = vpop.permute.xlu0 %1351
        %1353 = vrot.lane.b32.xlu0 %v1344, 15
        %v1354 = vpop.permute.xlu0 %1353
        %1355 = vrot.lane.b32.xlu0 %v1345, 15
        %v1356 = vpop.permute.xlu0 %1355
        %v1357 = vsel %vm471, %v1352, %v1354
        %v1358 = vsel %vm471, %v1354, %v1356
        %v1361 = vsel %vm1172, %v1347, 0
        %1363 = vmatprep.subr.mxu0 0.0
        %1364 = vmatpush1.msra.mxu0 0.0
        %1365 = vmatprep.subr.mxu0 0.0
        %1366 = vmatpush1.msra.mxu0 0.0
        %1367 = vmatprep.subr.mxu0 0.0
        %1368 = vmatpush1.msra.mxu0 0.0
        %1369 = vmatprep.subr.mxu0 0.0
        %1370 = vmatpush1.msra.mxu0 0.0
        %1371 = vmatprep.subr.mxu0 0.0
        %1372 = vmatpush1.msra.mxu0 0.0
        %1373 = vmatprep.subr.mxu0 0.0
        %1374 = vmatpush1.msra.mxu0 0.0
        %1375 = vmatprep.subr.mxu0 0.0
        %1376 = vmatpush1.msra.mxu0 0.0
        %1377 = vmatprep.subr.mxu0 0.0
        %1378 = vmatpush1.msra.mxu0 0.0
        %1379 = vmatprep.subr.mxu0 0.0
        %1380 = vmatpush1.msra.mxu0 0.0
        %1381 = vmatprep.subr.mxu0 0.0
        %1382 = vmatpush1.msra.mxu0 0.0
        %1383 = vmatprep.subr.mxu0 0.0
        %1384 = vmatpush1.msra.mxu0 0.0
        %1385 = vmatprep.subr.mxu0 0.0
        %1386 = vmatpush1.msra.mxu0 0.0
        %1387 = vmatprep.subr.mxu0 0.0
        %1388 = vmatpush1.msra.mxu0 0.0
        %1389 = vmatprep.subr.mxu0 0.0
        %1390 = vmatpush1.msra.mxu0 0.0
        %1391 = vmatprep.subr.mxu0 0.0
        %1392 = vmatpush1.msra.mxu0 0.0
        %1393 = vmatprep.subr.mxu0 %v1358
        %1394 = vmatpush1.msra.mxu0 %v1357
        %1395 = vmatprep.subr.mxu0 0.0
        %1396 = vmatpush2.msra.mxu0 0.0
        %1397 = vmatprep.subr.mxu0 0.0
        %1398 = vmatpush2.msra.mxu0 0.0
        %1399 = vmatprep.subr.mxu0 0.0
        %1400 = vmatpush2.msra.mxu0 0.0
        %1401 = vmatprep.subr.mxu0 0.0
        %1402 = vmatpush2.msra.mxu0 0.0
        %1403 = vmatprep.subr.mxu0 0.0
        %1404 = vmatpush2.msra.mxu0 0.0
        %1405 = vmatprep.subr.mxu0 0.0
        %1406 = vmatpush2.msra.mxu0 0.0
        %1407 = vmatprep.subr.mxu0 0.0
        %1408 = vmatpush2.msra.mxu0 0.0
        %1409 = vmatprep.subr.mxu0 0.0
        %1410 = vmatpush2.msra.mxu0 0.0
        %1411 = vmatprep.subr.mxu0 0.0
        %1412 = vmatpush2.msra.mxu0 0.0
        %1413 = vmatprep.subr.mxu0 0.0
        %1414 = vmatpush2.msra.mxu0 0.0
        %1415 = vmatprep.subr.mxu0 0.0
        %1416 = vmatpush2.msra.mxu0 0.0
        %1417 = vmatprep.subr.mxu0 0.0
        %1418 = vmatpush2.msra.mxu0 0.0
        %1419 = vmatprep.subr.mxu0 0.0
        %1420 = vmatpush2.msra.mxu0 0.0
        %1421 = vmatprep.subr.mxu0 0.0
        %1422 = vmatpush2.msra.mxu0 0.0
        %1423 = vmatprep.subr.mxu0 0.0
        %1424 = vmatpush2.msra.mxu0 0.0
        %1425 = vmatprep.subr.mxu0 0.0
        %1426 = vmatpush2.msra.mxu0 0.0
        %1427 = vmatprep.mubr.f32.mxu0 0.0
        %1428 = vmatmul.mubr.f32.gmra.mxu0 %v1361
        %v1429 = vpop.f32.mrf.mxu0
        %v1430 = vadd.f32 0.0, %v1429
        %v1431 = vpop.f32.mrf.mxu0
        %v1432 = vadd.f32 0.0, %v1431
        %1433 = vdwg.mxu0
        %v1434 = vsel %vm553, %v1430, 0.0
        %v1435 = vsel %vm554, %v1432, 0.0
        %v1436 = vadd.f32 %v1341, %v1434
        %v1437 = vadd.f32 %v1342, %v1435
        %v1438 = vld [vmem:[#allocation2] sm:$0xff]
        %v1439 = vld [vmem:[#allocation2 + $0x8] sm:$0xff]
        %v1440 = vld [vmem:[#allocation2 + $0x10] sm:$0xff]
        %1441 = vrot.lane.b32.xlu0 %v230, 68
        %v1442 = vpop.permute.xlu0 %1441
        %1446 = vrot.lane.b32.xlu0 %v1438, 1
        %v1447 = vpop.permute.xlu0 %1446
        %1448 = vrot.lane.b32.xlu0 %v1439, 1
        %v1449 = vpop.permute.xlu0 %1448
        %1450 = vrot.lane.b32.xlu0 %v1440, 1
        %v1451 = vpop.permute.xlu0 %1450
        %v1452 = vsel %vm573, %v1447, %v1449
        %v1453 = vsel %vm573, %v1449, %v1451
        %v1456 = vsel %vm1172, %v1442, 0
        %1458 = vmatprep.subr.mxu0 0.0
        %1459 = vmatpush1.msra.mxu0 0.0
        %1460 = vmatprep.subr.mxu0 0.0
        %1461 = vmatpush1.msra.mxu0 0.0
        %1462 = vmatprep.subr.mxu0 0.0
        %1463 = vmatpush1.msra.mxu0 0.0
        %1464 = vmatprep.subr.mxu0 0.0
        %1465 = vmatpush1.msra.mxu0 0.0
        %1466 = vmatprep.subr.mxu0 0.0
        %1467 = vmatpush1.msra.mxu0 0.0
        %1468 = vmatprep.subr.mxu0 0.0
        %1469 = vmatpush1.msra.mxu0 0.0
        %1470 = vmatprep.subr.mxu0 0.0
        %1471 = vmatpush1.msra.mxu0 0.0
        %1472 = vmatprep.subr.mxu0 0.0
        %1473 = vmatpush1.msra.mxu0 0.0
        %1474 = vmatprep.subr.mxu0 0.0
        %1475 = vmatpush1.msra.mxu0 0.0
        %1476 = vmatprep.subr.mxu0 0.0
        %1477 = vmatpush1.msra.mxu0 0.0
        %1478 = vmatprep.subr.mxu0 0.0
        %1479 = vmatpush1.msra.mxu0 0.0
        %1480 = vmatprep.subr.mxu0 0.0
        %1481 = vmatpush1.msra.mxu0 0.0
        %1482 = vmatprep.subr.mxu0 0.0
        %1483 = vmatpush1.msra.mxu0 0.0
        %1484 = vmatprep.subr.mxu0 0.0
        %1485 = vmatpush1.msra.mxu0 0.0
        %1486 = vmatprep.subr.mxu0 0.0
        %1487 = vmatpush1.msra.mxu0 0.0
        %1488 = vmatprep.subr.mxu0 %v1453
        %1489 = vmatpush1.msra.mxu0 %v1452
        %1490 = vmatprep.subr.mxu0 0.0
        %1491 = vmatpush2.msra.mxu0 0.0
        %1492 = vmatprep.subr.mxu0 0.0
        %1493 = vmatpush2.msra.mxu0 0.0
        %1494 = vmatprep.subr.mxu0 0.0
        %1495 = vmatpush2.msra.mxu0 0.0
        %1496 = vmatprep.subr.mxu0 0.0
        %1497 = vmatpush2.msra.mxu0 0.0
        %1498 = vmatprep.subr.mxu0 0.0
        %1499 = vmatpush2.msra.mxu0 0.0
        %1500 = vmatprep.subr.mxu0 0.0
        %1501 = vmatpush2.msra.mxu0 0.0
        %1502 = vmatprep.subr.mxu0 0.0
        %1503 = vmatpush2.msra.mxu0 0.0
        %1504 = vmatprep.subr.mxu0 0.0
        %1505 = vmatpush2.msra.mxu0 0.0
        %1506 = vmatprep.subr.mxu0 0.0
        %1507 = vmatpush2.msra.mxu0 0.0
        %1508 = vmatprep.subr.mxu0 0.0
        %1509 = vmatpush2.msra.mxu0 0.0
        %1510 = vmatprep.subr.mxu0 0.0
        %1511 = vmatpush2.msra.mxu0 0.0
        %1512 = vmatprep.subr.mxu0 0.0
        %1513 = vmatpush2.msra.mxu0 0.0
        %1514 = vmatprep.subr.mxu0 0.0
        %1515 = vmatpush2.msra.mxu0 0.0
        %1516 = vmatprep.subr.mxu0 0.0
        %1517 = vmatpush2.msra.mxu0 0.0
        %1518 = vmatprep.subr.mxu0 0.0
        %1519 = vmatpush2.msra.mxu0 0.0
        %1520 = vmatprep.subr.mxu0 0.0
        %1521 = vmatpush2.msra.mxu0 0.0
        %1522 = vmatprep.mubr.f32.mxu0 0.0
        %1523 = vmatmul.mubr.f32.gmra.mxu0 %v1456
        %v1524 = vpop.f32.mrf.mxu0
        %v1525 = vadd.f32 0.0, %v1524
        %v1526 = vpop.f32.mrf.mxu0
        %v1527 = vadd.f32 0.0, %v1526
        %1528 = vdwg.mxu0
        %v1529 = vsel %vm361, %v1525, 0.0
        %v1530 = vsel %vm362, %v1527, 0.0
        %v1531 = vadd.f32 %v1436, %v1529
        %v1532 = vadd.f32 %v1437, %v1530
        %v1533 = vld [vmem:[#allocation2 + $0x8] sm:$0xff]
        %v1534 = vld [vmem:[#allocation2 + $0x10] sm:$0xff]
        %1535 = vrot.lane.b32.xlu0 %v230, 60
        %v1536 = vpop.permute.xlu0 %1535
        %v1537 = vsel %vm1172, %v1536, 0
        %1539 = vmatprep.subr.mxu0 0.0
        %1540 = vmatpush1.msra.mxu0 0.0
        %1541 = vmatprep.subr.mxu0 0.0
        %1542 = vmatpush1.msra.mxu0 0.0
        %1543 = vmatprep.subr.mxu0 0.0
        %1544 = vmatpush1.msra.mxu0 0.0
        %1545 = vmatprep.subr.mxu0 0.0
        %1546 = vmatpush1.msra.mxu0 0.0
        %1547 = vmatprep.subr.mxu0 0.0
        %1548 = vmatpush1.msra.mxu0 0.0
        %1549 = vmatprep.subr.mxu0 0.0
        %1550 = vmatpush1.msra.mxu0 0.0
        %1551 = vmatprep.subr.mxu0 0.0
        %1552 = vmatpush1.msra.mxu0 0.0
        %1553 = vmatprep.subr.mxu0 0.0
        %1554 = vmatpush1.msra.mxu0 0.0
        %1555 = vmatprep.subr.mxu0 0.0
        %1556 = vmatpush1.msra.mxu0 0.0
        %1557 = vmatprep.subr.mxu0 0.0
        %1558 = vmatpush1.msra.mxu0 0.0
        %1559 = vmatprep.subr.mxu0 0.0
        %1560 = vmatpush1.msra.mxu0 0.0
        %1561 = vmatprep.subr.mxu0 0.0
        %1562 = vmatpush1.msra.mxu0 0.0
        %1563 = vmatprep.subr.mxu0 0.0
        %1564 = vmatpush1.msra.mxu0 0.0
        %1565 = vmatprep.subr.mxu0 0.0
        %1566 = vmatpush1.msra.mxu0 0.0
        %1567 = vmatprep.subr.mxu0 0.0
        %1568 = vmatpush1.msra.mxu0 0.0
        %1569 = vmatprep.subr.mxu0 %v1534
        %1570 = vmatpush1.msra.mxu0 %v1533
        %1571 = vmatprep.subr.mxu0 0.0
        %1572 = vmatpush2.msra.mxu0 0.0
        %1573 = vmatprep.subr.mxu0 0.0
        %1574 = vmatpush2.msra.mxu0 0.0
        %1575 = vmatprep.subr.mxu0 0.0
        %1576 = vmatpush2.msra.mxu0 0.0
        %1577 = vmatprep.subr.mxu0 0.0
        %1578 = vmatpush2.msra.mxu0 0.0
        %1579 = vmatprep.subr.mxu0 0.0
        %1580 = vmatpush2.msra.mxu0 0.0
        %1581 = vmatprep.subr.mxu0 0.0
        %1582 = vmatpush2.msra.mxu0 0.0
        %1583 = vmatprep.subr.mxu0 0.0
        %1584 = vmatpush2.msra.mxu0 0.0
        %1585 = vmatprep.subr.mxu0 0.0
        %1586 = vmatpush2.msra.mxu0 0.0
        %1587 = vmatprep.subr.mxu0 0.0
        %1588 = vmatpush2.msra.mxu0 0.0
        %1589 = vmatprep.subr.mxu0 0.0
        %1590 = vmatpush2.msra.mxu0 0.0
        %1591 = vmatprep.subr.mxu0 0.0
        %1592 = vmatpush2.msra.mxu0 0.0
        %1593 = vmatprep.subr.mxu0 0.0
        %1594 = vmatpush2.msra.mxu0 0.0
        %1595 = vmatprep.subr.mxu0 0.0
        %1596 = vmatpush2.msra.mxu0 0.0
        %1597 = vmatprep.subr.mxu0 0.0
        %1598 = vmatpush2.msra.mxu0 0.0
        %1599 = vmatprep.subr.mxu0 0.0
        %1600 = vmatpush2.msra.mxu0 0.0
        %1601 = vmatprep.subr.mxu0 0.0
        %1602 = vmatpush2.msra.mxu0 0.0
        %1603 = vmatprep.mubr.f32.mxu0 0.0
        %1604 = vmatmul.mubr.f32.gmra.mxu0 %v1537
        %v1605 = vpop.f32.mrf.mxu0
        %v1606 = vadd.f32 0.0, %v1605
        %v1607 = vpop.f32.mrf.mxu0
        %v1608 = vadd.f32 0.0, %v1607
        %1609 = vdwg.mxu0
        %v1610 = vadd.f32 %v1531, %v1606
        %v1611 = vadd.f32 %v1532, %v1608
        %v1612 = vld [vmem:[#allocation2 + $0x8] sm:$0xff]
        %v1613 = vld [vmem:[#allocation2 + $0x10] sm:$0xff]
        %v1614 = vld [vmem:[#allocation2 + $0x18] sm:$0xff]
        %1615 = vrot.lane.b32.xlu0 %v230, 52
        %v1616 = vpop.permute.xlu0 %1615
        %1620 = vrot.lane.b32.xlu0 %v1612, 127
        %v1621 = vpop.permute.xlu0 %1620
        %1622 = vrot.lane.b32.xlu0 %v1613, 127
        %v1623 = vpop.permute.xlu0 %1622
        %1624 = vrot.lane.b32.xlu0 %v1614, 127
        %v1625 = vpop.permute.xlu0 %1624
        %v1626 = vsel %vm756, %v1621, %v1623
        %v1627 = vsel %vm756, %v1623, %v1625
        %v1630 = vsel %vm1172, %v1616, 0
        %1632 = vmatprep.subr.mxu0 0.0
        %1633 = vmatpush1.msra.mxu0 0.0
        %1634 = vmatprep.subr.mxu0 0.0
        %1635 = vmatpush1.msra.mxu0 0.0
        %1636 = vmatprep.subr.mxu0 0.0
        %1637 = vmatpush1.msra.mxu0 0.0
        %1638 = vmatprep.subr.mxu0 0.0
        %1639 = vmatpush1.msra.mxu0 0.0
        %1640 = vmatprep.subr.mxu0 0.0
        %1641 = vmatpush1.msra.mxu0 0.0
        %1642 = vmatprep.subr.mxu0 0.0
        %1643 = vmatpush1.msra.mxu0 0.0
        %1644 = vmatprep.subr.mxu0 0.0
        %1645 = vmatpush1.msra.mxu0 0.0
        %1646 = vmatprep.subr.mxu0 0.0
        %1647 = vmatpush1.msra.mxu0 0.0
        %1648 = vmatprep.subr.mxu0 0.0
        %1649 = vmatpush1.msra.mxu0 0.0
        %1650 = vmatprep.subr.mxu0 0.0
        %1651 = vmatpush1.msra.mxu0 0.0
        %1652 = vmatprep.subr.mxu0 0.0
        %1653 = vmatpush1.msra.mxu0 0.0
        %1654 = vmatprep.subr.mxu0 0.0
        %1655 = vmatpush1.msra.mxu0 0.0
        %1656 = vmatprep.subr.mxu0 0.0
        %1657 = vmatpush1.msra.mxu0 0.0
        %1658 = vmatprep.subr.mxu0 0.0
        %1659 = vmatpush1.msra.mxu0 0.0
        %1660 = vmatprep.subr.mxu0 0.0
        %1661 = vmatpush1.msra.mxu0 0.0
        %1662 = vmatprep.subr.mxu0 %v1627
        %1663 = vmatpush1.msra.mxu0 %v1626
        %1664 = vmatprep.subr.mxu0 0.0
        %1665 = vmatpush2.msra.mxu0 0.0
        %1666 = vmatprep.subr.mxu0 0.0
        %1667 = vmatpush2.msra.mxu0 0.0
        %1668 = vmatprep.subr.mxu0 0.0
        %1669 = vmatpush2.msra.mxu0 0.0
        %1670 = vmatprep.subr.mxu0 0.0
        %1671 = vmatpush2.msra.mxu0 0.0
        %1672 = vmatprep.subr.mxu0 0.0
        %1673 = vmatpush2.msra.mxu0 0.0
        %1674 = vmatprep.subr.mxu0 0.0
        %1675 = vmatpush2.msra.mxu0 0.0
        %1676 = vmatprep.subr.mxu0 0.0
        %1677 = vmatpush2.msra.mxu0 0.0
        %1678 = vmatprep.subr.mxu0 0.0
        %1679 = vmatpush2.msra.mxu0 0.0
        %1680 = vmatprep.subr.mxu0 0.0
        %1681 = vmatpush2.msra.mxu0 0.0
        %1682 = vmatprep.subr.mxu0 0.0
        %1683 = vmatpush2.msra.mxu0 0.0
        %1684 = vmatprep.subr.mxu0 0.0
        %1685 = vmatpush2.msra.mxu0 0.0
        %1686 = vmatprep.subr.mxu0 0.0
        %1687 = vmatpush2.msra.mxu0 0.0
        %1688 = vmatprep.subr.mxu0 0.0
        %1689 = vmatpush2.msra.mxu0 0.0
        %1690 = vmatprep.subr.mxu0 0.0
        %1691 = vmatpush2.msra.mxu0 0.0
        %1692 = vmatprep.subr.mxu0 0.0
        %1693 = vmatpush2.msra.mxu0 0.0
        %1694 = vmatprep.subr.mxu0 0.0
        %1695 = vmatpush2.msra.mxu0 0.0
        %1696 = vmatprep.mubr.f32.mxu0 0.0
        %1697 = vmatmul.mubr.f32.gmra.mxu0 %v1630
        %v1698 = vpop.f32.mrf.mxu0
        %v1699 = vadd.f32 0.0, %v1698
        %v1700 = vpop.f32.mrf.mxu0
        %v1701 = vadd.f32 0.0, %v1700
        %1702 = vdwg.mxu0
        %v1703 = vsel %vm553, %v1699, 0.0
        %v1704 = vsel %vm554, %v1701, 0.0
        %v1705 = vadd.f32 %v1610, %v1703
        %v1706 = vadd.f32 %v1611, %v1704
        %v1707 = vld [vmem:[#allocation2 + $0x8] sm:$0xff]
        %v1708 = vld [vmem:[#allocation2 + $0x10] sm:$0xff]
        %v1709 = vld [vmem:[#allocation2 + $0x18] sm:$0xff]
        %1710 = vrot.lane.b32.xlu0 %v230, 44
        %v1711 = vpop.permute.xlu0 %1710
        %1715 = vrot.lane.b32.xlu0 %v1707, 113
        %v1716 = vpop.permute.xlu0 %1715
        %1717 = vrot.lane.b32.xlu0 %v1708, 113
        %v1718 = vpop.permute.xlu0 %1717
        %1719 = vrot.lane.b32.xlu0 %v1709, 113
        %v1720 = vpop.permute.xlu0 %1719
        %v1721 = vsel %vm854, %v1716, %v1718
        %v1722 = vsel %vm854, %v1718, %v1720
        %v1725 = vsel %vm1172, %v1711, 0
        %1727 = vmatprep.subr.mxu0 0.0
        %1728 = vmatpush1.msra.mxu0 0.0
        %1729 = vmatprep.subr.mxu0 0.0
        %1730 = vmatpush1.msra.mxu0 0.0
        %1731 = vmatprep.subr.mxu0 0.0
        %1732 = vmatpush1.msra.mxu0 0.0
        %1733 = vmatprep.subr.mxu0 0.0
        %1734 = vmatpush1.msra.mxu0 0.0
        %1735 = vmatprep.subr.mxu0 0.0
        %1736 = vmatpush1.msra.mxu0 0.0
        %1737 = vmatprep.subr.mxu0 0.0
        %1738 = vmatpush1.msra.mxu0 0.0
        %1739 = vmatprep.subr.mxu0 0.0
        %1740 = vmatpush1.msra.mxu0 0.0
        %1741 = vmatprep.subr.mxu0 0.0
        %1742 = vmatpush1.msra.mxu0 0.0
        %1743 = vmatprep.subr.mxu0 0.0
        %1744 = vmatpush1.msra.mxu0 0.0
        %1745 = vmatprep.subr.mxu0 0.0
        %1746 = vmatpush1.msra.mxu0 0.0
        %1747 = vmatprep.subr.mxu0 0.0
        %1748 = vmatpush1.msra.mxu0 0.0
        %1749 = vmatprep.subr.mxu0 0.0
        %1750 = vmatpush1.msra.mxu0 0.0
        %1751 = vmatprep.subr.mxu0 0.0
        %1752 = vmatpush1.msra.mxu0 0.0
        %1753 = vmatprep.subr.mxu0 0.0
        %1754 = vmatpush1.msra.mxu0 0.0
        %1755 = vmatprep.subr.mxu0 0.0
        %1756 = vmatpush1.msra.mxu0 0.0
        %1757 = vmatprep.subr.mxu0 %v1722
        %1758 = vmatpush1.msra.mxu0 %v1721
        %1759 = vmatprep.subr.mxu0 0.0
        %1760 = vmatpush2.msra.mxu0 0.0
        %1761 = vmatprep.subr.mxu0 0.0
        %1762 = vmatpush2.msra.mxu0 0.0
        %1763 = vmatprep.subr.mxu0 0.0
        %1764 = vmatpush2.msra.mxu0 0.0
        %1765 = vmatprep.subr.mxu0 0.0
        %1766 = vmatpush2.msra.mxu0 0.0
        %1767 = vmatprep.subr.mxu0 0.0
        %1768 = vmatpush2.msra.mxu0 0.0
        %1769 = vmatprep.subr.mxu0 0.0
        %1770 = vmatpush2.msra.mxu0 0.0
        %1771 = vmatprep.subr.mxu0 0.0
        %1772 = vmatpush2.msra.mxu0 0.0
        %1773 = vmatprep.subr.mxu0 0.0
        %1774 = vmatpush2.msra.mxu0 0.0
        %1775 = vmatprep.subr.mxu0 0.0
        %1776 = vmatpush2.msra.mxu0 0.0
        %1777 = vmatprep.subr.mxu0 0.0
        %1778 = vmatpush2.msra.mxu0 0.0
        %1779 = vmatprep.subr.mxu0 0.0
        %1780 = vmatpush2.msra.mxu0 0.0
        %1781 = vmatprep.subr.mxu0 0.0
        %1782 = vmatpush2.msra.mxu0 0.0
        %1783 = vmatprep.subr.mxu0 0.0
        %1784 = vmatpush2.msra.mxu0 0.0
        %1785 = vmatprep.subr.mxu0 0.0
        %1786 = vmatpush2.msra.mxu0 0.0
        %1787 = vmatprep.subr.mxu0 0.0
        %1788 = vmatpush2.msra.mxu0 0.0
        %1789 = vmatprep.subr.mxu0 0.0
        %1790 = vmatpush2.msra.mxu0 0.0
        %1791 = vmatprep.mubr.f32.mxu0 0.0
        %1792 = vmatmul.mubr.f32.gmra.mxu0 %v1725
        %v1793 = vpop.f32.mrf.mxu0
        %v1794 = vadd.f32 0.0, %v1793
        %v1795 = vpop.f32.mrf.mxu0
        %v1796 = vadd.f32 0.0, %v1795
        %1797 = vdwg.mxu0
        %v1798 = vsel %vm361, %v1794, 0.0
        %v1799 = vsel %vm362, %v1796, 0.0
        %v1800 = vadd.f32 %v1705, %v1798
        %v1801 = vadd.f32 %v1706, %v1799
        %v1802 = vld [vmem:[#allocation2 + $0x8] sm:$0xff]
        %v1803 = vld [vmem:[#allocation2 + $0x10] sm:$0xff]
        %v1804 = vld [vmem:[#allocation2 + $0x18] sm:$0xff]
        %1805 = vrot.lane.b32.xlu0 %v230, 36
        %v1806 = vpop.permute.xlu0 %1805
        %1810 = vrot.lane.b32.xlu0 %v1802, 112
        %v1811 = vpop.permute.xlu0 %1810
        %1812 = vrot.lane.b32.xlu0 %v1803, 112
        %v1813 = vpop.permute.xlu0 %1812
        %1814 = vrot.lane.b32.xlu0 %v1804, 112
        %v1815 = vpop.permute.xlu0 %1814
        %v1816 = vsel %vm952, %v1811, %v1813
        %v1817 = vsel %vm952, %v1813, %v1815
        %v1820 = vsel %vm1172, %v1806, 0
        %1822 = vmatprep.subr.mxu0 0.0
        %1823 = vmatpush1.msra.mxu0 0.0
        %1824 = vmatprep.subr.mxu0 0.0
        %1825 = vmatpush1.msra.mxu0 0.0
        %1826 = vmatprep.subr.mxu0 0.0
        %1827 = vmatpush1.msra.mxu0 0.0
        %1828 = vmatprep.subr.mxu0 0.0
        %1829 = vmatpush1.msra.mxu0 0.0
        %1830 = vmatprep.subr.mxu0 0.0
        %1831 = vmatpush1.msra.mxu0 0.0
        %1832 = vmatprep.subr.mxu0 0.0
        %1833 = vmatpush1.msra.mxu0 0.0
        %1834 = vmatprep.subr.mxu0 0.0
        %1835 = vmatpush1.msra.mxu0 0.0
        %1836 = vmatprep.subr.mxu0 0.0
        %1837 = vmatpush1.msra.mxu0 0.0
        %1838 = vmatprep.subr.mxu0 0.0
        %1839 = vmatpush1.msra.mxu0 0.0
        %1840 = vmatprep.subr.mxu0 0.0
        %1841 = vmatpush1.msra.mxu0 0.0
        %1842 = vmatprep.subr.mxu0 0.0
        %1843 = vmatpush1.msra.mxu0 0.0
        %1844 = vmatprep.subr.mxu0 0.0
        %1845 = vmatpush1.msra.mxu0 0.0
        %1846 = vmatprep.subr.mxu0 0.0
        %1847 = vmatpush1.msra.mxu0 0.0
        %1848 = vmatprep.subr.mxu0 0.0
        %1849 = vmatpush1.msra.mxu0 0.0
        %1850 = vmatprep.subr.mxu0 0.0
        %1851 = vmatpush1.msra.mxu0 0.0
        %1852 = vmatprep.subr.mxu0 %v1817
        %1853 = vmatpush1.msra.mxu0 %v1816
        %1854 = vmatprep.subr.mxu0 0.0
        %1855 = vmatpush2.msra.mxu0 0.0
        %1856 = vmatprep.subr.mxu0 0.0
        %1857 = vmatpush2.msra.mxu0 0.0
        %1858 = vmatprep.subr.mxu0 0.0
        %1859 = vmatpush2.msra.mxu0 0.0
        %1860 = vmatprep.subr.mxu0 0.0
        %1861 = vmatpush2.msra.mxu0 0.0
        %1862 = vmatprep.subr.mxu0 0.0
        %1863 = vmatpush2.msra.mxu0 0.0
        %1864 = vmatprep.subr.mxu0 0.0
        %1865 = vmatpush2.msra.mxu0 0.0
        %1866 = vmatprep.subr.mxu0 0.0
        %1867 = vmatpush2.msra.mxu0 0.0
        %1868 = vmatprep.subr.mxu0 0.0
        %1869 = vmatpush2.msra.mxu0 0.0
        %1870 = vmatprep.subr.mxu0 0.0
        %1871 = vmatpush2.msra.mxu0 0.0
        %1872 = vmatprep.subr.mxu0 0.0
        %1873 = vmatpush2.msra.mxu0 0.0
        %1874 = vmatprep.subr.mxu0 0.0
        %1875 = vmatpush2.msra.mxu0 0.0
        %1876 = vmatprep.subr.mxu0 0.0
        %1877 = vmatpush2.msra.mxu0 0.0
        %1878 = vmatprep.subr.mxu0 0.0
        %1879 = vmatpush2.msra.mxu0 0.0
        %1880 = vmatprep.subr.mxu0 0.0
        %1881 = vmatpush2.msra.mxu0 0.0
        %1882 = vmatprep.subr.mxu0 0.0
        %1883 = vmatpush2.msra.mxu0 0.0
        %1884 = vmatprep.subr.mxu0 0.0
        %1885 = vmatpush2.msra.mxu0 0.0
        %1886 = vmatprep.mubr.f32.mxu0 0.0
        %1887 = vmatmul.mubr.f32.gmra.mxu0 %v1820
        %v1888 = vpop.f32.mrf.mxu0
        %v1889 = vadd.f32 0.0, %v1888
        %v1890 = vpop.f32.mrf.mxu0
        %v1891 = vadd.f32 0.0, %v1890
        %1892 = vdwg.mxu0
        %v1893 = vadd.f32 %v1800, %v1889
        %v1894 = vadd.f32 %v1801, %v1891
        %v1895 = vld [vmem:[#allocation2 + $0x8] sm:$0xff]
        %v1896 = vld [vmem:[#allocation2 + $0x10] sm:$0xff]
        %v1897 = vld [vmem:[#allocation2 + $0x18] sm:$0xff]
        %1898 = vrot.lane.b32.xlu0 %v230, 28
        %v1899 = vpop.permute.xlu0 %1898
        %1903 = vrot.lane.b32.xlu0 %v1895, 111
        %v1904 = vpop.permute.xlu0 %1903
        %1905 = vrot.lane.b32.xlu0 %v1896, 111
        %v1906 = vpop.permute.xlu0 %1905
        %1907 = vrot.lane.b32.xlu0 %v1897, 111
        %v1908 = vpop.permute.xlu0 %1907
        %v1909 = vsel %vm1048, %v1904, %v1906
        %v1910 = vsel %vm1048, %v1906, %v1908
        %v1913 = vsel %vm1172, %v1899, 0
        %1915 = vmatprep.subr.mxu0 0.0
        %1916 = vmatpush1.msra.mxu0 0.0
        %1917 = vmatprep.subr.mxu0 0.0
        %1918 = vmatpush1.msra.mxu0 0.0
        %1919 = vmatprep.subr.mxu0 0.0
        %1920 = vmatpush1.msra.mxu0 0.0
        %1921 = vmatprep.subr.mxu0 0.0
        %1922 = vmatpush1.msra.mxu0 0.0
        %1923 = vmatprep.subr.mxu0 0.0
        %1924 = vmatpush1.msra.mxu0 0.0
        %1925 = vmatprep.subr.mxu0 0.0
        %1926 = vmatpush1.msra.mxu0 0.0
        %1927 = vmatprep.subr.mxu0 0.0
        %1928 = vmatpush1.msra.mxu0 0.0
        %1929 = vmatprep.subr.mxu0 0.0
        %1930 = vmatpush1.msra.mxu0 0.0
        %1931 = vmatprep.subr.mxu0 0.0
        %1932 = vmatpush1.msra.mxu0 0.0
        %1933 = vmatprep.subr.mxu0 0.0
        %1934 = vmatpush1.msra.mxu0 0.0
        %1935 = vmatprep.subr.mxu0 0.0
        %1936 = vmatpush1.msra.mxu0 0.0
        %1937 = vmatprep.subr.mxu0 0.0
        %1938 = vmatpush1.msra.mxu0 0.0
        %1939 = vmatprep.subr.mxu0 0.0
        %1940 = vmatpush1.msra.mxu0 0.0
        %1941 = vmatprep.subr.mxu0 0.0
        %1942 = vmatpush1.msra.mxu0 0.0
        %1943 = vmatprep.subr.mxu0 0.0
        %1944 = vmatpush1.msra.mxu0 0.0
        %1945 = vmatprep.subr.mxu0 %v1910
        %1946 = vmatpush1.msra.mxu0 %v1909
        %1947 = vmatprep.subr.mxu0 0.0
        %1948 = vmatpush2.msra.mxu0 0.0
        %1949 = vmatprep.subr.mxu0 0.0
        %1950 = vmatpush2.msra.mxu0 0.0
        %1951 = vmatprep.subr.mxu0 0.0
        %1952 = vmatpush2.msra.mxu0 0.0
        %1953 = vmatprep.subr.mxu0 0.0
        %1954 = vmatpush2.msra.mxu0 0.0
        %1955 = vmatprep.subr.mxu0 0.0
        %1956 = vmatpush2.msra.mxu0 0.0
        %1957 = vmatprep.subr.mxu0 0.0
        %1958 = vmatpush2.msra.mxu0 0.0
        %1959 = vmatprep.subr.mxu0 0.0
        %1960 = vmatpush2.msra.mxu0 0.0
        %1961 = vmatprep.subr.mxu0 0.0
        %1962 = vmatpush2.msra.mxu0 0.0
        %1963 = vmatprep.subr.mxu0 0.0
        %1964 = vmatpush2.msra.mxu0 0.0
        %1965 = vmatprep.subr.mxu0 0.0
        %1966 = vmatpush2.msra.mxu0 0.0
        %1967 = vmatprep.subr.mxu0 0.0
        %1968 = vmatpush2.msra.mxu0 0.0
        %1969 = vmatprep.subr.mxu0 0.0
        %1970 = vmatpush2.msra.mxu0 0.0
        %1971 = vmatprep.subr.mxu0 0.0
        %1972 = vmatpush2.msra.mxu0 0.0
        %1973 = vmatprep.subr.mxu0 0.0
        %1974 = vmatpush2.msra.mxu0 0.0
        %1975 = vmatprep.subr.mxu0 0.0
        %1976 = vmatpush2.msra.mxu0 0.0
        %1977 = vmatprep.subr.mxu0 0.0
        %1978 = vmatpush2.msra.mxu0 0.0
        %1979 = vmatprep.mubr.f32.mxu0 0.0
        %1980 = vmatmul.mubr.f32.gmra.mxu0 %v1913
        %v1981 = vpop.f32.mrf.mxu0
        %v1982 = vadd.f32 0.0, %v1981
        %v1983 = vpop.f32.mrf.mxu0
        %v1984 = vadd.f32 0.0, %v1983
        %1985 = vdwg.mxu0
        %v1986 = vsel %vm553, %v1982, 0.0
        %v1987 = vsel %vm554, %v1984, 0.0
        %v1988 = vadd.f32 %v1893, %v1986
        %v1989 = vadd.f32 %v1894, %v1987
        %v1990 = vld [vmem:[#allocation8] sm:$0xf]
        %1992 = vset.pattern.permute.xlu0 1
        %1993 = vperm.xlu0 %1992, %v1990
        %v1994 = vpop.permute.xlu0 %1993
        %v1996 = vadd.f32 %v1988, %v1994
        %v1997 = vadd.f32 %v1989, %v1994
        %vm1998 = vcmp.ge.f32.partialorder %v1996, 0.0
        %vm1999 = vcmp.ge.f32.partialorder %v1997, 0.0
        %v2000 = vmul.f32 %v1996, 0.01
        %v2001 = vmul.f32 %v1997, 0.01
        %v2002 = vsel %vm1998, %v1996, %v2000
        %v2003 = vsel %vm1999, %v1997, %v2001
        %2004 = vst [vmem:[#allocation2 + $0x28] sm:$0xf] %v2002
        %2005 = vst [vmem:[#allocation2 + $0x30] sm:$0xf] %v2003
        %v2006 = vld [vmem:[#allocation2] sm:$0xff]
        %v2007 = vld [vmem:[#allocation2 + $0x8] sm:$0xff]
        %v2008 = vld [vmem:[#allocation2 + $0x10] sm:$0xff]
        %v2009 = vld [vmem:[#allocation2 + $0x20] sm:$0xf]
        %v2010 = vld [vmem:[#allocation2 + $0x28] sm:$0xf]
        %v2011 = vld [vmem:[#allocation2 + $0x30] sm:$0xf]
        %2012 = vrot.lane.b32.xlu0 %v230, 20
        %v2013 = vpop.permute.xlu0 %2012
        %2020 = vrot.lane.b32.xlu0 %v2006, 17
        %v2021 = vpop.permute.xlu0 %2020
        %2022 = vrot.lane.b32.xlu0 %v2007, 17
        %v2023 = vpop.permute.xlu0 %2022
        %2024 = vrot.lane.b32.xlu0 %v2008, 17
        %v2025 = vpop.permute.xlu0 %2024
        %2026 = vrot.lane.b32.xlu0 %v2009, 17
        %v2027 = vpop.permute.xlu0 %2026
        %2028 = vrot.lane.b32.xlu0 %v2010, 17
        %v2029 = vpop.permute.xlu0 %2028
        %2030 = vrot.lane.b32.xlu0 %v2011, 17
        %v2031 = vpop.permute.xlu0 %2030
        %v2032 = vsel %vm276, %v2021, %v2023
        %v2033 = vsel %vm276, %v2023, %v2025
        %v2034 = vsel %vm276, %v2027, %v2029
        %v2035 = vsel %vm276, %v2029, %v2031
        %vm2038 = vcmask 97280
        %v2039 = vsel %vm2038, %v2013, 0
        %v2041 = vsel %vm283, %v2034, 0
        %v2043 = vsel %vm283, %v2035, 0
        %2045 = vmatprep.subr.mxu0 0.0
        %2046 = vmatpush1.msra.mxu0 0.0
        %2047 = vmatprep.subr.mxu0 0.0
        %2048 = vmatpush1.msra.mxu0 0.0
        %2049 = vmatprep.subr.mxu0 0.0
        %2050 = vmatpush1.msra.mxu0 0.0
        %2051 = vmatprep.subr.mxu0 0.0
        %2052 = vmatpush1.msra.mxu0 0.0
        %2053 = vmatprep.subr.mxu0 0.0
        %2054 = vmatpush1.msra.mxu0 0.0
        %2055 = vmatprep.subr.mxu0 0.0
        %2056 = vmatpush1.msra.mxu0 0.0
        %2057 = vmatprep.subr.mxu0 0.0
        %2058 = vmatpush1.msra.mxu0 0.0
        %2059 = vmatprep.subr.mxu0 0.0
        %2060 = vmatpush1.msra.mxu0 0.0
        %2061 = vmatprep.subr.mxu0 0.0
        %2062 = vmatpush1.msra.mxu0 0.0
        %2063 = vmatprep.subr.mxu0 0.0
        %2064 = vmatpush1.msra.mxu0 0.0
        %2065 = vmatprep.subr.mxu0 0.0
        %2066 = vmatpush1.msra.mxu0 0.0
        %2067 = vmatprep.subr.mxu0 0.0
        %2068 = vmatpush1.msra.mxu0 0.0
        %2069 = vmatprep.subr.mxu0 0.0
        %2070 = vmatpush1.msra.mxu0 0.0
        %2071 = vmatprep.subr.mxu0 0.0
        %2072 = vmatpush1.msra.mxu0 0.0
        %2073 = vmatprep.subr.mxu0 %v2043
        %2074 = vmatpush1.msra.mxu0 %v2041
        %2075 = vmatprep.subr.mxu0 %v2033
        %2076 = vmatpush1.msra.mxu0 %v2032
        %2077 = vmatprep.subr.mxu0 0.0
        %2078 = vmatpush2.msra.mxu0 0.0
        %2079 = vmatprep.subr.mxu0 0.0
        %2080 = vmatpush2.msra.mxu0 0.0
        %2081 = vmatprep.subr.mxu0 0.0
        %2082 = vmatpush2.msra.mxu0 0.0
        %2083 = vmatprep.subr.mxu0 0.0
        %2084 = vmatpush2.msra.mxu0 0.0
        %2085 = vmatprep.subr.mxu0 0.0
        %2086 = vmatpush2.msra.mxu0 0.0
        %2087 = vmatprep.subr.mxu0 0.0
        %2088 = vmatpush2.msra.mxu0 0.0
        %2089 = vmatprep.subr.mxu0 0.0
        %2090 = vmatpush2.msra.mxu0 0.0
        %2091 = vmatprep.subr.mxu0 0.0
        %2092 = vmatpush2.msra.mxu0 0.0
        %2093 = vmatprep.subr.mxu0 0.0
        %2094 = vmatpush2.msra.mxu0 0.0
        %2095 = vmatprep.subr.mxu0 0.0
        %2096 = vmatpush2.msra.mxu0 0.0
        %2097 = vmatprep.subr.mxu0 0.0
        %2098 = vmatpush2.msra.mxu0 0.0
        %2099 = vmatprep.subr.mxu0 0.0
        %2100 = vmatpush2.msra.mxu0 0.0
        %2101 = vmatprep.subr.mxu0 0.0
        %2102 = vmatpush2.msra.mxu0 0.0
        %2103 = vmatprep.subr.mxu0 0.0
        %2104 = vmatpush2.msra.mxu0 0.0
        %2105 = vmatprep.subr.mxu0 0.0
        %2106 = vmatpush2.msra.mxu0 0.0
        %2107 = vmatprep.subr.mxu0 0.0
        %2108 = vmatpush2.msra.mxu0 0.0
        %2109 = vmatprep.mubr.f32.mxu0 0.0
        %2110 = vmatmul.mubr.f32.gmra.mxu0 %v2039
        %v2111 = vpop.f32.mrf.mxu0
        %v2112 = vadd.f32 0.0, %v2111
        %v2113 = vpop.f32.mrf.mxu0
        %v2114 = vadd.f32 0.0, %v2113
        %2115 = vdwg.mxu0
        %v2116 = vsel %vm361, %v2112, 0.0
        %v2117 = vsel %vm362, %v2114, 0.0
        %v2118 = vadd.f32 %v2116, 0.0
        %v2119 = vadd.f32 %v2117, 0.0
        %v2120 = vld [vmem:[#allocation2] sm:$0xff]
        %v2121 = vld [vmem:[#allocation2 + $0x8] sm:$0xff]
        %v2122 = vld [vmem:[#allocation2 + $0x10] sm:$0xff]
        %v2123 = vld [vmem:[#allocation2 + $0x20] sm:$0xf]
        %v2124 = vld [vmem:[#allocation2 + $0x28] sm:$0xf]
        %v2125 = vld [vmem:[#allocation2 + $0x30] sm:$0xf]
        %v2126 = vcombine.high %v230, %v230
        %2127 = vrot.lane.b32.xlu0 %v230, 8
        %v2128 = vpop.permute.xlu0 %2127
        %2129 = vrot.lane.b32.xlu0 %v2126, 8
        %v2130 = vpop.permute.xlu0 %2129
        %v2131 = vsel %vm1172, %v2128, %v2130
        %2138 = vrot.lane.b32.xlu0 %v2120, 16
        %v2139 = vpop.permute.xlu0 %2138
        %2140 = vrot.lane.b32.xlu0 %v2121, 16
        %v2141 = vpop.permute.xlu0 %2140
        %2142 = vrot.lane.b32.xlu0 %v2122, 16
        %v2143 = vpop.permute.xlu0 %2142
        %2144 = vrot.lane.b32.xlu0 %v2123, 16
        %v2145 = vpop.permute.xlu0 %2144
        %2146 = vrot.lane.b32.xlu0 %v2124, 16
        %v2147 = vpop.permute.xlu0 %2146
        %2148 = vrot.lane.b32.xlu0 %v2125, 16
        %v2149 = vpop.permute.xlu0 %2148
        %v2150 = vsel %vm375, %v2139, %v2141
        %v2151 = vsel %vm375, %v2141, %v2143
        %v2152 = vsel %vm375, %v2145, %v2147
        %v2153 = vsel %vm375, %v2147, %v2149
        %v2156 = vsel %vm2038, %v2131, 0
        %v2158 = vsel %vm283, %v2152, 0
        %v2160 = vsel %vm283, %v2153, 0
        %2162 = vmatprep.subr.mxu0 0.0
        %2163 = vmatpush1.msra.mxu0 0.0
        %2164 = vmatprep.subr.mxu0 0.0
        %2165 = vmatpush1.msra.mxu0 0.0
        %2166 = vmatprep.subr.mxu0 0.0
        %2167 = vmatpush1.msra.mxu0 0.0
        %2168 = vmatprep.subr.mxu0 0.0
        %2169 = vmatpush1.msra.mxu0 0.0
        %2170 = vmatprep.subr.mxu0 0.0
        %2171 = vmatpush1.msra.mxu0 0.0
        %2172 = vmatprep.subr.mxu0 0.0
        %2173 = vmatpush1.msra.mxu0 0.0
        %2174 = vmatprep.subr.mxu0 0.0
        %2175 = vmatpush1.msra.mxu0 0.0
        %2176 = vmatprep.subr.mxu0 0.0
        %2177 = vmatpush1.msra.mxu0 0.0
        %2178 = vmatprep.subr.mxu0 0.0
        %2179 = vmatpush1.msra.mxu0 0.0
        %2180 = vmatprep.subr.mxu0 0.0
        %2181 = vmatpush1.msra.mxu0 0.0
        %2182 = vmatprep.subr.mxu0 0.0
        %2183 = vmatpush1.msra.mxu0 0.0
        %2184 = vmatprep.subr.mxu0 0.0
        %2185 = vmatpush1.msra.mxu0 0.0
        %2186 = vmatprep.subr.mxu0 0.0
        %2187 = vmatpush1.msra.mxu0 0.0
        %2188 = vmatprep.subr.mxu0 0.0
        %2189 = vmatpush1.msra.mxu0 0.0
        %2190 = vmatprep.subr.mxu0 %v2160
        %2191 = vmatpush1.msra.mxu0 %v2158
        %2192 = vmatprep.subr.mxu0 %v2151
        %2193 = vmatpush1.msra.mxu0 %v2150
        %2194 = vmatprep.subr.mxu0 0.0
        %2195 = vmatpush2.msra.mxu0 0.0
        %2196 = vmatprep.subr.mxu0 0.0
        %2197 = vmatpush2.msra.mxu0 0.0
        %2198 = vmatprep.subr.mxu0 0.0
        %2199 = vmatpush2.msra.mxu0 0.0
        %2200 = vmatprep.subr.mxu0 0.0
        %2201 = vmatpush2.msra.mxu0 0.0
        %2202 = vmatprep.subr.mxu0 0.0
        %2203 = vmatpush2.msra.mxu0 0.0
        %2204 = vmatprep.subr.mxu0 0.0
        %2205 = vmatpush2.msra.mxu0 0.0
        %2206 = vmatprep.subr.mxu0 0.0
        %2207 = vmatpush2.msra.mxu0 0.0
        %2208 = vmatprep.subr.mxu0 0.0
        %2209 = vmatpush2.msra.mxu0 0.0
        %2210 = vmatprep.subr.mxu0 0.0
        %2211 = vmatpush2.msra.mxu0 0.0
        %2212 = vmatprep.subr.mxu0 0.0
        %2213 = vmatpush2.msra.mxu0 0.0
        %2214 = vmatprep.subr.mxu0 0.0
        %2215 = vmatpush2.msra.mxu0 0.0
        %2216 = vmatprep.subr.mxu0 0.0
        %2217 = vmatpush2.msra.mxu0 0.0
        %2218 = vmatprep.subr.mxu0 0.0
        %2219 = vmatpush2.msra.mxu0 0.0
        %2220 = vmatprep.subr.mxu0 0.0
        %2221 = vmatpush2.msra.mxu0 0.0
        %2222 = vmatprep.subr.mxu0 0.0
        %2223 = vmatpush2.msra.mxu0 0.0
        %2224 = vmatprep.subr.mxu0 0.0
        %2225 = vmatpush2.msra.mxu0 0.0
        %2226 = vmatprep.mubr.f32.mxu0 0.0
        %2227 = vmatmul.mubr.f32.gmra.mxu0 %v2156
        %v2228 = vpop.f32.mrf.mxu0
        %v2229 = vadd.f32 0.0, %v2228
        %v2230 = vpop.f32.mrf.mxu0
        %v2231 = vadd.f32 0.0, %v2230
        %2232 = vdwg.mxu0
        %v2233 = vadd.f32 %v2118, %v2229
        %v2234 = vadd.f32 %v2119, %v2231
        %v2235 = vld [vmem:[#allocation2] sm:$0xff]
        %v2236 = vld [vmem:[#allocation2 + $0x8] sm:$0xff]
        %v2237 = vld [vmem:[#allocation2 + $0x10] sm:$0xff]
        %v2238 = vld [vmem:[#allocation2 + $0x20] sm:$0xf]
        %v2239 = vld [vmem:[#allocation2 + $0x28] sm:$0xf]
        %v2240 = vld [vmem:[#allocation2 + $0x30] sm:$0xf]
        %2241 = vrot.lane.b32.xlu0 %v2126, 124
        %v2242 = vpop.permute.xlu0 %2241
        %2249 = vrot.lane.b32.xlu0 %v2235, 15
        %v2250 = vpop.permute.xlu0 %2249
        %2251 = vrot.lane.b32.xlu0 %v2236, 15
        %v2252 = vpop.permute.xlu0 %2251
        %2253 = vrot.lane.b32.xlu0 %v2237, 15
        %v2254 = vpop.permute.xlu0 %2253
        %2255 = vrot.lane.b32.xlu0 %v2238, 15
        %v2256 = vpop.permute.xlu0 %2255
        %2257 = vrot.lane.b32.xlu0 %v2239, 15
        %v2258 = vpop.permute.xlu0 %2257
        %2259 = vrot.lane.b32.xlu0 %v2240, 15
        %v2260 = vpop.permute.xlu0 %2259
        %v2261 = vsel %vm471, %v2250, %v2252
        %v2262 = vsel %vm471, %v2252, %v2254
        %v2263 = vsel %vm471, %v2256, %v2258
        %v2264 = vsel %vm471, %v2258, %v2260
        %v2267 = vsel %vm2038, %v2242, 0
        %v2269 = vsel %vm283, %v2263, 0
        %v2271 = vsel %vm283, %v2264, 0
        %2273 = vmatprep.subr.mxu0 0.0
        %2274 = vmatpush1.msra.mxu0 0.0
        %2275 = vmatprep.subr.mxu0 0.0
        %2276 = vmatpush1.msra.mxu0 0.0
        %2277 = vmatprep.subr.mxu0 0.0
        %2278 = vmatpush1.msra.mxu0 0.0
        %2279 = vmatprep.subr.mxu0 0.0
        %2280 = vmatpush1.msra.mxu0 0.0
        %2281 = vmatprep.subr.mxu0 0.0
        %2282 = vmatpush1.msra.mxu0 0.0
        %2283 = vmatprep.subr.mxu0 0.0
        %2284 = vmatpush1.msra.mxu0 0.0
        %2285 = vmatprep.subr.mxu0 0.0
        %2286 = vmatpush1.msra.mxu0 0.0
        %2287 = vmatprep.subr.mxu0 0.0
        %2288 = vmatpush1.msra.mxu0 0.0
        %2289 = vmatprep.subr.mxu0 0.0
        %2290 = vmatpush1.msra.mxu0 0.0
        %2291 = vmatprep.subr.mxu0 0.0
        %2292 = vmatpush1.msra.mxu0 0.0
        %2293 = vmatprep.subr.mxu0 0.0
        %2294 = vmatpush1.msra.mxu0 0.0
        %2295 = vmatprep.subr.mxu0 0.0
        %2296 = vmatpush1.msra.mxu0 0.0
        %2297 = vmatprep.subr.mxu0 0.0
        %2298 = vmatpush1.msra.mxu0 0.0
        %2299 = vmatprep.subr.mxu0 0.0
        %2300 = vmatpush1.msra.mxu0 0.0
        %2301 = vmatprep.subr.mxu0 %v2271
        %2302 = vmatpush1.msra.mxu0 %v2269
        %2303 = vmatprep.subr.mxu0 %v2262
        %2304 = vmatpush1.msra.mxu0 %v2261
        %2305 = vmatprep.subr.mxu0 0.0
        %2306 = vmatpush2.msra.mxu0 0.0
        %2307 = vmatprep.subr.mxu0 0.0
        %2308 = vmatpush2.msra.mxu0 0.0
        %2309 = vmatprep.subr.mxu0 0.0
        %2310 = vmatpush2.msra.mxu0 0.0
        %2311 = vmatprep.subr.mxu0 0.0
        %2312 = vmatpush2.msra.mxu0 0.0
        %2313 = vmatprep.subr.mxu0 0.0
        %2314 = vmatpush2.msra.mxu0 0.0
        %2315 = vmatprep.subr.mxu0 0.0
        %2316 = vmatpush2.msra.mxu0 0.0
        %2317 = vmatprep.subr.mxu0 0.0
        %2318 = vmatpush2.msra.mxu0 0.0
        %2319 = vmatprep.subr.mxu0 0.0
        %2320 = vmatpush2.msra.mxu0 0.0
        %2321 = vmatprep.subr.mxu0 0.0
        %2322 = vmatpush2.msra.mxu0 0.0
        %2323 = vmatprep.subr.mxu0 0.0
        %2324 = vmatpush2.msra.mxu0 0.0
        %2325 = vmatprep.subr.mxu0 0.0
        %2326 = vmatpush2.msra.mxu0 0.0
        %2327 = vmatprep.subr.mxu0 0.0
        %2328 = vmatpush2.msra.mxu0 0.0
        %2329 = vmatprep.subr.mxu0 0.0
        %2330 = vmatpush2.msra.mxu0 0.0
        %2331 = vmatprep.subr.mxu0 0.0
        %2332 = vmatpush2.msra.mxu0 0.0
        %2333 = vmatprep.subr.mxu0 0.0
        %2334 = vmatpush2.msra.mxu0 0.0
        %2335 = vmatprep.subr.mxu0 0.0
        %2336 = vmatpush2.msra.mxu0 0.0
        %2337 = vmatprep.mubr.f32.mxu0 0.0
        %2338 = vmatmul.mubr.f32.gmra.mxu0 %v2267
        %v2339 = vpop.f32.mrf.mxu0
        %v2340 = vadd.f32 0.0, %v2339
        %v2341 = vpop.f32.mrf.mxu0
        %v2342 = vadd.f32 0.0, %v2341
        %2343 = vdwg.mxu0
        %v2344 = vsel %vm553, %v2340, 0.0
        %v2345 = vsel %vm554, %v2342, 0.0
        %v2346 = vadd.f32 %v2233, %v2344
        %v2347 = vadd.f32 %v2234, %v2345
        %v2348 = vld [vmem:[#allocation2] sm:$0xff]
        %v2349 = vld [vmem:[#allocation2 + $0x8] sm:$0xff]
        %v2350 = vld [vmem:[#allocation2 + $0x10] sm:$0xff]
        %v2351 = vld [vmem:[#allocation2 + $0x20] sm:$0xf]
        %v2352 = vld [vmem:[#allocation2 + $0x28] sm:$0xf]
        %v2353 = vld [vmem:[#allocation2 + $0x30] sm:$0xf]
        %2354 = vrot.lane.b32.xlu0 %v2126, 112
        %v2355 = vpop.permute.xlu0 %2354
        %2362 = vrot.lane.b32.xlu0 %v2348, 1
        %v2363 = vpop.permute.xlu0 %2362
        %2364 = vrot.lane.b32.xlu0 %v2349, 1
        %v2365 = vpop.permute.xlu0 %2364
        %2366 = vrot.lane.b32.xlu0 %v2350, 1
        %v2367 = vpop.permute.xlu0 %2366
        %2368 = vrot.lane.b32.xlu0 %v2351, 1
        %v2369 = vpop.permute.xlu0 %2368
        %2370 = vrot.lane.b32.xlu0 %v2352, 1
        %v2371 = vpop.permute.xlu0 %2370
        %2372 = vrot.lane.b32.xlu0 %v2353, 1
        %v2373 = vpop.permute.xlu0 %2372
        %v2374 = vsel %vm573, %v2363, %v2365
        %v2375 = vsel %vm573, %v2365, %v2367
        %v2376 = vsel %vm573, %v2369, %v2371
        %v2377 = vsel %vm573, %v2371, %v2373
        %v2380 = vsel %vm2038, %v2355, 0
        %v2382 = vsel %vm283, %v2376, 0
        %v2384 = vsel %vm283, %v2377, 0
        %2386 = vmatprep.subr.mxu0 0.0
        %2387 = vmatpush1.msra.mxu0 0.0
        %2388 = vmatprep.subr.mxu0 0.0
        %2389 = vmatpush1.msra.mxu0 0.0
        %2390 = vmatprep.subr.mxu0 0.0
        %2391 = vmatpush1.msra.mxu0 0.0
        %2392 = vmatprep.subr.mxu0 0.0
        %2393 = vmatpush1.msra.mxu0 0.0
        %2394 = vmatprep.subr.mxu0 0.0
        %2395 = vmatpush1.msra.mxu0 0.0
        %2396 = vmatprep.subr.mxu0 0.0
        %2397 = vmatpush1.msra.mxu0 0.0
        %2398 = vmatprep.subr.mxu0 0.0
        %2399 = vmatpush1.msra.mxu0 0.0
        %2400 = vmatprep.subr.mxu0 0.0
        %2401 = vmatpush1.msra.mxu0 0.0
        %2402 = vmatprep.subr.mxu0 0.0
        %2403 = vmatpush1.msra.mxu0 0.0
        %2404 = vmatprep.subr.mxu0 0.0
        %2405 = vmatpush1.msra.mxu0 0.0
        %2406 = vmatprep.subr.mxu0 0.0
        %2407 = vmatpush1.msra.mxu0 0.0
        %2408 = vmatprep.subr.mxu0 0.0
        %2409 = vmatpush1.msra.mxu0 0.0
        %2410 = vmatprep.subr.mxu0 0.0
        %2411 = vmatpush1.msra.mxu0 0.0
        %2412 = vmatprep.subr.mxu0 0.0
        %2413 = vmatpush1.msra.mxu0 0.0
        %2414 = vmatprep.subr.mxu0 %v2384
        %2415 = vmatpush1.msra.mxu0 %v2382
        %2416 = vmatprep.subr.mxu0 %v2375
        %2417 = vmatpush1.msra.mxu0 %v2374
        %2418 = vmatprep.subr.mxu0 0.0
        %2419 = vmatpush2.msra.mxu0 0.0
        %2420 = vmatprep.subr.mxu0 0.0
        %2421 = vmatpush2.msra.mxu0 0.0
        %2422 = vmatprep.subr.mxu0 0.0
        %2423 = vmatpush2.msra.mxu0 0.0
        %2424 = vmatprep.subr.mxu0 0.0
        %2425 = vmatpush2.msra.mxu0 0.0
        %2426 = vmatprep.subr.mxu0 0.0
        %2427 = vmatpush2.msra.mxu0 0.0
        %2428 = vmatprep.subr.mxu0 0.0
        %2429 = vmatpush2.msra.mxu0 0.0
        %2430 = vmatprep.subr.mxu0 0.0
        %2431 = vmatpush2.msra.mxu0 0.0
        %2432 = vmatprep.subr.mxu0 0.0
        %2433 = vmatpush2.msra.mxu0 0.0
        %2434 = vmatprep.subr.mxu0 0.0
        %2435 = vmatpush2.msra.mxu0 0.0
        %2436 = vmatprep.subr.mxu0 0.0
        %2437 = vmatpush2.msra.mxu0 0.0
        %2438 = vmatprep.subr.mxu0 0.0
        %2439 = vmatpush2.msra.mxu0 0.0
        %2440 = vmatprep.subr.mxu0 0.0
        %2441 = vmatpush2.msra.mxu0 0.0
        %2442 = vmatprep.subr.mxu0 0.0
        %2443 = vmatpush2.msra.mxu0 0.0
        %2444 = vmatprep.subr.mxu0 0.0
        %2445 = vmatpush2.msra.mxu0 0.0
        %2446 = vmatprep.subr.mxu0 0.0
        %2447 = vmatpush2.msra.mxu0 0.0
        %2448 = vmatprep.subr.mxu0 0.0
        %2449 = vmatpush2.msra.mxu0 0.0
        %2450 = vmatprep.mubr.f32.mxu0 0.0
        %2451 = vmatmul.mubr.f32.gmra.mxu0 %v2380
        %v2452 = vpop.f32.mrf.mxu0
        %v2453 = vadd.f32 0.0, %v2452
        %v2454 = vpop.f32.mrf.mxu0
        %v2455 = vadd.f32 0.0, %v2454
        %2456 = vdwg.mxu0
        %v2457 = vsel %vm361, %v2453, 0.0
        %v2458 = vsel %vm362, %v2455, 0.0
        %v2459 = vadd.f32 %v2346, %v2457
        %v2460 = vadd.f32 %v2347, %v2458
        %v2461 = vld [vmem:[#allocation2 + $0x8] sm:$0xff]
        %v2462 = vld [vmem:[#allocation2 + $0x10] sm:$0xff]
        %v2463 = vld [vmem:[#allocation2 + $0x28] sm:$0xf]
        %v2464 = vld [vmem:[#allocation2 + $0x30] sm:$0xf]
        %2465 = vrot.lane.b32.xlu0 %v2126, 100
        %v2466 = vpop.permute.xlu0 %2465
        %v2467 = vsel %vm2038, %v2466, 0
        %v2470 = vsel %vm283, %v2463, 0
        %v2473 = vsel %vm283, %v2464, 0
        %2475 = vmatprep.subr.mxu0 0.0
        %2476 = vmatpush1.msra.mxu0 0.0
        %2477 = vmatprep.subr.mxu0 0.0
        %2478 = vmatpush1.msra.mxu0 0.0
        %2479 = vmatprep.subr.mxu0 0.0
        %2480 = vmatpush1.msra.mxu0 0.0
        %2481 = vmatprep.subr.mxu0 0.0
        %2482 = vmatpush1.msra.mxu0 0.0
        %2483 = vmatprep.subr.mxu0 0.0
        %2484 = vmatpush1.msra.mxu0 0.0
        %2485 = vmatprep.subr.mxu0 0.0
        %2486 = vmatpush1.msra.mxu0 0.0
        %2487 = vmatprep.subr.mxu0 0.0
        %2488 = vmatpush1.msra.mxu0 0.0
        %2489 = vmatprep.subr.mxu0 0.0
        %2490 = vmatpush1.msra.mxu0 0.0
        %2491 = vmatprep.subr.mxu0 0.0
        %2492 = vmatpush1.msra.mxu0 0.0
        %2493 = vmatprep.subr.mxu0 0.0
        %2494 = vmatpush1.msra.mxu0 0.0
        %2495 = vmatprep.subr.mxu0 0.0
        %2496 = vmatpush1.msra.mxu0 0.0
        %2497 = vmatprep.subr.mxu0 0.0
        %2498 = vmatpush1.msra.mxu0 0.0
        %2499 = vmatprep.subr.mxu0 0.0
        %2500 = vmatpush1.msra.mxu0 0.0
        %2501 = vmatprep.subr.mxu0 0.0
        %2502 = vmatpush1.msra.mxu0 0.0
        %2503 = vmatprep.subr.mxu0 %v2473
        %2504 = vmatpush1.msra.mxu0 %v2470
        %2505 = vmatprep.subr.mxu0 %v2462
        %2506 = vmatpush1.msra.mxu0 %v2461
        %2507 = vmatprep.subr.mxu0 0.0
        %2508 = vmatpush2.msra.mxu0 0.0
        %2509 = vmatprep.subr.mxu0 0.0
        %2510 = vmatpush2.msra.mxu0 0.0
        %2511 = vmatprep.subr.mxu0 0.0
        %2512 = vmatpush2.msra.mxu0 0.0
        %2513 = vmatprep.subr.mxu0 0.0
        %2514 = vmatpush2.msra.mxu0 0.0
        %2515 = vmatprep.subr.mxu0 0.0
        %2516 = vmatpush2.msra.mxu0 0.0
        %2517 = vmatprep.subr.mxu0 0.0
        %2518 = vmatpush2.msra.mxu0 0.0
        %2519 = vmatprep.subr.mxu0 0.0
        %2520 = vmatpush2.msra.mxu0 0.0
        %2521 = vmatprep.subr.mxu0 0.0
        %2522 = vmatpush2.msra.mxu0 0.0
        %2523 = vmatprep.subr.mxu0 0.0
        %2524 = vmatpush2.msra.mxu0 0.0
        %2525 = vmatprep.subr.mxu0 0.0
        %2526 = vmatpush2.msra.mxu0 0.0
        %2527 = vmatprep.subr.mxu0 0.0
        %2528 = vmatpush2.msra.mxu0 0.0
        %2529 = vmatprep.subr.mxu0 0.0
        %2530 = vmatpush2.msra.mxu0 0.0
        %2531 = vmatprep.subr.mxu0 0.0
        %2532 = vmatpush2.msra.mxu0 0.0
        %2533 = vmatprep.subr.mxu0 0.0
        %2534 = vmatpush2.msra.mxu0 0.0
        %2535 = vmatprep.subr.mxu0 0.0
        %2536 = vmatpush2.msra.mxu0 0.0
        %2537 = vmatprep.subr.mxu0 0.0
        %2538 = vmatpush2.msra.mxu0 0.0
        %2539 = vmatprep.mubr.f32.mxu0 0.0
        %2540 = vmatmul.mubr.f32.gmra.mxu0 %v2467
        %v2541 = vpop.f32.mrf.mxu0
        %v2542 = vadd.f32 0.0, %v2541
        %v2543 = vpop.f32.mrf.mxu0
        %v2544 = vadd.f32 0.0, %v2543
        %2545 = vdwg.mxu0
        %v2546 = vadd.f32 %v2459, %v2542
        %v2547 = vadd.f32 %v2460, %v2544
        %v2548 = vld [vmem:[#allocation2 + $0x8] sm:$0xff]
        %v2549 = vld [vmem:[#allocation2 + $0x10] sm:$0xff]
        %v2550 = vld [vmem:[#allocation2 + $0x18] sm:$0xff]
        %v2551 = vld [vmem:[#allocation2 + $0x28] sm:$0xf]
        %v2552 = vld [vmem:[#allocation2 + $0x30] sm:$0xf]
        %v2553 = vld [vmem:[#allocation2 + $0x38] sm:$0xf]
        %2554 = vrot.lane.b32.xlu0 %v2126, 88
        %v2555 = vpop.permute.xlu0 %2554
        %2562 = vrot.lane.b32.xlu0 %v2548, 127
        %v2563 = vpop.permute.xlu0 %2562
        %2564 = vrot.lane.b32.xlu0 %v2549, 127
        %v2565 = vpop.permute.xlu0 %2564
        %2566 = vrot.lane.b32.xlu0 %v2550, 127
        %v2567 = vpop.permute.xlu0 %2566
        %2568 = vrot.lane.b32.xlu0 %v2551, 127
        %v2569 = vpop.permute.xlu0 %2568
        %2570 = vrot.lane.b32.xlu0 %v2552, 127
        %v2571 = vpop.permute.xlu0 %2570
        %2572 = vrot.lane.b32.xlu0 %v2553, 127
        %v2573 = vpop.permute.xlu0 %2572
        %v2574 = vsel %vm756, %v2563, %v2565
        %v2575 = vsel %vm756, %v2565, %v2567
        %v2576 = vsel %vm756, %v2569, %v2571
        %v2577 = vsel %vm756, %v2571, %v2573
        %v2580 = vsel %vm2038, %v2555, 0
        %v2582 = vsel %vm283, %v2576, 0
        %v2584 = vsel %vm283, %v2577, 0
        %2586 = vmatprep.subr.mxu0 0.0
        %2587 = vmatpush1.msra.mxu0 0.0
        %2588 = vmatprep.subr.mxu0 0.0
        %2589 = vmatpush1.msra.mxu0 0.0
        %2590 = vmatprep.subr.mxu0 0.0
        %2591 = vmatpush1.msra.mxu0 0.0
        %2592 = vmatprep.subr.mxu0 0.0
        %2593 = vmatpush1.msra.mxu0 0.0
        %2594 = vmatprep.subr.mxu0 0.0
        %2595 = vmatpush1.msra.mxu0 0.0
        %2596 = vmatprep.subr.mxu0 0.0
        %2597 = vmatpush1.msra.mxu0 0.0
        %2598 = vmatprep.subr.mxu0 0.0
        %2599 = vmatpush1.msra.mxu0 0.0
        %2600 = vmatprep.subr.mxu0 0.0
        %2601 = vmatpush1.msra.mxu0 0.0
        %2602 = vmatprep.subr.mxu0 0.0
        %2603 = vmatpush1.msra.mxu0 0.0
        %2604 = vmatprep.subr.mxu0 0.0
        %2605 = vmatpush1.msra.mxu0 0.0
        %2606 = vmatprep.subr.mxu0 0.0
        %2607 = vmatpush1.msra.mxu0 0.0
        %2608 = vmatprep.subr.mxu0 0.0
        %2609 = vmatpush1.msra.mxu0 0.0
        %2610 = vmatprep.subr.mxu0 0.0
        %2611 = vmatpush1.msra.mxu0 0.0
        %2612 = vmatprep.subr.mxu0 0.0
        %2613 = vmatpush1.msra.mxu0 0.0
        %2614 = vmatprep.subr.mxu0 %v2584
        %2615 = vmatpush1.msra.mxu0 %v2582
        %2616 = vmatprep.subr.mxu0 %v2575
        %2617 = vmatpush1.msra.mxu0 %v2574
        %2618 = vmatprep.subr.mxu0 0.0
        %2619 = vmatpush2.msra.mxu0 0.0
        %2620 = vmatprep.subr.mxu0 0.0
        %2621 = vmatpush2.msra.mxu0 0.0
        %2622 = vmatprep.subr.mxu0 0.0
        %2623 = vmatpush2.msra.mxu0 0.0
        %2624 = vmatprep.subr.mxu0 0.0
        %2625 = vmatpush2.msra.mxu0 0.0
        %2626 = vmatprep.subr.mxu0 0.0
        %2627 = vmatpush2.msra.mxu0 0.0
        %2628 = vmatprep.subr.mxu0 0.0
        %2629 = vmatpush2.msra.mxu0 0.0
        %2630 = vmatprep.subr.mxu0 0.0
        %2631 = vmatpush2.msra.mxu0 0.0
        %2632 = vmatprep.subr.mxu0 0.0
        %2633 = vmatpush2.msra.mxu0 0.0
        %2634 = vmatprep.subr.mxu0 0.0
        %2635 = vmatpush2.msra.mxu0 0.0
        %2636 = vmatprep.subr.mxu0 0.0
        %2637 = vmatpush2.msra.mxu0 0.0
        %2638 = vmatprep.subr.mxu0 0.0
        %2639 = vmatpush2.msra.mxu0 0.0
        %2640 = vmatprep.subr.mxu0 0.0
        %2641 = vmatpush2.msra.mxu0 0.0
        %2642 = vmatprep.subr.mxu0 0.0
        %2643 = vmatpush2.msra.mxu0 0.0
        %2644 = vmatprep.subr.mxu0 0.0
        %2645 = vmatpush2.msra.mxu0 0.0
        %2646 = vmatprep.subr.mxu0 0.0
        %2647 = vmatpush2.msra.mxu0 0.0
        %2648 = vmatprep.subr.mxu0 0.0
        %2649 = vmatpush2.msra.mxu0 0.0
        %2650 = vmatprep.mubr.f32.mxu0 0.0
        %2651 = vmatmul.mubr.f32.gmra.mxu0 %v2580
        %v2652 = vpop.f32.mrf.mxu0
        %v2653 = vadd.f32 0.0, %v2652
        %v2654 = vpop.f32.mrf.mxu0
        %v2655 = vadd.f32 0.0, %v2654
        %2656 = vdwg.mxu0
        %v2657 = vsel %vm553, %v2653, 0.0
        %v2658 = vsel %vm554, %v2655, 0.0
        %v2659 = vadd.f32 %v2546, %v2657
        %v2660 = vadd.f32 %v2547, %v2658
        %v2661 = vld [vmem:[#allocation2 + $0x8] sm:$0xff]
        %v2662 = vld [vmem:[#allocation2 + $0x10] sm:$0xff]
        %v2663 = vld [vmem:[#allocation2 + $0x18] sm:$0xff]
        %v2664 = vld [vmem:[#allocation2 + $0x28] sm:$0xf]
        %v2665 = vld [vmem:[#allocation2 + $0x30] sm:$0xf]
        %v2666 = vld [vmem:[#allocation2 + $0x38] sm:$0xf]
        %2667 = vrot.lane.b32.xlu0 %v2126, 76
        %v2668 = vpop.permute.xlu0 %2667
        %2675 = vrot.lane.b32.xlu0 %v2661, 113
        %v2676 = vpop.permute.xlu0 %2675
        %2677 = vrot.lane.b32.xlu0 %v2662, 113
        %v2678 = vpop.permute.xlu0 %2677
        %2679 = vrot.lane.b32.xlu0 %v2663, 113
        %v2680 = vpop.permute.xlu0 %2679
        %2681 = vrot.lane.b32.xlu0 %v2664, 113
        %v2682 = vpop.permute.xlu0 %2681
        %2683 = vrot.lane.b32.xlu0 %v2665, 113
        %v2684 = vpop.permute.xlu0 %2683
        %2685 = vrot.lane.b32.xlu0 %v2666, 113
        %v2686 = vpop.permute.xlu0 %2685
        %v2687 = vsel %vm854, %v2676, %v2678
        %v2688 = vsel %vm854, %v2678, %v2680
        %v2689 = vsel %vm854, %v2682, %v2684
        %v2690 = vsel %vm854, %v2684, %v2686
        %v2693 = vsel %vm2038, %v2668, 0
        %v2695 = vsel %vm283, %v2689, 0
        %v2697 = vsel %vm283, %v2690, 0
        %2699 = vmatprep.subr.mxu0 0.0
        %2700 = vmatpush1.msra.mxu0 0.0
        %2701 = vmatprep.subr.mxu0 0.0
        %2702 = vmatpush1.msra.mxu0 0.0
        %2703 = vmatprep.subr.mxu0 0.0
        %2704 = vmatpush1.msra.mxu0 0.0
        %2705 = vmatprep.subr.mxu0 0.0
        %2706 = vmatpush1.msra.mxu0 0.0
        %2707 = vmatprep.subr.mxu0 0.0
        %2708 = vmatpush1.msra.mxu0 0.0
        %2709 = vmatprep.subr.mxu0 0.0
        %2710 = vmatpush1.msra.mxu0 0.0
        %2711 = vmatprep.subr.mxu0 0.0
        %2712 = vmatpush1.msra.mxu0 0.0
        %2713 = vmatprep.subr.mxu0 0.0
        %2714 = vmatpush1.msra.mxu0 0.0
        %2715 = vmatprep.subr.mxu0 0.0
        %2716 = vmatpush1.msra.mxu0 0.0
        %2717 = vmatprep.subr.mxu0 0.0
        %2718 = vmatpush1.msra.mxu0 0.0
        %2719 = vmatprep.subr.mxu0 0.0
        %2720 = vmatpush1.msra.mxu0 0.0
        %2721 = vmatprep.subr.mxu0 0.0
        %2722 = vmatpush1.msra.mxu0 0.0
        %2723 = vmatprep.subr.mxu0 0.0
        %2724 = vmatpush1.msra.mxu0 0.0
        %2725 = vmatprep.subr.mxu0 0.0
        %2726 = vmatpush1.msra.mxu0 0.0
        %2727 = vmatprep.subr.mxu0 %v2697
        %2728 = vmatpush1.msra.mxu0 %v2695
        %2729 = vmatprep.subr.mxu0 %v2688
        %2730 = vmatpush1.msra.mxu0 %v2687
        %2731 = vmatprep.subr.mxu0 0.0
        %2732 = vmatpush2.msra.mxu0 0.0
        %2733 = vmatprep.subr.mxu0 0.0
        %2734 = vmatpush2.msra.mxu0 0.0
        %2735 = vmatprep.subr.mxu0 0.0
        %2736 = vmatpush2.msra.mxu0 0.0
        %2737 = vmatprep.subr.mxu0 0.0
        %2738 = vmatpush2.msra.mxu0 0.0
        %2739 = vmatprep.subr.mxu0 0.0
        %2740 = vmatpush2.msra.mxu0 0.0
        %2741 = vmatprep.subr.mxu0 0.0
        %2742 = vmatpush2.msra.mxu0 0.0
        %2743 = vmatprep.subr.mxu0 0.0
        %2744 = vmatpush2.msra.mxu0 0.0
        %2745 = vmatprep.subr.mxu0 0.0
        %2746 = vmatpush2.msra.mxu0 0.0
        %2747 = vmatprep.subr.mxu0 0.0
        %2748 = vmatpush2.msra.mxu0 0.0
        %2749 = vmatprep.subr.mxu0 0.0
        %2750 = vmatpush2.msra.mxu0 0.0
        %2751 = vmatprep.subr.mxu0 0.0
        %2752 = vmatpush2.msra.mxu0 0.0
        %2753 = vmatprep.subr.mxu0 0.0
        %2754 = vmatpush2.msra.mxu0 0.0
        %2755 = vmatprep.subr.mxu0 0.0
        %2756 = vmatpush2.msra.mxu0 0.0
        %2757 = vmatprep.subr.mxu0 0.0
        %2758 = vmatpush2.msra.mxu0 0.0
        %2759 = vmatprep.subr.mxu0 0.0
        %2760 = vmatpush2.msra.mxu0 0.0
        %2761 = vmatprep.subr.mxu0 0.0
        %2762 = vmatpush2.msra.mxu0 0.0
        %2763 = vmatprep.mubr.f32.mxu0 0.0
        %2764 = vmatmul.mubr.f32.gmra.mxu0 %v2693
        %v2765 = vpop.f32.mrf.mxu0
        %v2766 = vadd.f32 0.0, %v2765
        %v2767 = vpop.f32.mrf.mxu0
        %v2768 = vadd.f32 0.0, %v2767
        %2769 = vdwg.mxu0
        %v2770 = vsel %vm361, %v2766, 0.0
        %v2771 = vsel %vm362, %v2768, 0.0
        %v2772 = vadd.f32 %v2659, %v2770
        %v2773 = vadd.f32 %v2660, %v2771
        %v2774 = vld [vmem:[#allocation2 + $0x8] sm:$0xff]
        %v2775 = vld [vmem:[#allocation2 + $0x10] sm:$0xff]
        %v2776 = vld [vmem:[#allocation2 + $0x18] sm:$0xff]
        %v2777 = vld [vmem:[#allocation2 + $0x28] sm:$0xf]
        %v2778 = vld [vmem:[#allocation2 + $0x30] sm:$0xf]
        %v2779 = vld [vmem:[#allocation2 + $0x38] sm:$0xf]
        %2780 = vrot.lane.b32.xlu0 %v2126, 64
        %v2781 = vpop.permute.xlu0 %2780
        %2788 = vrot.lane.b32.xlu0 %v2774, 112
        %v2789 = vpop.permute.xlu0 %2788
        %2790 = vrot.lane.b32.xlu0 %v2775, 112
        %v2791 = vpop.permute.xlu0 %2790
        %2792 = vrot.lane.b32.xlu0 %v2776, 112
        %v2793 = vpop.permute.xlu0 %2792
        %2794 = vrot.lane.b32.xlu0 %v2777, 112
        %v2795 = vpop.permute.xlu0 %2794
        %2796 = vrot.lane.b32.xlu0 %v2778, 112
        %v2797 = vpop.permute.xlu0 %2796
        %2798 = vrot.lane.b32.xlu0 %v2779, 112
        %v2799 = vpop.permute.xlu0 %2798
        %v2800 = vsel %vm952, %v2789, %v2791
        %v2801 = vsel %vm952, %v2791, %v2793
        %v2802 = vsel %vm952, %v2795, %v2797
        %v2803 = vsel %vm952, %v2797, %v2799
        %v2806 = vsel %vm2038, %v2781, 0
        %v2808 = vsel %vm283, %v2802, 0
        %v2810 = vsel %vm283, %v2803, 0
        %2812 = vmatprep.subr.mxu0 0.0
        %2813 = vmatpush1.msra.mxu0 0.0
        %2814 = vmatprep.subr.mxu0 0.0
        %2815 = vmatpush1.msra.mxu0 0.0
        %2816 = vmatprep.subr.mxu0 0.0
        %2817 = vmatpush1.msra.mxu0 0.0
        %2818 = vmatprep.subr.mxu0 0.0
        %2819 = vmatpush1.msra.mxu0 0.0
        %2820 = vmatprep.subr.mxu0 0.0
        %2821 = vmatpush1.msra.mxu0 0.0
        %2822 = vmatprep.subr.mxu0 0.0
        %2823 = vmatpush1.msra.mxu0 0.0
        %2824 = vmatprep.subr.mxu0 0.0
        %2825 = vmatpush1.msra.mxu0 0.0
        %2826 = vmatprep.subr.mxu0 0.0
        %2827 = vmatpush1.msra.mxu0 0.0
        %2828 = vmatprep.subr.mxu0 0.0
        %2829 = vmatpush1.msra.mxu0 0.0
        %2830 = vmatprep.subr.mxu0 0.0
        %2831 = vmatpush1.msra.mxu0 0.0
        %2832 = vmatprep.subr.mxu0 0.0
        %2833 = vmatpush1.msra.mxu0 0.0
        %2834 = vmatprep.subr.mxu0 0.0
        %2835 = vmatpush1.msra.mxu0 0.0
        %2836 = vmatprep.subr.mxu0 0.0
        %2837 = vmatpush1.msra.mxu0 0.0
        %2838 = vmatprep.subr.mxu0 0.0
        %2839 = vmatpush1.msra.mxu0 0.0
        %2840 = vmatprep.subr.mxu0 %v2810
        %2841 = vmatpush1.msra.mxu0 %v2808
        %2842 = vmatprep.subr.mxu0 %v2801
        %2843 = vmatpush1.msra.mxu0 %v2800
        %2844 = vmatprep.subr.mxu0 0.0
        %2845 = vmatpush2.msra.mxu0 0.0
        %2846 = vmatprep.subr.mxu0 0.0
        %2847 = vmatpush2.msra.mxu0 0.0
        %2848 = vmatprep.subr.mxu0 0.0
        %2849 = vmatpush2.msra.mxu0 0.0
        %2850 = vmatprep.subr.mxu0 0.0
        %2851 = vmatpush2.msra.mxu0 0.0
        %2852 = vmatprep.subr.mxu0 0.0
        %2853 = vmatpush2.msra.mxu0 0.0
        %2854 = vmatprep.subr.mxu0 0.0
        %2855 = vmatpush2.msra.mxu0 0.0
        %2856 = vmatprep.subr.mxu0 0.0
        %2857 = vmatpush2.msra.mxu0 0.0
        %2858 = vmatprep.subr.mxu0 0.0
        %2859 = vmatpush2.msra.mxu0 0.0
        %2860 = vmatprep.subr.mxu0 0.0
        %2861 = vmatpush2.msra.mxu0 0.0
        %2862 = vmatprep.subr.mxu0 0.0
        %2863 = vmatpush2.msra.mxu0 0.0
        %2864 = vmatprep.subr.mxu0 0.0
        %2865 = vmatpush2.msra.mxu0 0.0
        %2866 = vmatprep.subr.mxu0 0.0
        %2867 = vmatpush2.msra.mxu0 0.0
        %2868 = vmatprep.subr.mxu0 0.0
        %2869 = vmatpush2.msra.mxu0 0.0
        %2870 = vmatprep.subr.mxu0 0.0
        %2871 = vmatpush2.msra.mxu0 0.0
        %2872 = vmatprep.subr.mxu0 0.0
        %2873 = vmatpush2.msra.mxu0 0.0
        %2874 = vmatprep.subr.mxu0 0.0
        %2875 = vmatpush2.msra.mxu0 0.0
        %2876 = vmatprep.mubr.f32.mxu0 0.0
        %2877 = vmatmul.mubr.f32.gmra.mxu0 %v2806
        %v2878 = vpop.f32.mrf.mxu0
        %v2879 = vadd.f32 0.0, %v2878
        %v2880 = vpop.f32.mrf.mxu0
        %v2881 = vadd.f32 0.0, %v2880
        %2882 = vdwg.mxu0
        %v2883 = vadd.f32 %v2772, %v2879
        %v2884 = vadd.f32 %v2773, %v2881
        %v2885 = vld [vmem:[#allocation2 + $0x8] sm:$0xff]
        %v2886 = vld [vmem:[#allocation2 + $0x10] sm:$0xff]
        %v2887 = vld [vmem:[#allocation2 + $0x18] sm:$0xff]
        %v2888 = vld [vmem:[#allocation2 + $0x28] sm:$0xf]
        %v2889 = vld [vmem:[#allocation2 + $0x30] sm:$0xf]
        %v2890 = vld [vmem:[#allocation2 + $0x38] sm:$0xf]
        %2891 = vrot.lane.b32.xlu0 %v2126, 52
        %v2892 = vpop.permute.xlu0 %2891
        %2899 = vrot.lane.b32.xlu0 %v2885, 111
        %v2900 = vpop.permute.xlu0 %2899
        %2901 = vrot.lane.b32.xlu0 %v2886, 111
        %v2902 = vpop.permute.xlu0 %2901
        %2903 = vrot.lane.b32.xlu0 %v2887, 111
        %v2904 = vpop.permute.xlu0 %2903
        %2905 = vrot.lane.b32.xlu0 %v2888, 111
        %v2906 = vpop.permute.xlu0 %2905
        %2907 = vrot.lane.b32.xlu0 %v2889, 111
        %v2908 = vpop.permute.xlu0 %2907
        %2909 = vrot.lane.b32.xlu0 %v2890, 111
        %v2910 = vpop.permute.xlu0 %2909
        %v2911 = vsel %vm1048, %v2900, %v2902
        %v2912 = vsel %vm1048, %v2902, %v2904
        %v2913 = vsel %vm1048, %v2906, %v2908
        %v2914 = vsel %vm1048, %v2908, %v2910
        %v2917 = vsel %vm2038, %v2892, 0
        %v2919 = vsel %vm283, %v2913, 0
        %v2921 = vsel %vm283, %v2914, 0
        %2923 = vmatprep.subr.mxu0 0.0
        %2924 = vmatpush1.msra.mxu0 0.0
        %2925 = vmatprep.subr.mxu0 0.0
        %2926 = vmatpush1.msra.mxu0 0.0
        %2927 = vmatprep.subr.mxu0 0.0
        %2928 = vmatpush1.msra.mxu0 0.0
        %2929 = vmatprep.subr.mxu0 0.0
        %2930 = vmatpush1.msra.mxu0 0.0
        %2931 = vmatprep.subr.mxu0 0.0
        %2932 = vmatpush1.msra.mxu0 0.0
        %2933 = vmatprep.subr.mxu0 0.0
        %2934 = vmatpush1.msra.mxu0 0.0
        %2935 = vmatprep.subr.mxu0 0.0
        %2936 = vmatpush1.msra.mxu0 0.0
        %2937 = vmatprep.subr.mxu0 0.0
        %2938 = vmatpush1.msra.mxu0 0.0
        %2939 = vmatprep.subr.mxu0 0.0
        %2940 = vmatpush1.msra.mxu0 0.0
        %2941 = vmatprep.subr.mxu0 0.0
        %2942 = vmatpush1.msra.mxu0 0.0
        %2943 = vmatprep.subr.mxu0 0.0
        %2944 = vmatpush1.msra.mxu0 0.0
        %2945 = vmatprep.subr.mxu0 0.0
        %2946 = vmatpush1.msra.mxu0 0.0
        %2947 = vmatprep.subr.mxu0 0.0
        %2948 = vmatpush1.msra.mxu0 0.0
        %2949 = vmatprep.subr.mxu0 0.0
        %2950 = vmatpush1.msra.mxu0 0.0
        %2951 = vmatprep.subr.mxu0 %v2921
        %2952 = vmatpush1.msra.mxu0 %v2919
        %2953 = vmatprep.subr.mxu0 %v2912
        %2954 = vmatpush1.msra.mxu0 %v2911
        %2955 = vmatprep.subr.mxu0 0.0
        %2956 = vmatpush2.msra.mxu0 0.0
        %2957 = vmatprep.subr.mxu0 0.0
        %2958 = vmatpush2.msra.mxu0 0.0
        %2959 = vmatprep.subr.mxu0 0.0
        %2960 = vmatpush2.msra.mxu0 0.0
        %2961 = vmatprep.subr.mxu0 0.0
        %2962 = vmatpush2.msra.mxu0 0.0
        %2963 = vmatprep.subr.mxu0 0.0
        %2964 = vmatpush2.msra.mxu0 0.0
        %2965 = vmatprep.subr.mxu0 0.0
        %2966 = vmatpush2.msra.mxu0 0.0
        %2967 = vmatprep.subr.mxu0 0.0
        %2968 = vmatpush2.msra.mxu0 0.0
        %2969 = vmatprep.subr.mxu0 0.0
        %2970 = vmatpush2.msra.mxu0 0.0
        %2971 = vmatprep.subr.mxu0 0.0
        %2972 = vmatpush2.msra.mxu0 0.0
        %2973 = vmatprep.subr.mxu0 0.0
        %2974 = vmatpush2.msra.mxu0 0.0
        %2975 = vmatprep.subr.mxu0 0.0
        %2976 = vmatpush2.msra.mxu0 0.0
        %2977 = vmatprep.subr.mxu0 0.0
        %2978 = vmatpush2.msra.mxu0 0.0
        %2979 = vmatprep.subr.mxu0 0.0
        %2980 = vmatpush2.msra.mxu0 0.0
        %2981 = vmatprep.subr.mxu0 0.0
        %2982 = vmatpush2.msra.mxu0 0.0
        %2983 = vmatprep.subr.mxu0 0.0
        %2984 = vmatpush2.msra.mxu0 0.0
        %2985 = vmatprep.subr.mxu0 0.0
        %2986 = vmatpush2.msra.mxu0 0.0
        %2987 = vmatprep.mubr.f32.mxu0 0.0
        %2988 = vmatmul.mubr.f32.gmra.mxu0 %v2917
        %v2989 = vpop.f32.mrf.mxu0
        %v2990 = vadd.f32 0.0, %v2989
        %v2991 = vpop.f32.mrf.mxu0
        %v2992 = vadd.f32 0.0, %v2991
        %2993 = vdwg.mxu0
        %v2994 = vsel %vm553, %v2990, 0.0
        %v2995 = vsel %vm554, %v2992, 0.0
        %v2996 = vadd.f32 %v2883, %v2994
        %v2997 = vadd.f32 %v2884, %v2995
        %v2998 = vld [vmem:[#allocation8] sm:$0xf]
        %3000 = vset.pattern.permute.xlu0 2
        %3001 = vperm.xlu0 %3000, %v2998
        %v3002 = vpop.permute.xlu0 %3001
        %v3004 = vadd.f32 %v2996, %v3002
        %v3005 = vadd.f32 %v2997, %v3002
        %vm3006 = vcmp.ge.f32.partialorder %v3004, 0.0
        %vm3007 = vcmp.ge.f32.partialorder %v3005, 0.0
        %v3008 = vmul.f32 %v3004, 0.01
        %v3009 = vmul.f32 %v3005, 0.01
        %v3010 = vsel %vm3006, %v3004, %v3008
        %v3011 = vsel %vm3007, %v3005, %v3009
        %v3014 = vrot.slane %v3010, 4
        %v3015 = vrot.slane %v3011, 4
        %3018 = vst [vmem:[#allocation2 + $0x28] sm:$0xf0] %v3014
        %3019 = vst [vmem:[#allocation2 + $0x30] sm:$0xf0] %v3015
        %v3020 = vld [vmem:[#allocation2] sm:$0xff]
        %v3021 = vld [vmem:[#allocation2 + $0x8] sm:$0xff]
        %v3022 = vld [vmem:[#allocation2 + $0x10] sm:$0xff]
        %v3023 = vld [vmem:[#allocation2 + $0x20] sm:$0xff]
        %v3024 = vld [vmem:[#allocation2 + $0x28] sm:$0xff]
        %v3025 = vld [vmem:[#allocation2 + $0x30] sm:$0xff]
        %3026 = vrot.lane.b32.xlu0 %v2126, 40
        %v3027 = vpop.permute.xlu0 %3026
        %3034 = vrot.lane.b32.xlu0 %v3020, 17
        %v3035 = vpop.permute.xlu0 %3034
        %3036 = vrot.lane.b32.xlu0 %v3021, 17
        %v3037 = vpop.permute.xlu0 %3036
        %3038 = vrot.lane.b32.xlu0 %v3022, 17
        %v3039 = vpop.permute.xlu0 %3038
        %3040 = vrot.lane.b32.xlu0 %v3023, 17
        %v3041 = vpop.permute.xlu0 %3040
        %3042 = vrot.lane.b32.xlu0 %v3024, 17
        %v3043 = vpop.permute.xlu0 %3042
        %3044 = vrot.lane.b32.xlu0 %v3025, 17
        %v3045 = vpop.permute.xlu0 %3044
        %v3046 = vsel %vm276, %v3035, %v3037
        %v3047 = vsel %vm276, %v3037, %v3039
        %v3048 = vsel %vm276, %v3041, %v3043
        %v3049 = vsel %vm276, %v3043, %v3045
        %v3054 = vsel %vm375, %v3027, 0
        %3056 = vmatprep.subr.mxu0 0.0
        %3057 = vmatpush1.msra.mxu0 0.0
        %3058 = vmatprep.subr.mxu0 0.0
        %3059 = vmatpush1.msra.mxu0 0.0
        %3060 = vmatprep.subr.mxu0 0.0
        %3061 = vmatpush1.msra.mxu0 0.0
        %3062 = vmatprep.subr.mxu0 0.0
        %3063 = vmatpush1.msra.mxu0 0.0
        %3064 = vmatprep.subr.mxu0 0.0
        %3065 = vmatpush1.msra.mxu0 0.0
        %3066 = vmatprep.subr.mxu0 0.0
        %3067 = vmatpush1.msra.mxu0 0.0
        %3068 = vmatprep.subr.mxu0 0.0
        %3069 = vmatpush1.msra.mxu0 0.0
        %3070 = vmatprep.subr.mxu0 0.0
        %3071 = vmatpush1.msra.mxu0 0.0
        %3072 = vmatprep.subr.mxu0 0.0
        %3073 = vmatpush1.msra.mxu0 0.0
        %3074 = vmatprep.subr.mxu0 0.0
        %3075 = vmatpush1.msra.mxu0 0.0
        %3076 = vmatprep.subr.mxu0 0.0
        %3077 = vmatpush1.msra.mxu0 0.0
        %3078 = vmatprep.subr.mxu0 0.0
        %3079 = vmatpush1.msra.mxu0 0.0
        %3080 = vmatprep.subr.mxu0 0.0
        %3081 = vmatpush1.msra.mxu0 0.0
        %3082 = vmatprep.subr.mxu0 0.0
        %3083 = vmatpush1.msra.mxu0 0.0
        %3084 = vmatprep.subr.mxu0 %v3049
        %3085 = vmatpush1.msra.mxu0 %v3048
        %3086 = vmatprep.subr.mxu0 %v3047
        %3087 = vmatpush1.msra.mxu0 %v3046
        %3088 = vmatprep.subr.mxu0 0.0
        %3089 = vmatpush2.msra.mxu0 0.0
        %3090 = vmatprep.subr.mxu0 0.0
        %3091 = vmatpush2.msra.mxu0 0.0
        %3092 = vmatprep.subr.mxu0 0.0
        %3093 = vmatpush2.msra.mxu0 0.0
        %3094 = vmatprep.subr.mxu0 0.0
        %3095 = vmatpush2.msra.mxu0 0.0
        %3096 = vmatprep.subr.mxu0 0.0
        %3097 = vmatpush2.msra.mxu0 0.0
        %3098 = vmatprep.subr.mxu0 0.0
        %3099 = vmatpush2.msra.mxu0 0.0
        %3100 = vmatprep.subr.mxu0 0.0
        %3101 = vmatpush2.msra.mxu0 0.0
        %3102 = vmatprep.subr.mxu0 0.0
        %3103 = vmatpush2.msra.mxu0 0.0
        %3104 = vmatprep.subr.mxu0 0.0
        %3105 = vmatpush2.msra.mxu0 0.0
        %3106 = vmatprep.subr.mxu0 0.0
        %3107 = vmatpush2.msra.mxu0 0.0
        %3108 = vmatprep.subr.mxu0 0.0
        %3109 = vmatpush2.msra.mxu0 0.0
        %3110 = vmatprep.subr.mxu0 0.0
        %3111 = vmatpush2.msra.mxu0 0.0
        %3112 = vmatprep.subr.mxu0 0.0
        %3113 = vmatpush2.msra.mxu0 0.0
        %3114 = vmatprep.subr.mxu0 0.0
        %3115 = vmatpush2.msra.mxu0 0.0
        %3116 = vmatprep.subr.mxu0 0.0
        %3117 = vmatpush2.msra.mxu0 0.0
        %3118 = vmatprep.subr.mxu0 0.0
        %3119 = vmatpush2.msra.mxu0 0.0
        %3120 = vmatprep.mubr.f32.mxu0 0.0
        %3121 = vmatmul.mubr.f32.gmra.mxu0 %v3054
        %v3122 = vpop.f32.mrf.mxu0
        %v3123 = vadd.f32 0.0, %v3122
        %v3124 = vpop.f32.mrf.mxu0
        %v3125 = vadd.f32 0.0, %v3124
        %3126 = vdwg.mxu0
        %v3127 = vsel %vm361, %v3123, 0.0
        %v3128 = vsel %vm362, %v3125, 0.0
        %v3129 = vadd.f32 %v3127, 0.0
        %v3130 = vadd.f32 %v3128, 0.0
        %v3131 = vld [vmem:[#allocation2] sm:$0xff]
        %v3132 = vld [vmem:[#allocation2 + $0x8] sm:$0xff]
        %v3133 = vld [vmem:[#allocation2 + $0x10] sm:$0xff]
        %v3134 = vld [vmem:[#allocation2 + $0x20] sm:$0xff]
        %v3135 = vld [vmem:[#allocation2 + $0x28] sm:$0xff]
        %v3136 = vld [vmem:[#allocation2 + $0x30] sm:$0xff]
        %3137 = vrot.lane.b32.xlu0 %v2126, 24
        %v3138 = vpop.permute.xlu0 %3137
        %3145 = vrot.lane.b32.xlu0 %v3131, 16
        %v3146 = vpop.permute.xlu0 %3145
        %3147 = vrot.lane.b32.xlu0 %v3132, 16
        %v3148 = vpop.permute.xlu0 %3147
        %3149 = vrot.lane.b32.xlu0 %v3133, 16
        %v3150 = vpop.permute.xlu0 %3149
        %3151 = vrot.lane.b32.xlu0 %v3134, 16
        %v3152 = vpop.permute.xlu0 %3151
        %3153 = vrot.lane.b32.xlu0 %v3135, 16
        %v3154 = vpop.permute.xlu0 %3153
        %3155 = vrot.lane.b32.xlu0 %v3136, 16
        %v3156 = vpop.permute.xlu0 %3155
        %v3157 = vsel %vm375, %v3146, %v3148
        %v3158 = vsel %vm375, %v3148, %v3150
        %v3159 = vsel %vm375, %v3152, %v3154
        %v3160 = vsel %vm375, %v3154, %v3156
        %v3165 = vsel %vm375, %v3138, 0
        %3167 = vmatprep.subr.mxu0 0.0
        %3168 = vmatpush1.msra.mxu0 0.0
        %3169 = vmatprep.subr.mxu0 0.0
        %3170 = vmatpush1.msra.mxu0 0.0
        %3171 = vmatprep.subr.mxu0 0.0
        %3172 = vmatpush1.msra.mxu0 0.0
        %3173 = vmatprep.subr.mxu0 0.0
        %3174 = vmatpush1.msra.mxu0 0.0
        %3175 = vmatprep.subr.mxu0 0.0
        %3176 = vmatpush1.msra.mxu0 0.0
        %3177 = vmatprep.subr.mxu0 0.0
        %3178 = vmatpush1.msra.mxu0 0.0
        %3179 = vmatprep.subr.mxu0 0.0
        %3180 = vmatpush1.msra.mxu0 0.0
        %3181 = vmatprep.subr.mxu0 0.0
        %3182 = vmatpush1.msra.mxu0 0.0
        %3183 = vmatprep.subr.mxu0 0.0
        %3184 = vmatpush1.msra.mxu0 0.0
        %3185 = vmatprep.subr.mxu0 0.0
        %3186 = vmatpush1.msra.mxu0 0.0
        %3187 = vmatprep.subr.mxu0 0.0
        %3188 = vmatpush1.msra.mxu0 0.0
        %3189 = vmatprep.subr.mxu0 0.0
        %3190 = vmatpush1.msra.mxu0 0.0
        %3191 = vmatprep.subr.mxu0 0.0
        %3192 = vmatpush1.msra.mxu0 0.0
        %3193 = vmatprep.subr.mxu0 0.0
        %3194 = vmatpush1.msra.mxu0 0.0
        %3195 = vmatprep.subr.mxu0 %v3160
        %3196 = vmatpush1.msra.mxu0 %v3159
        %3197 = vmatprep.subr.mxu0 %v3158
        %3198 = vmatpush1.msra.mxu0 %v3157
        %3199 = vmatprep.subr.mxu0 0.0
        %3200 = vmatpush2.msra.mxu0 0.0
        %3201 = vmatprep.subr.mxu0 0.0
        %3202 = vmatpush2.msra.mxu0 0.0
        %3203 = vmatprep.subr.mxu0 0.0
        %3204 = vmatpush2.msra.mxu0 0.0
        %3205 = vmatprep.subr.mxu0 0.0
        %3206 = vmatpush2.msra.mxu0 0.0
        %3207 = vmatprep.subr.mxu0 0.0
        %3208 = vmatpush2.msra.mxu0 0.0
        %3209 = vmatprep.subr.mxu0 0.0
        %3210 = vmatpush2.msra.mxu0 0.0
        %3211 = vmatprep.subr.mxu0 0.0
        %3212 = vmatpush2.msra.mxu0 0.0
        %3213 = vmatprep.subr.mxu0 0.0
        %3214 = vmatpush2.msra.mxu0 0.0
        %3215 = vmatprep.subr.mxu0 0.0
        %3216 = vmatpush2.msra.mxu0 0.0
        %3217 = vmatprep.subr.mxu0 0.0
        %3218 = vmatpush2.msra.mxu0 0.0
        %3219 = vmatprep.subr.mxu0 0.0
        %3220 = vmatpush2.msra.mxu0 0.0
        %3221 = vmatprep.subr.mxu0 0.0
        %3222 = vmatpush2.msra.mxu0 0.0
        %3223 = vmatprep.subr.mxu0 0.0
        %3224 = vmatpush2.msra.mxu0 0.0
        %3225 = vmatprep.subr.mxu0 0.0
        %3226 = vmatpush2.msra.mxu0 0.0
        %3227 = vmatprep.subr.mxu0 0.0
        %3228 = vmatpush2.msra.mxu0 0.0
        %3229 = vmatprep.subr.mxu0 0.0
        %3230 = vmatpush2.msra.mxu0 0.0
        %3231 = vmatprep.mubr.f32.mxu0 0.0
        %3232 = vmatmul.mubr.f32.gmra.mxu0 %v3165
        %v3233 = vpop.f32.mrf.mxu0
        %v3234 = vadd.f32 0.0, %v3233
        %v3235 = vpop.f32.mrf.mxu0
        %v3236 = vadd.f32 0.0, %v3235
        %3237 = vdwg.mxu0
        %v3238 = vadd.f32 %v3129, %v3234
        %v3239 = vadd.f32 %v3130, %v3236
        %v3240 = vld [vmem:[#allocation2] sm:$0xff]
        %v3241 = vld [vmem:[#allocation2 + $0x8] sm:$0xff]
        %v3242 = vld [vmem:[#allocation2 + $0x10] sm:$0xff]
        %v3243 = vld [vmem:[#allocation2 + $0x20] sm:$0xff]
        %v3244 = vld [vmem:[#allocation2 + $0x28] sm:$0xff]
        %v3245 = vld [vmem:[#allocation2 + $0x30] sm:$0xff]
        %3247 = vrot.lane.b32.xlu0 %v231, 8
        %v3248 = vpop.permute.xlu0 %3247
        %v3249 = vsel %vm1172, %v2130, %v3248
        %3256 = vrot.lane.b32.xlu0 %v3240, 15
        %v3257 = vpop.permute.xlu0 %3256
        %3258 = vrot.lane.b32.xlu0 %v3241, 15
        %v3259 = vpop.permute.xlu0 %3258
        %3260 = vrot.lane.b32.xlu0 %v3242, 15
        %v3261 = vpop.permute.xlu0 %3260
        %3262 = vrot.lane.b32.xlu0 %v3243, 15
        %v3263 = vpop.permute.xlu0 %3262
        %3264 = vrot.lane.b32.xlu0 %v3244, 15
        %v3265 = vpop.permute.xlu0 %3264
        %3266 = vrot.lane.b32.xlu0 %v3245, 15
        %v3267 = vpop.permute.xlu0 %3266
        %v3268 = vsel %vm471, %v3257, %v3259
        %v3269 = vsel %vm471, %v3259, %v3261
        %v3270 = vsel %vm471, %v3263, %v3265
        %v3271 = vsel %vm471, %v3265, %v3267
        %v3276 = vsel %vm375, %v3249, 0
        %3278 = vmatprep.subr.mxu0 0.0
        %3279 = vmatpush1.msra.mxu0 0.0
        %3280 = vmatprep.subr.mxu0 0.0
        %3281 = vmatpush1.msra.mxu0 0.0
        %3282 = vmatprep.subr.mxu0 0.0
        %3283 = vmatpush1.msra.mxu0 0.0
        %3284 = vmatprep.subr.mxu0 0.0
        %3285 = vmatpush1.msra.mxu0 0.0
        %3286 = vmatprep.subr.mxu0 0.0
        %3287 = vmatpush1.msra.mxu0 0.0
        %3288 = vmatprep.subr.mxu0 0.0
        %3289 = vmatpush1.msra.mxu0 0.0
        %3290 = vmatprep.subr.mxu0 0.0
        %3291 = vmatpush1.msra.mxu0 0.0
        %3292 = vmatprep.subr.mxu0 0.0
        %3293 = vmatpush1.msra.mxu0 0.0
        %3294 = vmatprep.subr.mxu0 0.0
        %3295 = vmatpush1.msra.mxu0 0.0
        %3296 = vmatprep.subr.mxu0 0.0
        %3297 = vmatpush1.msra.mxu0 0.0
        %3298 = vmatprep.subr.mxu0 0.0
        %3299 = vmatpush1.msra.mxu0 0.0
        %3300 = vmatprep.subr.mxu0 0.0
        %3301 = vmatpush1.msra.mxu0 0.0
        %3302 = vmatprep.subr.mxu0 0.0
        %3303 = vmatpush1.msra.mxu0 0.0
        %3304 = vmatprep.subr.mxu0 0.0
        %3305 = vmatpush1.msra.mxu0 0.0
        %3306 = vmatprep.subr.mxu0 %v3271
        %3307 = vmatpush1.msra.mxu0 %v3270
        %3308 = vmatprep.subr.mxu0 %v3269
        %3309 = vmatpush1.msra.mxu0 %v3268
        %3310 = vmatprep.subr.mxu0 0.0
        %3311 = vmatpush2.msra.mxu0 0.0
        %3312 = vmatprep.subr.mxu0 0.0
        %3313 = vmatpush2.msra.mxu0 0.0
        %3314 = vmatprep.subr.mxu0 0.0
        %3315 = vmatpush2.msra.mxu0 0.0
        %3316 = vmatprep.subr.mxu0 0.0
        %3317 = vmatpush2.msra.mxu0 0.0
        %3318 = vmatprep.subr.mxu0 0.0
        %3319 = vmatpush2.msra.mxu0 0.0
        %3320 = vmatprep.subr.mxu0 0.0
        %3321 = vmatpush2.msra.mxu0 0.0
        %3322 = vmatprep.subr.mxu0 0.0
        %3323 = vmatpush2.msra.mxu0 0.0
        %3324 = vmatprep.subr.mxu0 0.0
        %3325 = vmatpush2.msra.mxu0 0.0
        %3326 = vmatprep.subr.mxu0 0.0
        %3327 = vmatpush2.msra.mxu0 0.0
        %3328 = vmatprep.subr.mxu0 0.0
        %3329 = vmatpush2.msra.mxu0 0.0
        %3330 = vmatprep.subr.mxu0 0.0
        %3331 = vmatpush2.msra.mxu0 0.0
        %3332 = vmatprep.subr.mxu0 0.0
        %3333 = vmatpush2.msra.mxu0 0.0
        %3334 = vmatprep.subr.mxu0 0.0
        %3335 = vmatpush2.msra.mxu0 0.0
        %3336 = vmatprep.subr.mxu0 0.0
        %3337 = vmatpush2.msra.mxu0 0.0
        %3338 = vmatprep.subr.mxu0 0.0
        %3339 = vmatpush2.msra.mxu0 0.0
        %3340 = vmatprep.subr.mxu0 0.0
        %3341 = vmatpush2.msra.mxu0 0.0
        %3342 = vmatprep.mubr.f32.mxu0 0.0
        %3343 = vmatmul.mubr.f32.gmra.mxu0 %v3276
        %v3344 = vpop.f32.mrf.mxu0
        %v3345 = vadd.f32 0.0, %v3344
        %v3346 = vpop.f32.mrf.mxu0
        %v3347 = vadd.f32 0.0, %v3346
        %3348 = vdwg.mxu0
        %v3349 = vsel %vm553, %v3345, 0.0
        %v3350 = vsel %vm554, %v3347, 0.0
        %v3351 = vadd.f32 %v3238, %v3349
        %v3352 = vadd.f32 %v3239, %v3350
        %v3353 = vld [vmem:[#allocation2] sm:$0xff]
        %v3354 = vld [vmem:[#allocation2 + $0x8] sm:$0xff]
        %v3355 = vld [vmem:[#allocation2 + $0x10] sm:$0xff]
        %v3356 = vld [vmem:[#allocation2 + $0x20] sm:$0xff]
        %v3357 = vld [vmem:[#allocation2 + $0x28] sm:$0xff]
        %v3358 = vld [vmem:[#allocation2 + $0x30] sm:$0xff]
        %3359 = vrot.lane.b32.xlu0 %v231, 120
        %v3360 = vpop.permute.xlu0 %3359
        %3367 = vrot.lane.b32.xlu0 %v3353, 1
        %v3368 = vpop.permute.xlu0 %3367
        %3369 = vrot.lane.b32.xlu0 %v3354, 1
        %v3370 = vpop.permute.xlu0 %3369
        %3371 = vrot.lane.b32.xlu0 %v3355, 1
        %v3372 = vpop.permute.xlu0 %3371
        %3373 = vrot.lane.b32.xlu0 %v3356, 1
        %v3374 = vpop.permute.xlu0 %3373
        %3375 = vrot.lane.b32.xlu0 %v3357, 1
        %v3376 = vpop.permute.xlu0 %3375
        %3377 = vrot.lane.b32.xlu0 %v3358, 1
        %v3378 = vpop.permute.xlu0 %3377
        %v3379 = vsel %vm573, %v3368, %v3370
        %v3380 = vsel %vm573, %v3370, %v3372
        %v3381 = vsel %vm573, %v3374, %v3376
        %v3382 = vsel %vm573, %v3376, %v3378
        %v3387 = vsel %vm375, %v3360, 0
        %3389 = vmatprep.subr.mxu0 0.0
        %3390 = vmatpush1.msra.mxu0 0.0
        %3391 = vmatprep.subr.mxu0 0.0
        %3392 = vmatpush1.msra.mxu0 0.0
        %3393 = vmatprep.subr.mxu0 0.0
        %3394 = vmatpush1.msra.mxu0 0.0
        %3395 = vmatprep.subr.mxu0 0.0
        %3396 = vmatpush1.msra.mxu0 0.0
        %3397 = vmatprep.subr.mxu0 0.0
        %3398 = vmatpush1.msra.mxu0 0.0
        %3399 = vmatprep.subr.mxu0 0.0
        %3400 = vmatpush1.msra.mxu0 0.0
        %3401 = vmatprep.subr.mxu0 0.0
        %3402 = vmatpush1.msra.mxu0 0.0
        %3403 = vmatprep.subr.mxu0 0.0
        %3404 = vmatpush1.msra.mxu0 0.0
        %3405 = vmatprep.subr.mxu0 0.0
        %3406 = vmatpush1.msra.mxu0 0.0
        %3407 = vmatprep.subr.mxu0 0.0
        %3408 = vmatpush1.msra.mxu0 0.0
        %3409 = vmatprep.subr.mxu0 0.0
        %3410 = vmatpush1.msra.mxu0 0.0
        %3411 = vmatprep.subr.mxu0 0.0
        %3412 = vmatpush1.msra.mxu0 0.0
        %3413 = vmatprep.subr.mxu0 0.0
        %3414 = vmatpush1.msra.mxu0 0.0
        %3415 = vmatprep.subr.mxu0 0.0
        %3416 = vmatpush1.msra.mxu0 0.0
        %3417 = vmatprep.subr.mxu0 %v3382
        %3418 = vmatpush1.msra.mxu0 %v3381
        %3419 = vmatprep.subr.mxu0 %v3380
        %3420 = vmatpush1.msra.mxu0 %v3379
        %3421 = vmatprep.subr.mxu0 0.0
        %3422 = vmatpush2.msra.mxu0 0.0
        %3423 = vmatprep.subr.mxu0 0.0
        %3424 = vmatpush2.msra.mxu0 0.0
        %3425 = vmatprep.subr.mxu0 0.0
        %3426 = vmatpush2.msra.mxu0 0.0
        %3427 = vmatprep.subr.mxu0 0.0
        %3428 = vmatpush2.msra.mxu0 0.0
        %3429 = vmatprep.subr.mxu0 0.0
        %3430 = vmatpush2.msra.mxu0 0.0
        %3431 = vmatprep.subr.mxu0 0.0
        %3432 = vmatpush2.msra.mxu0 0.0
        %3433 = vmatprep.subr.mxu0 0.0
        %3434 = vmatpush2.msra.mxu0 0.0
        %3435 = vmatprep.subr.mxu0 0.0
        %3436 = vmatpush2.msra.mxu0 0.0
        %3437 = vmatprep.subr.mxu0 0.0
        %3438 = vmatpush2.msra.mxu0 0.0
        %3439 = vmatprep.subr.mxu0 0.0
        %3440 = vmatpush2.msra.mxu0 0.0
        %3441 = vmatprep.subr.mxu0 0.0
        %3442 = vmatpush2.msra.mxu0 0.0
        %3443 = vmatprep.subr.mxu0 0.0
        %3444 = vmatpush2.msra.mxu0 0.0
        %3445 = vmatprep.subr.mxu0 0.0
        %3446 = vmatpush2.msra.mxu0 0.0
        %3447 = vmatprep.subr.mxu0 0.0
        %3448 = vmatpush2.msra.mxu0 0.0
        %3449 = vmatprep.subr.mxu0 0.0
        %3450 = vmatpush2.msra.mxu0 0.0
        %3451 = vmatprep.subr.mxu0 0.0
        %3452 = vmatpush2.msra.mxu0 0.0
        %3453 = vmatprep.mubr.f32.mxu0 0.0
        %3454 = vmatmul.mubr.f32.gmra.mxu0 %v3387
        %v3455 = vpop.f32.mrf.mxu0
        %v3456 = vadd.f32 0.0, %v3455
        %v3457 = vpop.f32.mrf.mxu0
        %v3458 = vadd.f32 0.0, %v3457
        %3459 = vdwg.mxu0
        %v3460 = vsel %vm361, %v3456, 0.0
        %v3461 = vsel %vm362, %v3458, 0.0
        %v3462 = vadd.f32 %v3351, %v3460
        %v3463 = vadd.f32 %v3352, %v3461
        %v3464 = vld [vmem:[#allocation2 + $0x8] sm:$0xff]
        %v3465 = vld [vmem:[#allocation2 + $0x10] sm:$0xff]
        %v3466 = vld [vmem:[#allocation2 + $0x28] sm:$0xff]
        %v3467 = vld [vmem:[#allocation2 + $0x30] sm:$0xff]
        %3468 = vrot.lane.b32.xlu0 %v231, 104
        %v3469 = vpop.permute.xlu0 %3468
        %v3470 = vsel %vm375, %v3469, 0
        %3472 = vmatprep.subr.mxu0 0.0
        %3473 = vmatpush1.msra.mxu0 0.0
        %3474 = vmatprep.subr.mxu0 0.0
        %3475 = vmatpush1.msra.mxu0 0.0
        %3476 = vmatprep.subr.mxu0 0.0
        %3477 = vmatpush1.msra.mxu0 0.0
        %3478 = vmatprep.subr.mxu0 0.0
        %3479 = vmatpush1.msra.mxu0 0.0
        %3480 = vmatprep.subr.mxu0 0.0
        %3481 = vmatpush1.msra.mxu0 0.0
        %3482 = vmatprep.subr.mxu0 0.0
        %3483 = vmatpush1.msra.mxu0 0.0
        %3484 = vmatprep.subr.mxu0 0.0
        %3485 = vmatpush1.msra.mxu0 0.0
        %3486 = vmatprep.subr.mxu0 0.0
        %3487 = vmatpush1.msra.mxu0 0.0
        %3488 = vmatprep.subr.mxu0 0.0
        %3489 = vmatpush1.msra.mxu0 0.0
        %3490 = vmatprep.subr.mxu0 0.0
        %3491 = vmatpush1.msra.mxu0 0.0
        %3492 = vmatprep.subr.mxu0 0.0
        %3493 = vmatpush1.msra.mxu0 0.0
        %3494 = vmatprep.subr.mxu0 0.0
        %3495 = vmatpush1.msra.mxu0 0.0
        %3496 = vmatprep.subr.mxu0 0.0
        %3497 = vmatpush1.msra.mxu0 0.0
        %3498 = vmatprep.subr.mxu0 0.0
        %3499 = vmatpush1.msra.mxu0 0.0
        %3500 = vmatprep.subr.mxu0 %v3467
        %3501 = vmatpush1.msra.mxu0 %v3466
        %3502 = vmatprep.subr.mxu0 %v3465
        %3503 = vmatpush1.msra.mxu0 %v3464
        %3504 = vmatprep.subr.mxu0 0.0
        %3505 = vmatpush2.msra.mxu0 0.0
        %3506 = vmatprep.subr.mxu0 0.0
        %3507 = vmatpush2.msra.mxu0 0.0
        %3508 = vmatprep.subr.mxu0 0.0
        %3509 = vmatpush2.msra.mxu0 0.0
        %3510 = vmatprep.subr.mxu0 0.0
        %3511 = vmatpush2.msra.mxu0 0.0
        %3512 = vmatprep.subr.mxu0 0.0
        %3513 = vmatpush2.msra.mxu0 0.0
        %3514 = vmatprep.subr.mxu0 0.0
        %3515 = vmatpush2.msra.mxu0 0.0
        %3516 = vmatprep.subr.mxu0 0.0
        %3517 = vmatpush2.msra.mxu0 0.0
        %3518 = vmatprep.subr.mxu0 0.0
        %3519 = vmatpush2.msra.mxu0 0.0
        %3520 = vmatprep.subr.mxu0 0.0
        %3521 = vmatpush2.msra.mxu0 0.0
        %3522 = vmatprep.subr.mxu0 0.0
        %3523 = vmatpush2.msra.mxu0 0.0
        %3524 = vmatprep.subr.mxu0 0.0
        %3525 = vmatpush2.msra.mxu0 0.0
        %3526 = vmatprep.subr.mxu0 0.0
        %3527 = vmatpush2.msra.mxu0 0.0
        %3528 = vmatprep.subr.mxu0 0.0
        %3529 = vmatpush2.msra.mxu0 0.0
        %3530 = vmatprep.subr.mxu0 0.0
        %3531 = vmatpush2.msra.mxu0 0.0
        %3532 = vmatprep.subr.mxu0 0.0
        %3533 = vmatpush2.msra.mxu0 0.0
        %3534 = vmatprep.subr.mxu0 0.0
        %3535 = vmatpush2.msra.mxu0 0.0
        %3536 = vmatprep.mubr.f32.mxu0 0.0
        %3537 = vmatmul.mubr.f32.gmra.mxu0 %v3470
        %v3538 = vpop.f32.mrf.mxu0
        %v3539 = vadd.f32 0.0, %v3538
        %v3540 = vpop.f32.mrf.mxu0
        %v3541 = vadd.f32 0.0, %v3540
        %3542 = vdwg.mxu0
        %v3543 = vadd.f32 %v3462, %v3539
        %v3544 = vadd.f32 %v3463, %v3541
        %v3545 = vld [vmem:[#allocation2 + $0x8] sm:$0xff]
        %v3546 = vld [vmem:[#allocation2 + $0x10] sm:$0xff]
        %v3547 = vld [vmem:[#allocation2 + $0x18] sm:$0xff]
        %v3548 = vld [vmem:[#allocation2 + $0x28] sm:$0xff]
        %v3549 = vld [vmem:[#allocation2 + $0x30] sm:$0xff]
        %v3550 = vld [vmem:[#allocation2 + $0x38] sm:$0xff]
        %3551 = vrot.lane.b32.xlu0 %v231, 88
        %v3552 = vpop.permute.xlu0 %3551
        %3559 = vrot.lane.b32.xlu0 %v3545, 127
        %v3560 = vpop.permute.xlu0 %3559
        %3561 = vrot.lane.b32.xlu0 %v3546, 127
        %v3562 = vpop.permute.xlu0 %3561
        %3563 = vrot.lane.b32.xlu0 %v3547, 127
        %v3564 = vpop.permute.xlu0 %3563
        %3565 = vrot.lane.b32.xlu0 %v3548, 127
        %v3566 = vpop.permute.xlu0 %3565
        %3567 = vrot.lane.b32.xlu0 %v3549, 127
        %v3568 = vpop.permute.xlu0 %3567
        %3569 = vrot.lane.b32.xlu0 %v3550, 127
        %v3570 = vpop.permute.xlu0 %3569
        %v3571 = vsel %vm756, %v3560, %v3562
        %v3572 = vsel %vm756, %v3562, %v3564
        %v3573 = vsel %vm756, %v3566, %v3568
        %v3574 = vsel %vm756, %v3568, %v3570
        %v3579 = vsel %vm375, %v3552, 0
        %3581 = vmatprep.subr.mxu0 0.0
        %3582 = vmatpush1.msra.mxu0 0.0
        %3583 = vmatprep.subr.mxu0 0.0
        %3584 = vmatpush1.msra.mxu0 0.0
        %3585 = vmatprep.subr.mxu0 0.0
        %3586 = vmatpush1.msra.mxu0 0.0
        %3587 = vmatprep.subr.mxu0 0.0
        %3588 = vmatpush1.msra.mxu0 0.0
        %3589 = vmatprep.subr.mxu0 0.0
        %3590 = vmatpush1.msra.mxu0 0.0
        %3591 = vmatprep.subr.mxu0 0.0
        %3592 = vmatpush1.msra.mxu0 0.0
        %3593 = vmatprep.subr.mxu0 0.0
        %3594 = vmatpush1.msra.mxu0 0.0
        %3595 = vmatprep.subr.mxu0 0.0
        %3596 = vmatpush1.msra.mxu0 0.0
        %3597 = vmatprep.subr.mxu0 0.0
        %3598 = vmatpush1.msra.mxu0 0.0
        %3599 = vmatprep.subr.mxu0 0.0
        %3600 = vmatpush1.msra.mxu0 0.0
        %3601 = vmatprep.subr.mxu0 0.0
        %3602 = vmatpush1.msra.mxu0 0.0
        %3603 = vmatprep.subr.mxu0 0.0
        %3604 = vmatpush1.msra.mxu0 0.0
        %3605 = vmatprep.subr.mxu0 0.0
        %3606 = vmatpush1.msra.mxu0 0.0
        %3607 = vmatprep.subr.mxu0 0.0
        %3608 = vmatpush1.msra.mxu0 0.0
        %3609 = vmatprep.subr.mxu0 %v3574
        %3610 = vmatpush1.msra.mxu0 %v3573
        %3611 = vmatprep.subr.mxu0 %v3572
        %3612 = vmatpush1.msra.mxu0 %v3571
        %3613 = vmatprep.subr.mxu0 0.0
        %3614 = vmatpush2.msra.mxu0 0.0
        %3615 = vmatprep.subr.mxu0 0.0
        %3616 = vmatpush2.msra.mxu0 0.0
        %3617 = vmatprep.subr.mxu0 0.0
        %3618 = vmatpush2.msra.mxu0 0.0
        %3619 = vmatprep.subr.mxu0 0.0
        %3620 = vmatpush2.msra.mxu0 0.0
        %3621 = vmatprep.subr.mxu0 0.0
        %3622 = vmatpush2.msra.mxu0 0.0
        %3623 = vmatprep.subr.mxu0 0.0
        %3624 = vmatpush2.msra.mxu0 0.0
        %3625 = vmatprep.subr.mxu0 0.0
        %3626 = vmatpush2.msra.mxu0 0.0
        %3627 = vmatprep.subr.mxu0 0.0
        %3628 = vmatpush2.msra.mxu0 0.0
        %3629 = vmatprep.subr.mxu0 0.0
        %3630 = vmatpush2.msra.mxu0 0.0
        %3631 = vmatprep.subr.mxu0 0.0
        %3632 = vmatpush2.msra.mxu0 0.0
        %3633 = vmatprep.subr.mxu0 0.0
        %3634 = vmatpush2.msra.mxu0 0.0
        %3635 = vmatprep.subr.mxu0 0.0
        %3636 = vmatpush2.msra.mxu0 0.0
        %3637 = vmatprep.subr.mxu0 0.0
        %3638 = vmatpush2.msra.mxu0 0.0
        %3639 = vmatprep.subr.mxu0 0.0
        %3640 = vmatpush2.msra.mxu0 0.0
        %3641 = vmatprep.subr.mxu0 0.0
        %3642 = vmatpush2.msra.mxu0 0.0
        %3643 = vmatprep.subr.mxu0 0.0
        %3644 = vmatpush2.msra.mxu0 0.0
        %3645 = vmatprep.mubr.f32.mxu0 0.0
        %3646 = vmatmul.mubr.f32.gmra.mxu0 %v3579
        %v3647 = vpop.f32.mrf.mxu0
        %v3648 = vadd.f32 0.0, %v3647
        %v3649 = vpop.f32.mrf.mxu0
        %v3650 = vadd.f32 0.0, %v3649
        %3651 = vdwg.mxu0
        %v3652 = vsel %vm553, %v3648, 0.0
        %v3653 = vsel %vm554, %v3650, 0.0
        %v3654 = vadd.f32 %v3543, %v3652
        %v3655 = vadd.f32 %v3544, %v3653
        %v3656 = vld [vmem:[#allocation2 + $0x8] sm:$0xff]
        %v3657 = vld [vmem:[#allocation2 + $0x10] sm:$0xff]
        %v3658 = vld [vmem:[#allocation2 + $0x18] sm:$0xff]
        %v3659 = vld [vmem:[#allocation2 + $0x28] sm:$0xff]
        %v3660 = vld [vmem:[#allocation2 + $0x30] sm:$0xff]
        %v3661 = vld [vmem:[#allocation2 + $0x38] sm:$0xff]
        %3662 = vrot.lane.b32.xlu0 %v231, 72
        %v3663 = vpop.permute.xlu0 %3662
        %3670 = vrot.lane.b32.xlu0 %v3656, 113
        %v3671 = vpop.permute.xlu0 %3670
        %3672 = vrot.lane.b32.xlu0 %v3657, 113
        %v3673 = vpop.permute.xlu0 %3672
        %3674 = vrot.lane.b32.xlu0 %v3658, 113
        %v3675 = vpop.permute.xlu0 %3674
        %3676 = vrot.lane.b32.xlu0 %v3659, 113
        %v3677 = vpop.permute.xlu0 %3676
        %3678 = vrot.lane.b32.xlu0 %v3660, 113
        %v3679 = vpop.permute.xlu0 %3678
        %3680 = vrot.lane.b32.xlu0 %v3661, 113
        %v3681 = vpop.permute.xlu0 %3680
        %v3682 = vsel %vm854, %v3671, %v3673
        %v3683 = vsel %vm854, %v3673, %v3675
        %v3684 = vsel %vm854, %v3677, %v3679
        %v3685 = vsel %vm854, %v3679, %v3681
        %v3690 = vsel %vm375, %v3663, 0
        %3692 = vmatprep.subr.mxu0 0.0
        %3693 = vmatpush1.msra.mxu0 0.0
        %3694 = vmatprep.subr.mxu0 0.0
        %3695 = vmatpush1.msra.mxu0 0.0
        %3696 = vmatprep.subr.mxu0 0.0
        %3697 = vmatpush1.msra.mxu0 0.0
        %3698 = vmatprep.subr.mxu0 0.0
        %3699 = vmatpush1.msra.mxu0 0.0
        %3700 = vmatprep.subr.mxu0 0.0
        %3701 = vmatpush1.msra.mxu0 0.0
        %3702 = vmatprep.subr.mxu0 0.0
        %3703 = vmatpush1.msra.mxu0 0.0
        %3704 = vmatprep.subr.mxu0 0.0
        %3705 = vmatpush1.msra.mxu0 0.0
        %3706 = vmatprep.subr.mxu0 0.0
        %3707 = vmatpush1.msra.mxu0 0.0
        %3708 = vmatprep.subr.mxu0 0.0
        %3709 = vmatpush1.msra.mxu0 0.0
        %3710 = vmatprep.subr.mxu0 0.0
        %3711 = vmatpush1.msra.mxu0 0.0
        %3712 = vmatprep.subr.mxu0 0.0
        %3713 = vmatpush1.msra.mxu0 0.0
        %3714 = vmatprep.subr.mxu0 0.0
        %3715 = vmatpush1.msra.mxu0 0.0
        %3716 = vmatprep.subr.mxu0 0.0
        %3717 = vmatpush1.msra.mxu0 0.0
        %3718 = vmatprep.subr.mxu0 0.0
        %3719 = vmatpush1.msra.mxu0 0.0
        %3720 = vmatprep.subr.mxu0 %v3685
        %3721 = vmatpush1.msra.mxu0 %v3684
        %3722 = vmatprep.subr.mxu0 %v3683
        %3723 = vmatpush1.msra.mxu0 %v3682
        %3724 = vmatprep.subr.mxu0 0.0
        %3725 = vmatpush2.msra.mxu0 0.0
        %3726 = vmatprep.subr.mxu0 0.0
        %3727 = vmatpush2.msra.mxu0 0.0
        %3728 = vmatprep.subr.mxu0 0.0
        %3729 = vmatpush2.msra.mxu0 0.0
        %3730 = vmatprep.subr.mxu0 0.0
        %3731 = vmatpush2.msra.mxu0 0.0
        %3732 = vmatprep.subr.mxu0 0.0
        %3733 = vmatpush2.msra.mxu0 0.0
        %3734 = vmatprep.subr.mxu0 0.0
        %3735 = vmatpush2.msra.mxu0 0.0
        %3736 = vmatprep.subr.mxu0 0.0
        %3737 = vmatpush2.msra.mxu0 0.0
        %3738 = vmatprep.subr.mxu0 0.0
        %3739 = vmatpush2.msra.mxu0 0.0
        %3740 = vmatprep.subr.mxu0 0.0
        %3741 = vmatpush2.msra.mxu0 0.0
        %3742 = vmatprep.subr.mxu0 0.0
        %3743 = vmatpush2.msra.mxu0 0.0
        %3744 = vmatprep.subr.mxu0 0.0
        %3745 = vmatpush2.msra.mxu0 0.0
        %3746 = vmatprep.subr.mxu0 0.0
        %3747 = vmatpush2.msra.mxu0 0.0
        %3748 = vmatprep.subr.mxu0 0.0
        %3749 = vmatpush2.msra.mxu0 0.0
        %3750 = vmatprep.subr.mxu0 0.0
        %3751 = vmatpush2.msra.mxu0 0.0
        %3752 = vmatprep.subr.mxu0 0.0
        %3753 = vmatpush2.msra.mxu0 0.0
        %3754 = vmatprep.subr.mxu0 0.0
        %3755 = vmatpush2.msra.mxu0 0.0
        %3756 = vmatprep.mubr.f32.mxu0 0.0
        %3757 = vmatmul.mubr.f32.gmra.mxu0 %v3690
        %v3758 = vpop.f32.mrf.mxu0
        %v3759 = vadd.f32 0.0, %v3758
        %v3760 = vpop.f32.mrf.mxu0
        %v3761 = vadd.f32 0.0, %v3760
        %3762 = vdwg.mxu0
        %v3763 = vsel %vm361, %v3759, 0.0
        %v3764 = vsel %vm362, %v3761, 0.0
        %v3765 = vadd.f32 %v3654, %v3763
        %v3766 = vadd.f32 %v3655, %v3764
        %v3767 = vld [vmem:[#allocation2 + $0x8] sm:$0xff]
        %v3768 = vld [vmem:[#allocation2 + $0x10] sm:$0xff]
        %v3769 = vld [vmem:[#allocation2 + $0x18] sm:$0xff]
        %v3770 = vld [vmem:[#allocation2 + $0x28] sm:$0xff]
        %v3771 = vld [vmem:[#allocation2 + $0x30] sm:$0xff]
        %v3772 = vld [vmem:[#allocation2 + $0x38] sm:$0xff]
        %3773 = vrot.lane.b32.xlu0 %v231, 56
        %v3774 = vpop.permute.xlu0 %3773
        %3781 = vrot.lane.b32.xlu0 %v3767, 112
        %v3782 = vpop.permute.xlu0 %3781
        %3783 = vrot.lane.b32.xlu0 %v3768, 112
        %v3784 = vpop.permute.xlu0 %3783
        %3785 = vrot.lane.b32.xlu0 %v3769, 112
        %v3786 = vpop.permute.xlu0 %3785
        %3787 = vrot.lane.b32.xlu0 %v3770, 112
        %v3788 = vpop.permute.xlu0 %3787
        %3789 = vrot.lane.b32.xlu0 %v3771, 112
        %v3790 = vpop.permute.xlu0 %3789
        %3791 = vrot.lane.b32.xlu0 %v3772, 112
        %v3792 = vpop.permute.xlu0 %3791
        %v3793 = vsel %vm952, %v3782, %v3784
        %v3794 = vsel %vm952, %v3784, %v3786
        %v3795 = vsel %vm952, %v3788, %v3790
        %v3796 = vsel %vm952, %v3790, %v3792
        %v3801 = vsel %vm375, %v3774, 0
        %3803 = vmatprep.subr.mxu0 0.0
        %3804 = vmatpush1.msra.mxu0 0.0
        %3805 = vmatprep.subr.mxu0 0.0
        %3806 = vmatpush1.msra.mxu0 0.0
        %3807 = vmatprep.subr.mxu0 0.0
        %3808 = vmatpush1.msra.mxu0 0.0
        %3809 = vmatprep.subr.mxu0 0.0
        %3810 = vmatpush1.msra.mxu0 0.0
        %3811 = vmatprep.subr.mxu0 0.0
        %3812 = vmatpush1.msra.mxu0 0.0
        %3813 = vmatprep.subr.mxu0 0.0
        %3814 = vmatpush1.msra.mxu0 0.0
        %3815 = vmatprep.subr.mxu0 0.0
        %3816 = vmatpush1.msra.mxu0 0.0
        %3817 = vmatprep.subr.mxu0 0.0
        %3818 = vmatpush1.msra.mxu0 0.0
        %3819 = vmatprep.subr.mxu0 0.0
        %3820 = vmatpush1.msra.mxu0 0.0
        %3821 = vmatprep.subr.mxu0 0.0
        %3822 = vmatpush1.msra.mxu0 0.0
        %3823 = vmatprep.subr.mxu0 0.0
        %3824 = vmatpush1.msra.mxu0 0.0
        %3825 = vmatprep.subr.mxu0 0.0
        %3826 = vmatpush1.msra.mxu0 0.0
        %3827 = vmatprep.subr.mxu0 0.0
        %3828 = vmatpush1.msra.mxu0 0.0
        %3829 = vmatprep.subr.mxu0 0.0
        %3830 = vmatpush1.msra.mxu0 0.0
        %3831 = vmatprep.subr.mxu0 %v3796
        %3832 = vmatpush1.msra.mxu0 %v3795
        %3833 = vmatprep.subr.mxu0 %v3794
        %3834 = vmatpush1.msra.mxu0 %v3793
        %3835 = vmatprep.subr.mxu0 0.0
        %3836 = vmatpush2.msra.mxu0 0.0
        %3837 = vmatprep.subr.mxu0 0.0
        %3838 = vmatpush2.msra.mxu0 0.0
        %3839 = vmatprep.subr.mxu0 0.0
        %3840 = vmatpush2.msra.mxu0 0.0
        %3841 = vmatprep.subr.mxu0 0.0
        %3842 = vmatpush2.msra.mxu0 0.0
        %3843 = vmatprep.subr.mxu0 0.0
        %3844 = vmatpush2.msra.mxu0 0.0
        %3845 = vmatprep.subr.mxu0 0.0
        %3846 = vmatpush2.msra.mxu0 0.0
        %3847 = vmatprep.subr.mxu0 0.0
        %3848 = vmatpush2.msra.mxu0 0.0
        %3849 = vmatprep.subr.mxu0 0.0
        %3850 = vmatpush2.msra.mxu0 0.0
        %3851 = vmatprep.subr.mxu0 0.0
        %3852 = vmatpush2.msra.mxu0 0.0
        %3853 = vmatprep.subr.mxu0 0.0
        %3854 = vmatpush2.msra.mxu0 0.0
        %3855 = vmatprep.subr.mxu0 0.0
        %3856 = vmatpush2.msra.mxu0 0.0
        %3857 = vmatprep.subr.mxu0 0.0
        %3858 = vmatpush2.msra.mxu0 0.0
        %3859 = vmatprep.subr.mxu0 0.0
        %3860 = vmatpush2.msra.mxu0 0.0
        %3861 = vmatprep.subr.mxu0 0.0
        %3862 = vmatpush2.msra.mxu0 0.0
        %3863 = vmatprep.subr.mxu0 0.0
        %3864 = vmatpush2.msra.mxu0 0.0
        %3865 = vmatprep.subr.mxu0 0.0
        %3866 = vmatpush2.msra.mxu0 0.0
        %3867 = vmatprep.mubr.f32.mxu0 0.0
        %3868 = vmatmul.mubr.f32.gmra.mxu0 %v3801
        %v3869 = vpop.f32.mrf.mxu0
        %v3870 = vadd.f32 0.0, %v3869
        %v3871 = vpop.f32.mrf.mxu0
        %v3872 = vadd.f32 0.0, %v3871
        %3873 = vdwg.mxu0
        %v3874 = vadd.f32 %v3765, %v3870
        %v3875 = vadd.f32 %v3766, %v3872
        %v3876 = vld [vmem:[#allocation2 + $0x8] sm:$0xff]
        %v3877 = vld [vmem:[#allocation2 + $0x10] sm:$0xff]
        %v3878 = vld [vmem:[#allocation2 + $0x18] sm:$0xff]
        %v3879 = vld [vmem:[#allocation2 + $0x28] sm:$0xff]
        %v3880 = vld [vmem:[#allocation2 + $0x30] sm:$0xff]
        %v3881 = vld [vmem:[#allocation2 + $0x38] sm:$0xff]
        %3882 = vrot.lane.b32.xlu0 %v231, 40
        %v3883 = vpop.permute.xlu0 %3882
        %3890 = vrot.lane.b32.xlu0 %v3876, 111
        %v3891 = vpop.permute.xlu0 %3890
        %3892 = vrot.lane.b32.xlu0 %v3877, 111
        %v3893 = vpop.permute.xlu0 %3892
        %3894 = vrot.lane.b32.xlu0 %v3878, 111
        %v3895 = vpop.permute.xlu0 %3894
        %3896 = vrot.lane.b32.xlu0 %v3879, 111
        %v3897 = vpop.permute.xlu0 %3896
        %3898 = vrot.lane.b32.xlu0 %v3880, 111
        %v3899 = vpop.permute.xlu0 %3898
        %3900 = vrot.lane.b32.xlu0 %v3881, 111
        %v3901 = vpop.permute.xlu0 %3900
        %v3902 = vsel %vm1048, %v3891, %v3893
        %v3903 = vsel %vm1048, %v3893, %v3895
        %v3904 = vsel %vm1048, %v3897, %v3899
        %v3905 = vsel %vm1048, %v3899, %v3901
        %v3910 = vsel %vm375, %v3883, 0
        %3912 = vmatprep.subr.mxu0 0.0
        %3913 = vmatpush1.msra.mxu0 0.0
        %3914 = vmatprep.subr.mxu0 0.0
        %3915 = vmatpush1.msra.mxu0 0.0
        %3916 = vmatprep.subr.mxu0 0.0
        %3917 = vmatpush1.msra.mxu0 0.0
        %3918 = vmatprep.subr.mxu0 0.0
        %3919 = vmatpush1.msra.mxu0 0.0
        %3920 = vmatprep.subr.mxu0 0.0
        %3921 = vmatpush1.msra.mxu0 0.0
        %3922 = vmatprep.subr.mxu0 0.0
        %3923 = vmatpush1.msra.mxu0 0.0
        %3924 = vmatprep.subr.mxu0 0.0
        %3925 = vmatpush1.msra.mxu0 0.0
        %3926 = vmatprep.subr.mxu0 0.0
        %3927 = vmatpush1.msra.mxu0 0.0
        %3928 = vmatprep.subr.mxu0 0.0
        %3929 = vmatpush1.msra.mxu0 0.0
        %3930 = vmatprep.subr.mxu0 0.0
        %3931 = vmatpush1.msra.mxu0 0.0
        %3932 = vmatprep.subr.mxu0 0.0
        %3933 = vmatpush1.msra.mxu0 0.0
        %3934 = vmatprep.subr.mxu0 0.0
        %3935 = vmatpush1.msra.mxu0 0.0
        %3936 = vmatprep.subr.mxu0 0.0
        %3937 = vmatpush1.msra.mxu0 0.0
        %3938 = vmatprep.subr.mxu0 0.0
        %3939 = vmatpush1.msra.mxu0 0.0
        %3940 = vmatprep.subr.mxu0 %v3905
        %3941 = vmatpush1.msra.mxu0 %v3904
        %3942 = vmatprep.subr.mxu0 %v3903
        %3943 = vmatpush1.msra.mxu0 %v3902
        %3944 = vmatprep.subr.mxu0 0.0
        %3945 = vmatpush2.msra.mxu0 0.0
        %3946 = vmatprep.subr.mxu0 0.0
        %3947 = vmatpush2.msra.mxu0 0.0
        %3948 = vmatprep.subr.mxu0 0.0
        %3949 = vmatpush2.msra.mxu0 0.0
        %3950 = vmatprep.subr.mxu0 0.0
        %3951 = vmatpush2.msra.mxu0 0.0
        %3952 = vmatprep.subr.mxu0 0.0
        %3953 = vmatpush2.msra.mxu0 0.0
        %3954 = vmatprep.subr.mxu0 0.0
        %3955 = vmatpush2.msra.mxu0 0.0
        %3956 = vmatprep.subr.mxu0 0.0
        %3957 = vmatpush2.msra.mxu0 0.0
        %3958 = vmatprep.subr.mxu0 0.0
        %3959 = vmatpush2.msra.mxu0 0.0
        %3960 = vmatprep.subr.mxu0 0.0
        %3961 = vmatpush2.msra.mxu0 0.0
        %3962 = vmatprep.subr.mxu0 0.0
        %3963 = vmatpush2.msra.mxu0 0.0
        %3964 = vmatprep.subr.mxu0 0.0
        %3965 = vmatpush2.msra.mxu0 0.0
        %3966 = vmatprep.subr.mxu0 0.0
        %3967 = vmatpush2.msra.mxu0 0.0
        %3968 = vmatprep.subr.mxu0 0.0
        %3969 = vmatpush2.msra.mxu0 0.0
        %3970 = vmatprep.subr.mxu0 0.0
        %3971 = vmatpush2.msra.mxu0 0.0
        %3972 = vmatprep.subr.mxu0 0.0
        %3973 = vmatpush2.msra.mxu0 0.0
        %3974 = vmatprep.subr.mxu0 0.0
        %3975 = vmatpush2.msra.mxu0 0.0
        %3976 = vmatprep.mubr.f32.mxu0 0.0
        %3977 = vmatmul.mubr.f32.gmra.mxu0 %v3910
        %v3978 = vpop.f32.mrf.mxu0
        %v3979 = vadd.f32 0.0, %v3978
        %v3980 = vpop.f32.mrf.mxu0
        %v3981 = vadd.f32 0.0, %v3980
        %3982 = vdwg.mxu0
        %v3983 = vsel %vm553, %v3979, 0.0
        %v3984 = vsel %vm554, %v3981, 0.0
        %v3985 = vadd.f32 %v3874, %v3983
        %v3986 = vadd.f32 %v3875, %v3984
        %v3987 = vld [vmem:[#allocation8] sm:$0xf]
        %3989 = vset.pattern.permute.xlu0 3
        %3990 = vperm.xlu0 %3989, %v3987
        %v3991 = vpop.permute.xlu0 %3990
        %v3993 = vadd.f32 %v3985, %v3991
        %v3994 = vadd.f32 %v3986, %v3991
        %vm3995 = vcmp.ge.f32.partialorder %v3993, 0.0
        %vm3996 = vcmp.ge.f32.partialorder %v3994, 0.0
        %v3997 = vmul.f32 %v3993, 0.01
        %v3998 = vmul.f32 %v3994, 0.01
        %v3999 = vsel %vm3995, %v3993, %v3997
        %v4000 = vsel %vm3996, %v3994, %v3998
        %4001 = vst [vmem:[#allocation2 + $0x48] sm:$0xf] %v3999
        %4002 = vst [vmem:[#allocation2 + $0x50] sm:$0xf] %v4000
        %v4003 = vld [vmem:[#allocation2] sm:$0xff]
        %v4004 = vld [vmem:[#allocation2 + $0x8] sm:$0xff]
        %v4005 = vld [vmem:[#allocation2 + $0x10] sm:$0xff]
        %v4006 = vld [vmem:[#allocation2 + $0x20] sm:$0xff]
        %v4007 = vld [vmem:[#allocation2 + $0x28] sm:$0xff]
        %v4008 = vld [vmem:[#allocation2 + $0x30] sm:$0xff]
        %v4009 = vld [vmem:[#allocation2 + $0x40] sm:$0xf]
        %v4010 = vld [vmem:[#allocation2 + $0x48] sm:$0xf]
        %v4011 = vld [vmem:[#allocation2 + $0x50] sm:$0xf]
        %4012 = vrot.lane.b32.xlu0 %v231, 24
        %v4013 = vpop.permute.xlu0 %4012
        %4023 = vrot.lane.b32.xlu0 %v4003, 17
        %v4024 = vpop.permute.xlu0 %4023
        %4025 = vrot.lane.b32.xlu0 %v4004, 17
        %v4026 = vpop.permute.xlu0 %4025
        %4027 = vrot.lane.b32.xlu0 %v4005, 17
        %v4028 = vpop.permute.xlu0 %4027
        %4029 = vrot.lane.b32.xlu0 %v4006, 17
        %v4030 = vpop.permute.xlu0 %4029
        %4031 = vrot.lane.b32.xlu0 %v4007, 17
        %v4032 = vpop.permute.xlu0 %4031
        %4033 = vrot.lane.b32.xlu0 %v4008, 17
        %v4034 = vpop.permute.xlu0 %4033
        %4035 = vrot.lane.b32.xlu0 %v4009, 17
        %v4036 = vpop.permute.xlu0 %4035
        %4037 = vrot.lane.b32.xlu0 %v4010, 17
        %v4038 = vpop.permute.xlu0 %4037
        %4039 = vrot.lane.b32.xlu0 %v4011, 17
        %v4040 = vpop.permute.xlu0 %4039
        %v4041 = vsel %vm276, %v4024, %v4026
        %v4042 = vsel %vm276, %v4026, %v4028
        %v4043 = vsel %vm276, %v4030, %v4032
        %v4044 = vsel %vm276, %v4032, %v4034
        %v4045 = vsel %vm276, %v4036, %v4038
        %v4046 = vsel %vm276, %v4038, %v4040
        %vm4051 = vcmask 162816
        %v4052 = vsel %vm4051, %v4013, 0
        %v4054 = vsel %vm283, %v4045, 0
        %v4056 = vsel %vm283, %v4046, 0
        %4058 = vmatprep.subr.mxu0 0.0
        %4059 = vmatpush1.msra.mxu0 0.0
        %4060 = vmatprep.subr.mxu0 0.0
        %4061 = vmatpush1.msra.mxu0 0.0
        %4062 = vmatprep.subr.mxu0 0.0
        %4063 = vmatpush1.msra.mxu0 0.0
        %4064 = vmatprep.subr.mxu0 0.0
        %4065 = vmatpush1.msra.mxu0 0.0
        %4066 = vmatprep.subr.mxu0 0.0
        %4067 = vmatpush1.msra.mxu0 0.0
        %4068 = vmatprep.subr.mxu0 0.0
        %4069 = vmatpush1.msra.mxu0 0.0
        %4070 = vmatprep.subr.mxu0 0.0
        %4071 = vmatpush1.msra.mxu0 0.0
        %4072 = vmatprep.subr.mxu0 0.0
        %4073 = vmatpush1.msra.mxu0 0.0
        %4074 = vmatprep.subr.mxu0 0.0
        %4075 = vmatpush1.msra.mxu0 0.0
        %4076 = vmatprep.subr.mxu0 0.0
        %4077 = vmatpush1.msra.mxu0 0.0
        %4078 = vmatprep.subr.mxu0 0.0
        %4079 = vmatpush1.msra.mxu0 0.0
        %4080 = vmatprep.subr.mxu0 0.0
        %4081 = vmatpush1.msra.mxu0 0.0
        %4082 = vmatprep.subr.mxu0 0.0
        %4083 = vmatpush1.msra.mxu0 0.0
        %4084 = vmatprep.subr.mxu0 %v4056
        %4085 = vmatpush1.msra.mxu0 %v4054
        %4086 = vmatprep.subr.mxu0 %v4044
        %4087 = vmatpush1.msra.mxu0 %v4043
        %4088 = vmatprep.subr.mxu0 %v4042
        %4089 = vmatpush1.msra.mxu0 %v4041
        %4090 = vmatprep.subr.mxu0 0.0
        %4091 = vmatpush2.msra.mxu0 0.0
        %4092 = vmatprep.subr.mxu0 0.0
        %4093 = vmatpush2.msra.mxu0 0.0
        %4094 = vmatprep.subr.mxu0 0.0
        %4095 = vmatpush2.msra.mxu0 0.0
        %4096 = vmatprep.subr.mxu0 0.0
        %4097 = vmatpush2.msra.mxu0 0.0
        %4098 = vmatprep.subr.mxu0 0.0
        %4099 = vmatpush2.msra.mxu0 0.0
        %4100 = vmatprep.subr.mxu0 0.0
        %4101 = vmatpush2.msra.mxu0 0.0
        %4102 = vmatprep.subr.mxu0 0.0
        %4103 = vmatpush2.msra.mxu0 0.0
        %4104 = vmatprep.subr.mxu0 0.0
        %4105 = vmatpush2.msra.mxu0 0.0
        %4106 = vmatprep.subr.mxu0 0.0
        %4107 = vmatpush2.msra.mxu0 0.0
        %4108 = vmatprep.subr.mxu0 0.0
        %4109 = vmatpush2.msra.mxu0 0.0
        %4110 = vmatprep.subr.mxu0 0.0
        %4111 = vmatpush2.msra.mxu0 0.0
        %4112 = vmatprep.subr.mxu0 0.0
        %4113 = vmatpush2.msra.mxu0 0.0
        %4114 = vmatprep.subr.mxu0 0.0
        %4115 = vmatpush2.msra.mxu0 0.0
        %4116 = vmatprep.subr.mxu0 0.0
        %4117 = vmatpush2.msra.mxu0 0.0
        %4118 = vmatprep.subr.mxu0 0.0
        %4119 = vmatpush2.msra.mxu0 0.0
        %4120 = vmatprep.subr.mxu0 0.0
        %4121 = vmatpush2.msra.mxu0 0.0
        %4122 = vmatprep.mubr.f32.mxu0 0.0
        %4123 = vmatmul.mubr.f32.gmra.mxu0 %v4052
        %v4124 = vpop.f32.mrf.mxu0
        %v4125 = vadd.f32 0.0, %v4124
        %v4126 = vpop.f32.mrf.mxu0
        %v4127 = vadd.f32 0.0, %v4126
        %4128 = vdwg.mxu0
        %v4129 = vsel %vm361, %v4125, 0.0
        %v4130 = vsel %vm362, %v4127, 0.0
        %v4131 = vadd.f32 %v4129, 0.0
        %v4132 = vadd.f32 %v4130, 0.0
        %v4133 = vld [vmem:[#allocation2] sm:$0xff]
        %v4134 = vld [vmem:[#allocation2 + $0x8] sm:$0xff]
        %v4135 = vld [vmem:[#allocation2 + $0x10] sm:$0xff]
        %v4136 = vld [vmem:[#allocation2 + $0x20] sm:$0xff]
        %v4137 = vld [vmem:[#allocation2 + $0x28] sm:$0xff]
        %v4138 = vld [vmem:[#allocation2 + $0x30] sm:$0xff]
        %v4139 = vld [vmem:[#allocation2 + $0x40] sm:$0xf]
        %v4140 = vld [vmem:[#allocation2 + $0x48] sm:$0xf]
        %v4141 = vld [vmem:[#allocation2 + $0x50] sm:$0xf]
        %v4142 = vcombine.high %v231, %v231
        %4143 = vrot.lane.b32.xlu0 %v231, 4
        %v4144 = vpop.permute.xlu0 %4143
        %4145 = vrot.lane.b32.xlu0 %v4142, 4
        %v4146 = vpop.permute.xlu0 %4145
        %v4147 = vsel %vm279, %v4144, %v4146
        %4157 = vrot.lane.b32.xlu0 %v4133, 16
        %v4158 = vpop.permute.xlu0 %4157
        %4159 = vrot.lane.b32.xlu0 %v4134, 16
        %v4160 = vpop.permute.xlu0 %4159
        %4161 = vrot.lane.b32.xlu0 %v4135, 16
        %v4162 = vpop.permute.xlu0 %4161
        %4163 = vrot.lane.b32.xlu0 %v4136, 16
        %v4164 = vpop.permute.xlu0 %4163
        %4165 = vrot.lane.b32.xlu0 %v4137, 16
        %v4166 = vpop.permute.xlu0 %4165
        %4167 = vrot.lane.b32.xlu0 %v4138, 16
        %v4168 = vpop.permute.xlu0 %4167
        %4169 = vrot.lane.b32.xlu0 %v4139, 16
        %v4170 = vpop.permute.xlu0 %4169
        %4171 = vrot.lane.b32.xlu0 %v4140, 16
        %v4172 = vpop.permute.xlu0 %4171
        %4173 = vrot.lane.b32.xlu0 %v4141, 16
        %v4174 = vpop.permute.xlu0 %4173
        %v4175 = vsel %vm375, %v4158, %v4160
        %v4176 = vsel %vm375, %v4160, %v4162
        %v4177 = vsel %vm375, %v4164, %v4166
        %v4178 = vsel %vm375, %v4166, %v4168
        %v4179 = vsel %vm375, %v4170, %v4172
        %v4180 = vsel %vm375, %v4172, %v4174
        %v4185 = vsel %vm4051, %v4147, 0
        %v4187 = vsel %vm283, %v4179, 0
        %v4189 = vsel %vm283, %v4180, 0
        %4191 = vmatprep.subr.mxu0 0.0
        %4192 = vmatpush1.msra.mxu0 0.0
        %4193 = vmatprep.subr.mxu0 0.0
        %4194 = vmatpush1.msra.mxu0 0.0
        %4195 = vmatprep.subr.mxu0 0.0
        %4196 = vmatpush1.msra.mxu0 0.0
        %4197 = vmatprep.subr.mxu0 0.0
        %4198 = vmatpush1.msra.mxu0 0.0
        %4199 = vmatprep.subr.mxu0 0.0
        %4200 = vmatpush1.msra.mxu0 0.0
        %4201 = vmatprep.subr.mxu0 0.0
        %4202 = vmatpush1.msra.mxu0 0.0
        %4203 = vmatprep.subr.mxu0 0.0
        %4204 = vmatpush1.msra.mxu0 0.0
        %4205 = vmatprep.subr.mxu0 0.0
        %4206 = vmatpush1.msra.mxu0 0.0
        %4207 = vmatprep.subr.mxu0 0.0
        %4208 = vmatpush1.msra.mxu0 0.0
        %4209 = vmatprep.subr.mxu0 0.0
        %4210 = vmatpush1.msra.mxu0 0.0
        %4211 = vmatprep.subr.mxu0 0.0
        %4212 = vmatpush1.msra.mxu0 0.0
        %4213 = vmatprep.subr.mxu0 0.0
        %4214 = vmatpush1.msra.mxu0 0.0
        %4215 = vmatprep.subr.mxu0 0.0
        %4216 = vmatpush1.msra.mxu0 0.0
        %4217 = vmatprep.subr.mxu0 %v4189
        %4218 = vmatpush1.msra.mxu0 %v4187
        %4219 = vmatprep.subr.mxu0 %v4178
        %4220 = vmatpush1.msra.mxu0 %v4177
        %4221 = vmatprep.subr.mxu0 %v4176
        %4222 = vmatpush1.msra.mxu0 %v4175
        %4223 = vmatprep.subr.mxu0 0.0
        %4224 = vmatpush2.msra.mxu0 0.0
        %4225 = vmatprep.subr.mxu0 0.0
        %4226 = vmatpush2.msra.mxu0 0.0
        %4227 = vmatprep.subr.mxu0 0.0
        %4228 = vmatpush2.msra.mxu0 0.0
        %4229 = vmatprep.subr.mxu0 0.0
        %4230 = vmatpush2.msra.mxu0 0.0
        %4231 = vmatprep.subr.mxu0 0.0
        %4232 = vmatpush2.msra.mxu0 0.0
        %4233 = vmatprep.subr.mxu0 0.0
        %4234 = vmatpush2.msra.mxu0 0.0
        %4235 = vmatprep.subr.mxu0 0.0
        %4236 = vmatpush2.msra.mxu0 0.0
        %4237 = vmatprep.subr.mxu0 0.0
        %4238 = vmatpush2.msra.mxu0 0.0
        %4239 = vmatprep.subr.mxu0 0.0
        %4240 = vmatpush2.msra.mxu0 0.0
        %4241 = vmatprep.subr.mxu0 0.0
        %4242 = vmatpush2.msra.mxu0 0.0
        %4243 = vmatprep.subr.mxu0 0.0
        %4244 = vmatpush2.msra.mxu0 0.0
        %4245 = vmatprep.subr.mxu0 0.0
        %4246 = vmatpush2.msra.mxu0 0.0
        %4247 = vmatprep.subr.mxu0 0.0
        %4248 = vmatpush2.msra.mxu0 0.0
        %4249 = vmatprep.subr.mxu0 0.0
        %4250 = vmatpush2.msra.mxu0 0.0
        %4251 = vmatprep.subr.mxu0 0.0
        %4252 = vmatpush2.msra.mxu0 0.0
        %4253 = vmatprep.subr.mxu0 0.0
        %4254 = vmatpush2.msra.mxu0 0.0
        %4255 = vmatprep.mubr.f32.mxu0 0.0
        %4256 = vmatmul.mubr.f32.gmra.mxu0 %v4185
        %v4257 = vpop.f32.mrf.mxu0
        %v4258 = vadd.f32 0.0, %v4257
        %v4259 = vpop.f32.mrf.mxu0
        %v4260 = vadd.f32 0.0, %v4259
        %4261 = vdwg.mxu0
        %v4262 = vadd.f32 %v4131, %v4258
        %v4263 = vadd.f32 %v4132, %v4260
        %v4264 = vld [vmem:[#allocation2] sm:$0xff]
        %v4265 = vld [vmem:[#allocation2 + $0x8] sm:$0xff]
        %v4266 = vld [vmem:[#allocation2 + $0x10] sm:$0xff]
        %v4267 = vld [vmem:[#allocation2 + $0x20] sm:$0xff]
        %v4268 = vld [vmem:[#allocation2 + $0x28] sm:$0xff]
        %v4269 = vld [vmem:[#allocation2 + $0x30] sm:$0xff]
        %v4270 = vld [vmem:[#allocation2 + $0x40] sm:$0xf]
        %v4271 = vld [vmem:[#allocation2 + $0x48] sm:$0xf]
        %v4272 = vld [vmem:[#allocation2 + $0x50] sm:$0xf]
        %4273 = vrot.lane.b32.xlu0 %v4142, 112
        %v4274 = vpop.permute.xlu0 %4273
        %4284 = vrot.lane.b32.xlu0 %v4264, 15
        %v4285 = vpop.permute.xlu0 %4284
        %4286 = vrot.lane.b32.xlu0 %v4265, 15
        %v4287 = vpop.permute.xlu0 %4286
        %4288 = vrot.lane.b32.xlu0 %v4266, 15
        %v4289 = vpop.permute.xlu0 %4288
        %4290 = vrot.lane.b32.xlu0 %v4267, 15
        %v4291 = vpop.permute.xlu0 %4290
        %4292 = vrot.lane.b32.xlu0 %v4268, 15
        %v4293 = vpop.permute.xlu0 %4292
        %4294 = vrot.lane.b32.xlu0 %v4269, 15
        %v4295 = vpop.permute.xlu0 %4294
        %4296 = vrot.lane.b32.xlu0 %v4270, 15
        %v4297 = vpop.permute.xlu0 %4296
        %4298 = vrot.lane.b32.xlu0 %v4271, 15
        %v4299 = vpop.permute.xlu0 %4298
        %4300 = vrot.lane.b32.xlu0 %v4272, 15
        %v4301 = vpop.permute.xlu0 %4300
        %v4302 = vsel %vm471, %v4285, %v4287
        %v4303 = vsel %vm471, %v4287, %v4289
        %v4304 = vsel %vm471, %v4291, %v4293
        %v4305 = vsel %vm471, %v4293, %v4295
        %v4306 = vsel %vm471, %v4297, %v4299
        %v4307 = vsel %vm471, %v4299, %v4301
        %v4312 = vsel %vm4051, %v4274, 0
        %v4314 = vsel %vm283, %v4306, 0
        %v4316 = vsel %vm283, %v4307, 0
        %4318 = vmatprep.subr.mxu0 0.0
        %4319 = vmatpush1.msra.mxu0 0.0
        %4320 = vmatprep.subr.mxu0 0.0
        %4321 = vmatpush1.msra.mxu0 0.0
        %4322 = vmatprep.subr.mxu0 0.0
        %4323 = vmatpush1.msra.mxu0 0.0
        %4324 = vmatprep.subr.mxu0 0.0
        %4325 = vmatpush1.msra.mxu0 0.0
        %4326 = vmatprep.subr.mxu0 0.0
        %4327 = vmatpush1.msra.mxu0 0.0
        %4328 = vmatprep.subr.mxu0 0.0
        %4329 = vmatpush1.msra.mxu0 0.0
        %4330 = vmatprep.subr.mxu0 0.0
        %4331 = vmatpush1.msra.mxu0 0.0
        %4332 = vmatprep.subr.mxu0 0.0
        %4333 = vmatpush1.msra.mxu0 0.0
        %4334 = vmatprep.subr.mxu0 0.0
        %4335 = vmatpush1.msra.mxu0 0.0
        %4336 = vmatprep.subr.mxu0 0.0
        %4337 = vmatpush1.msra.mxu0 0.0
        %4338 = vmatprep.subr.mxu0 0.0
        %4339 = vmatpush1.msra.mxu0 0.0
        %4340 = vmatprep.subr.mxu0 0.0
        %4341 = vmatpush1.msra.mxu0 0.0
        %4342 = vmatprep.subr.mxu0 0.0
        %4343 = vmatpush1.msra.mxu0 0.0
        %4344 = vmatprep.subr.mxu0 %v4316
        %4345 = vmatpush1.msra.mxu0 %v4314
        %4346 = vmatprep.subr.mxu0 %v4305
        %4347 = vmatpush1.msra.mxu0 %v4304
        %4348 = vmatprep.subr.mxu0 %v4303
        %4349 = vmatpush1.msra.mxu0 %v4302
        %4350 = vmatprep.subr.mxu0 0.0
        %4351 = vmatpush2.msra.mxu0 0.0
        %4352 = vmatprep.subr.mxu0 0.0
        %4353 = vmatpush2.msra.mxu0 0.0
        %4354 = vmatprep.subr.mxu0 0.0
        %4355 = vmatpush2.msra.mxu0 0.0
        %4356 = vmatprep.subr.mxu0 0.0
        %4357 = vmatpush2.msra.mxu0 0.0
        %4358 = vmatprep.subr.mxu0 0.0
        %4359 = vmatpush2.msra.mxu0 0.0
        %4360 = vmatprep.subr.mxu0 0.0
        %4361 = vmatpush2.msra.mxu0 0.0
        %4362 = vmatprep.subr.mxu0 0.0
        %4363 = vmatpush2.msra.mxu0 0.0
        %4364 = vmatprep.subr.mxu0 0.0
        %4365 = vmatpush2.msra.mxu0 0.0
        %4366 = vmatprep.subr.mxu0 0.0
        %4367 = vmatpush2.msra.mxu0 0.0
        %4368 = vmatprep.subr.mxu0 0.0
        %4369 = vmatpush2.msra.mxu0 0.0
        %4370 = vmatprep.subr.mxu0 0.0
        %4371 = vmatpush2.msra.mxu0 0.0
        %4372 = vmatprep.subr.mxu0 0.0
        %4373 = vmatpush2.msra.mxu0 0.0
        %4374 = vmatprep.subr.mxu0 0.0
        %4375 = vmatpush2.msra.mxu0 0.0
        %4376 = vmatprep.subr.mxu0 0.0
        %4377 = vmatpush2.msra.mxu0 0.0
        %4378 = vmatprep.subr.mxu0 0.0
        %4379 = vmatpush2.msra.mxu0 0.0
        %4380 = vmatprep.subr.mxu0 0.0
        %4381 = vmatpush2.msra.mxu0 0.0
        %4382 = vmatprep.mubr.f32.mxu0 0.0
        %4383 = vmatmul.mubr.f32.gmra.mxu0 %v4312
        %v4384 = vpop.f32.mrf.mxu0
        %v4385 = vadd.f32 0.0, %v4384
        %v4386 = vpop.f32.mrf.mxu0
        %v4387 = vadd.f32 0.0, %v4386
        %4388 = vdwg.mxu0
        %v4389 = vsel %vm553, %v4385, 0.0
        %v4390 = vsel %vm554, %v4387, 0.0
        %v4391 = vadd.f32 %v4262, %v4389
        %v4392 = vadd.f32 %v4263, %v4390
        %v4393 = vld [vmem:[#allocation2] sm:$0xff]
        %v4394 = vld [vmem:[#allocation2 + $0x8] sm:$0xff]
        %v4395 = vld [vmem:[#allocation2 + $0x10] sm:$0xff]
        %v4396 = vld [vmem:[#allocation2 + $0x20] sm:$0xff]
        %v4397 = vld [vmem:[#allocation2 + $0x28] sm:$0xff]
        %v4398 = vld [vmem:[#allocation2 + $0x30] sm:$0xff]
        %v4399 = vld [vmem:[#allocation2 + $0x40] sm:$0xf]
        %v4400 = vld [vmem:[#allocation2 + $0x48] sm:$0xf]
        %v4401 = vld [vmem:[#allocation2 + $0x50] sm:$0xf]
        %4402 = vrot.lane.b32.xlu0 %v4142, 92
        %v4403 = vpop.permute.xlu0 %4402
        %4413 = vrot.lane.b32.xlu0 %v4393, 1
        %v4414 = vpop.permute.xlu0 %4413
        %4415 = vrot.lane.b32.xlu0 %v4394, 1
        %v4416 = vpop.permute.xlu0 %4415
        %4417 = vrot.lane.b32.xlu0 %v4395, 1
        %v4418 = vpop.permute.xlu0 %4417
        %4419 = vrot.lane.b32.xlu0 %v4396, 1
        %v4420 = vpop.permute.xlu0 %4419
        %4421 = vrot.lane.b32.xlu0 %v4397, 1
        %v4422 = vpop.permute.xlu0 %4421
        %4423 = vrot.lane.b32.xlu0 %v4398, 1
        %v4424 = vpop.permute.xlu0 %4423
        %4425 = vrot.lane.b32.xlu0 %v4399, 1
        %v4426 = vpop.permute.xlu0 %4425
        %4427 = vrot.lane.b32.xlu0 %v4400, 1
        %v4428 = vpop.permute.xlu0 %4427
        %4429 = vrot.lane.b32.xlu0 %v4401, 1
        %v4430 = vpop.permute.xlu0 %4429
        %v4431 = vsel %vm573, %v4414, %v4416
        %v4432 = vsel %vm573, %v4416, %v4418
        %v4433 = vsel %vm573, %v4420, %v4422
        %v4434 = vsel %vm573, %v4422, %v4424
        %v4435 = vsel %vm573, %v4426, %v4428
        %v4436 = vsel %vm573, %v4428, %v4430
        %v4441 = vsel %vm4051, %v4403, 0
        %v4443 = vsel %vm283, %v4435, 0
        %v4445 = vsel %vm283, %v4436, 0
        %4447 = vmatprep.subr.mxu0 0.0
        %4448 = vmatpush1.msra.mxu0 0.0
        %4449 = vmatprep.subr.mxu0 0.0
        %4450 = vmatpush1.msra.mxu0 0.0
        %4451 = vmatprep.subr.mxu0 0.0
        %4452 = vmatpush1.msra.mxu0 0.0
        %4453 = vmatprep.subr.mxu0 0.0
        %4454 = vmatpush1.msra.mxu0 0.0
        %4455 = vmatprep.subr.mxu0 0.0
        %4456 = vmatpush1.msra.mxu0 0.0
        %4457 = vmatprep.subr.mxu0 0.0
        %4458 = vmatpush1.msra.mxu0 0.0
        %4459 = vmatprep.subr.mxu0 0.0
        %4460 = vmatpush1.msra.mxu0 0.0
        %4461 = vmatprep.subr.mxu0 0.0
        %4462 = vmatpush1.msra.mxu0 0.0
        %4463 = vmatprep.subr.mxu0 0.0
        %4464 = vmatpush1.msra.mxu0 0.0
        %4465 = vmatprep.subr.mxu0 0.0
        %4466 = vmatpush1.msra.mxu0 0.0
        %4467 = vmatprep.subr.mxu0 0.0
        %4468 = vmatpush1.msra.mxu0 0.0
        %4469 = vmatprep.subr.mxu0 0.0
        %4470 = vmatpush1.msra.mxu0 0.0
        %4471 = vmatprep.subr.mxu0 0.0
        %4472 = vmatpush1.msra.mxu0 0.0
        %4473 = vmatprep.subr.mxu0 %v4445
        %4474 = vmatpush1.msra.mxu0 %v4443
        %4475 = vmatprep.subr.mxu0 %v4434
        %4476 = vmatpush1.msra.mxu0 %v4433
        %4477 = vmatprep.subr.mxu0 %v4432
        %4478 = vmatpush1.msra.mxu0 %v4431
        %4479 = vmatprep.subr.mxu0 0.0
        %4480 = vmatpush2.msra.mxu0 0.0
        %4481 = vmatprep.subr.mxu0 0.0
        %4482 = vmatpush2.msra.mxu0 0.0
        %4483 = vmatprep.subr.mxu0 0.0
        %4484 = vmatpush2.msra.mxu0 0.0
        %4485 = vmatprep.subr.mxu0 0.0
        %4486 = vmatpush2.msra.mxu0 0.0
        %4487 = vmatprep.subr.mxu0 0.0
        %4488 = vmatpush2.msra.mxu0 0.0
        %4489 = vmatprep.subr.mxu0 0.0
        %4490 = vmatpush2.msra.mxu0 0.0
        %4491 = vmatprep.subr.mxu0 0.0
        %4492 = vmatpush2.msra.mxu0 0.0
        %4493 = vmatprep.subr.mxu0 0.0
        %4494 = vmatpush2.msra.mxu0 0.0
        %4495 = vmatprep.subr.mxu0 0.0
        %4496 = vmatpush2.msra.mxu0 0.0
        %4497 = vmatprep.subr.mxu0 0.0
        %4498 = vmatpush2.msra.mxu0 0.0
        %4499 = vmatprep.subr.mxu0 0.0
        %4500 = vmatpush2.msra.mxu0 0.0
        %4501 = vmatprep.subr.mxu0 0.0
        %4502 = vmatpush2.msra.mxu0 0.0
        %4503 = vmatprep.subr.mxu0 0.0
        %4504 = vmatpush2.msra.mxu0 0.0
        %4505 = vmatprep.subr.mxu0 0.0
        %4506 = vmatpush2.msra.mxu0 0.0
        %4507 = vmatprep.subr.mxu0 0.0
        %4508 = vmatpush2.msra.mxu0 0.0
        %4509 = vmatprep.subr.mxu0 0.0
        %4510 = vmatpush2.msra.mxu0 0.0
        %4511 = vmatprep.mubr.f32.mxu0 0.0
        %4512 = vmatmul.mubr.f32.gmra.mxu0 %v4441
        %v4513 = vpop.f32.mrf.mxu0
        %v4514 = vadd.f32 0.0, %v4513
        %v4515 = vpop.f32.mrf.mxu0
        %v4516 = vadd.f32 0.0, %v4515
        %4517 = vdwg.mxu0
        %v4518 = vsel %vm361, %v4514, 0.0
        %v4519 = vsel %vm362, %v4516, 0.0
        %v4520 = vadd.f32 %v4391, %v4518
        %v4521 = vadd.f32 %v4392, %v4519
        %v4522 = vld [vmem:[#allocation2 + $0x8] sm:$0xff]
        %v4523 = vld [vmem:[#allocation2 + $0x10] sm:$0xff]
        %v4524 = vld [vmem:[#allocation2 + $0x28] sm:$0xff]
        %v4525 = vld [vmem:[#allocation2 + $0x30] sm:$0xff]
        %v4526 = vld [vmem:[#allocation2 + $0x48] sm:$0xf]
        %v4527 = vld [vmem:[#allocation2 + $0x50] sm:$0xf]
        %4528 = vrot.lane.b32.xlu0 %v4142, 72
        %v4529 = vpop.permute.xlu0 %4528
        %v4530 = vsel %vm4051, %v4529, 0
        %v4533 = vsel %vm283, %v4526, 0
        %v4536 = vsel %vm283, %v4527, 0
        %4538 = vmatprep.subr.mxu0 0.0
        %4539 = vmatpush1.msra.mxu0 0.0
        %4540 = vmatprep.subr.mxu0 0.0
        %4541 = vmatpush1.msra.mxu0 0.0
        %4542 = vmatprep.subr.mxu0 0.0
        %4543 = vmatpush1.msra.mxu0 0.0
        %4544 = vmatprep.subr.mxu0 0.0
        %4545 = vmatpush1.msra.mxu0 0.0
        %4546 = vmatprep.subr.mxu0 0.0
        %4547 = vmatpush1.msra.mxu0 0.0
        %4548 = vmatprep.subr.mxu0 0.0
        %4549 = vmatpush1.msra.mxu0 0.0
        %4550 = vmatprep.subr.mxu0 0.0
        %4551 = vmatpush1.msra.mxu0 0.0
        %4552 = vmatprep.subr.mxu0 0.0
        %4553 = vmatpush1.msra.mxu0 0.0
        %4554 = vmatprep.subr.mxu0 0.0
        %4555 = vmatpush1.msra.mxu0 0.0
        %4556 = vmatprep.subr.mxu0 0.0
        %4557 = vmatpush1.msra.mxu0 0.0
        %4558 = vmatprep.subr.mxu0 0.0
        %4559 = vmatpush1.msra.mxu0 0.0
        %4560 = vmatprep.subr.mxu0 0.0
        %4561 = vmatpush1.msra.mxu0 0.0
        %4562 = vmatprep.subr.mxu0 0.0
        %4563 = vmatpush1.msra.mxu0 0.0
        %4564 = vmatprep.subr.mxu0 %v4536
        %4565 = vmatpush1.msra.mxu0 %v4533
        %4566 = vmatprep.subr.mxu0 %v4525
        %4567 = vmatpush1.msra.mxu0 %v4524
        %4568 = vmatprep.subr.mxu0 %v4523
        %4569 = vmatpush1.msra.mxu0 %v4522
        %4570 = vmatprep.subr.mxu0 0.0
        %4571 = vmatpush2.msra.mxu0 0.0
        %4572 = vmatprep.subr.mxu0 0.0
        %4573 = vmatpush2.msra.mxu0 0.0
        %4574 = vmatprep.subr.mxu0 0.0
        %4575 = vmatpush2.msra.mxu0 0.0
        %4576 = vmatprep.subr.mxu0 0.0
        %4577 = vmatpush2.msra.mxu0 0.0
        %4578 = vmatprep.subr.mxu0 0.0
        %4579 = vmatpush2.msra.mxu0 0.0
        %4580 = vmatprep.subr.mxu0 0.0
        %4581 = vmatpush2.msra.mxu0 0.0
        %4582 = vmatprep.subr.mxu0 0.0
        %4583 = vmatpush2.msra.mxu0 0.0
        %4584 = vmatprep.subr.mxu0 0.0
        %4585 = vmatpush2.msra.mxu0 0.0
        %4586 = vmatprep.subr.mxu0 0.0
        %4587 = vmatpush2.msra.mxu0 0.0
        %4588 = vmatprep.subr.mxu0 0.0
        %4589 = vmatpush2.msra.mxu0 0.0
        %4590 = vmatprep.subr.mxu0 0.0
        %4591 = vmatpush2.msra.mxu0 0.0
        %4592 = vmatprep.subr.mxu0 0.0
        %4593 = vmatpush2.msra.mxu0 0.0
        %4594 = vmatprep.subr.mxu0 0.0
        %4595 = vmatpush2.msra.mxu0 0.0
        %4596 = vmatprep.subr.mxu0 0.0
        %4597 = vmatpush2.msra.mxu0 0.0
        %4598 = vmatprep.subr.mxu0 0.0
        %4599 = vmatpush2.msra.mxu0 0.0
        %4600 = vmatprep.subr.mxu0 0.0
        %4601 = vmatpush2.msra.mxu0 0.0
        %4602 = vmatprep.mubr.f32.mxu0 0.0
        %4603 = vmatmul.mubr.f32.gmra.mxu0 %v4530
        %v4604 = vpop.f32.mrf.mxu0
        %v4605 = vadd.f32 0.0, %v4604
        %v4606 = vpop.f32.mrf.mxu0
        %v4607 = vadd.f32 0.0, %v4606
        %4608 = vdwg.mxu0
        %v4609 = vadd.f32 %v4520, %v4605
        %v4610 = vadd.f32 %v4521, %v4607
        %v4611 = vld [vmem:[#allocation2 + $0x8] sm:$0xff]
        %v4612 = vld [vmem:[#allocation2 + $0x10] sm:$0xff]
        %v4613 = vld [vmem:[#allocation2 + $0x18] sm:$0xff]
        %v4614 = vld [vmem:[#allocation2 + $0x28] sm:$0xff]
        %v4615 = vld [vmem:[#allocation2 + $0x30] sm:$0xff]
        %v4616 = vld [vmem:[#allocation2 + $0x38] sm:$0xff]
        %v4617 = vld [vmem:[#allocation2 + $0x48] sm:$0xf]
        %v4618 = vld [vmem:[#allocation2 + $0x50] sm:$0xf]
        %v4619 = vld [vmem:[#allocation2 + $0x58] sm:$0xf]
        %4620 = vrot.lane.b32.xlu0 %v4142, 52
        %v4621 = vpop.permute.xlu0 %4620
        %4631 = vrot.lane.b32.xlu0 %v4611, 127
        %v4632 = vpop.permute.xlu0 %4631
        %4633 = vrot.lane.b32.xlu0 %v4612, 127
        %v4634 = vpop.permute.xlu0 %4633
        %4635 = vrot.lane.b32.xlu0 %v4613, 127
        %v4636 = vpop.permute.xlu0 %4635
        %4637 = vrot.lane.b32.xlu0 %v4614, 127
        %v4638 = vpop.permute.xlu0 %4637
        %4639 = vrot.lane.b32.xlu0 %v4615, 127
        %v4640 = vpop.permute.xlu0 %4639
        %4641 = vrot.lane.b32.xlu0 %v4616, 127
        %v4642 = vpop.permute.xlu0 %4641
        %4643 = vrot.lane.b32.xlu0 %v4617, 127
        %v4644 = vpop.permute.xlu0 %4643
        %4645 = vrot.lane.b32.xlu0 %v4618, 127
        %v4646 = vpop.permute.xlu0 %4645
        %4647 = vrot.lane.b32.xlu0 %v4619, 127
        %v4648 = vpop.permute.xlu0 %4647
        %v4649 = vsel %vm756, %v4632, %v4634
        %v4650 = vsel %vm756, %v4634, %v4636
        %v4651 = vsel %vm756, %v4638, %v4640
        %v4652 = vsel %vm756, %v4640, %v4642
        %v4653 = vsel %vm756, %v4644, %v4646
        %v4654 = vsel %vm756, %v4646, %v4648
        %v4659 = vsel %vm4051, %v4621, 0
        %v4661 = vsel %vm283, %v4653, 0
        %v4663 = vsel %vm283, %v4654, 0
        %4665 = vmatprep.subr.mxu0 0.0
        %4666 = vmatpush1.msra.mxu0 0.0
        %4667 = vmatprep.subr.mxu0 0.0
        %4668 = vmatpush1.msra.mxu0 0.0
        %4669 = vmatprep.subr.mxu0 0.0
        %4670 = vmatpush1.msra.mxu0 0.0
        %4671 = vmatprep.subr.mxu0 0.0
        %4672 = vmatpush1.msra.mxu0 0.0
        %4673 = vmatprep.subr.mxu0 0.0
        %4674 = vmatpush1.msra.mxu0 0.0
        %4675 = vmatprep.subr.mxu0 0.0
        %4676 = vmatpush1.msra.mxu0 0.0
        %4677 = vmatprep.subr.mxu0 0.0
        %4678 = vmatpush1.msra.mxu0 0.0
        %4679 = vmatprep.subr.mxu0 0.0
        %4680 = vmatpush1.msra.mxu0 0.0
        %4681 = vmatprep.subr.mxu0 0.0
        %4682 = vmatpush1.msra.mxu0 0.0
        %4683 = vmatprep.subr.mxu0 0.0
        %4684 = vmatpush1.msra.mxu0 0.0
        %4685 = vmatprep.subr.mxu0 0.0
        %4686 = vmatpush1.msra.mxu0 0.0
        %4687 = vmatprep.subr.mxu0 0.0
        %4688 = vmatpush1.msra.mxu0 0.0
        %4689 = vmatprep.subr.mxu0 0.0
        %4690 = vmatpush1.msra.mxu0 0.0
        %4691 = vmatprep.subr.mxu0 %v4663
        %4692 = vmatpush1.msra.mxu0 %v4661
        %4693 = vmatprep.subr.mxu0 %v4652
        %4694 = vmatpush1.msra.mxu0 %v4651
        %4695 = vmatprep.subr.mxu0 %v4650
        %4696 = vmatpush1.msra.mxu0 %v4649
        %4697 = vmatprep.subr.mxu0 0.0
        %4698 = vmatpush2.msra.mxu0 0.0
        %4699 = vmatprep.subr.mxu0 0.0
        %4700 = vmatpush2.msra.mxu0 0.0
        %4701 = vmatprep.subr.mxu0 0.0
        %4702 = vmatpush2.msra.mxu0 0.0
        %4703 = vmatprep.subr.mxu0 0.0
        %4704 = vmatpush2.msra.mxu0 0.0
        %4705 = vmatprep.subr.mxu0 0.0
        %4706 = vmatpush2.msra.mxu0 0.0
        %4707 = vmatprep.subr.mxu0 0.0
        %4708 = vmatpush2.msra.mxu0 0.0
        %4709 = vmatprep.subr.mxu0 0.0
        %4710 = vmatpush2.msra.mxu0 0.0
        %4711 = vmatprep.subr.mxu0 0.0
        %4712 = vmatpush2.msra.mxu0 0.0
        %4713 = vmatprep.subr.mxu0 0.0
        %4714 = vmatpush2.msra.mxu0 0.0
        %4715 = vmatprep.subr.mxu0 0.0
        %4716 = vmatpush2.msra.mxu0 0.0
        %4717 = vmatprep.subr.mxu0 0.0
        %4718 = vmatpush2.msra.mxu0 0.0
        %4719 = vmatprep.subr.mxu0 0.0
        %4720 = vmatpush2.msra.mxu0 0.0
        %4721 = vmatprep.subr.mxu0 0.0
        %4722 = vmatpush2.msra.mxu0 0.0
        %4723 = vmatprep.subr.mxu0 0.0
        %4724 = vmatpush2.msra.mxu0 0.0
        %4725 = vmatprep.subr.mxu0 0.0
        %4726 = vmatpush2.msra.mxu0 0.0
        %4727 = vmatprep.subr.mxu0 0.0
        %4728 = vmatpush2.msra.mxu0 0.0
        %4729 = vmatprep.mubr.f32.mxu0 0.0
        %4730 = vmatmul.mubr.f32.gmra.mxu0 %v4659
        %v4731 = vpop.f32.mrf.mxu0
        %v4732 = vadd.f32 0.0, %v4731
        %v4733 = vpop.f32.mrf.mxu0
        %v4734 = vadd.f32 0.0, %v4733
        %4735 = vdwg.mxu0
        %v4736 = vsel %vm553, %v4732, 0.0
        %v4737 = vsel %vm554, %v4734, 0.0
        %v4738 = vadd.f32 %v4609, %v4736
        %v4739 = vadd.f32 %v4610, %v4737
        %v4740 = vld [vmem:[#allocation2 + $0x8] sm:$0xff]
        %v4741 = vld [vmem:[#allocation2 + $0x10] sm:$0xff]
        %v4742 = vld [vmem:[#allocation2 + $0x18] sm:$0xff]
        %v4743 = vld [vmem:[#allocation2 + $0x28] sm:$0xff]
        %v4744 = vld [vmem:[#allocation2 + $0x30] sm:$0xff]
        %v4745 = vld [vmem:[#allocation2 + $0x38] sm:$0xff]
        %v4746 = vld [vmem:[#allocation2 + $0x48] sm:$0xf]
        %v4747 = vld [vmem:[#allocation2 + $0x50] sm:$0xf]
        %v4748 = vld [vmem:[#allocation2 + $0x58] sm:$0xf]
        %4749 = vrot.lane.b32.xlu0 %v4142, 32
        %v4750 = vpop.permute.xlu0 %4749
        %4760 = vrot.lane.b32.xlu0 %v4740, 113
        %v4761 = vpop.permute.xlu0 %4760
        %4762 = vrot.lane.b32.xlu0 %v4741, 113
        %v4763 = vpop.permute.xlu0 %4762
        %4764 = vrot.lane.b32.xlu0 %v4742, 113
        %v4765 = vpop.permute.xlu0 %4764
        %4766 = vrot.lane.b32.xlu0 %v4743, 113
        %v4767 = vpop.permute.xlu0 %4766
        %4768 = vrot.lane.b32.xlu0 %v4744, 113
        %v4769 = vpop.permute.xlu0 %4768
        %4770 = vrot.lane.b32.xlu0 %v4745, 113
        %v4771 = vpop.permute.xlu0 %4770
        %4772 = vrot.lane.b32.xlu0 %v4746, 113
        %v4773 = vpop.permute.xlu0 %4772
        %4774 = vrot.lane.b32.xlu0 %v4747, 113
        %v4775 = vpop.permute.xlu0 %4774
        %4776 = vrot.lane.b32.xlu0 %v4748, 113
        %v4777 = vpop.permute.xlu0 %4776
        %v4778 = vsel %vm854, %v4761, %v4763
        %v4779 = vsel %vm854, %v4763, %v4765
        %v4780 = vsel %vm854, %v4767, %v4769
        %v4781 = vsel %vm854, %v4769, %v4771
        %v4782 = vsel %vm854, %v4773, %v4775
        %v4783 = vsel %vm854, %v4775, %v4777
        %v4788 = vsel %vm4051, %v4750, 0
        %v4790 = vsel %vm283, %v4782, 0
        %v4792 = vsel %vm283, %v4783, 0
        %4794 = vmatprep.subr.mxu0 0.0
        %4795 = vmatpush1.msra.mxu0 0.0
        %4796 = vmatprep.subr.mxu0 0.0
        %4797 = vmatpush1.msra.mxu0 0.0
        %4798 = vmatprep.subr.mxu0 0.0
        %4799 = vmatpush1.msra.mxu0 0.0
        %4800 = vmatprep.subr.mxu0 0.0
        %4801 = vmatpush1.msra.mxu0 0.0
        %4802 = vmatprep.subr.mxu0 0.0
        %4803 = vmatpush1.msra.mxu0 0.0
        %4804 = vmatprep.subr.mxu0 0.0
        %4805 = vmatpush1.msra.mxu0 0.0
        %4806 = vmatprep.subr.mxu0 0.0
        %4807 = vmatpush1.msra.mxu0 0.0
        %4808 = vmatprep.subr.mxu0 0.0
        %4809 = vmatpush1.msra.mxu0 0.0
        %4810 = vmatprep.subr.mxu0 0.0
        %4811 = vmatpush1.msra.mxu0 0.0
        %4812 = vmatprep.subr.mxu0 0.0
        %4813 = vmatpush1.msra.mxu0 0.0
        %4814 = vmatprep.subr.mxu0 0.0
        %4815 = vmatpush1.msra.mxu0 0.0
        %4816 = vmatprep.subr.mxu0 0.0
        %4817 = vmatpush1.msra.mxu0 0.0
        %4818 = vmatprep.subr.mxu0 0.0
        %4819 = vmatpush1.msra.mxu0 0.0
        %4820 = vmatprep.subr.mxu0 %v4792
        %4821 = vmatpush1.msra.mxu0 %v4790
        %4822 = vmatprep.subr.mxu0 %v4781
        %4823 = vmatpush1.msra.mxu0 %v4780
        %4824 = vmatprep.subr.mxu0 %v4779
        %4825 = vmatpush1.msra.mxu0 %v4778
        %4826 = vmatprep.subr.mxu0 0.0
        %4827 = vmatpush2.msra.mxu0 0.0
        %4828 = vmatprep.subr.mxu0 0.0
        %4829 = vmatpush2.msra.mxu0 0.0
        %4830 = vmatprep.subr.mxu0 0.0
        %4831 = vmatpush2.msra.mxu0 0.0
        %4832 = vmatprep.subr.mxu0 0.0
        %4833 = vmatpush2.msra.mxu0 0.0
        %4834 = vmatprep.subr.mxu0 0.0
        %4835 = vmatpush2.msra.mxu0 0.0
        %4836 = vmatprep.subr.mxu0 0.0
        %4837 = vmatpush2.msra.mxu0 0.0
        %4838 = vmatprep.subr.mxu0 0.0
        %4839 = vmatpush2.msra.mxu0 0.0
        %4840 = vmatprep.subr.mxu0 0.0
        %4841 = vmatpush2.msra.mxu0 0.0
        %4842 = vmatprep.subr.mxu0 0.0
        %4843 = vmatpush2.msra.mxu0 0.0
        %4844 = vmatprep.subr.mxu0 0.0
        %4845 = vmatpush2.msra.mxu0 0.0
        %4846 = vmatprep.subr.mxu0 0.0
        %4847 = vmatpush2.msra.mxu0 0.0
        %4848 = vmatprep.subr.mxu0 0.0
        %4849 = vmatpush2.msra.mxu0 0.0
        %4850 = vmatprep.subr.mxu0 0.0
        %4851 = vmatpush2.msra.mxu0 0.0
        %4852 = vmatprep.subr.mxu0 0.0
        %4853 = vmatpush2.msra.mxu0 0.0
        %4854 = vmatprep.subr.mxu0 0.0
        %4855 = vmatpush2.msra.mxu0 0.0
        %4856 = vmatprep.subr.mxu0 0.0
        %4857 = vmatpush2.msra.mxu0 0.0
        %4858 = vmatprep.mubr.f32.mxu0 0.0
        %4859 = vmatmul.mubr.f32.gmra.mxu0 %v4788
        %v4860 = vpop.f32.mrf.mxu0
        %v4861 = vadd.f32 0.0, %v4860
        %v4862 = vpop.f32.mrf.mxu0
        %v4863 = vadd.f32 0.0, %v4862
        %4864 = vdwg.mxu0
        %v4865 = vsel %vm361, %v4861, 0.0
        %v4866 = vsel %vm362, %v4863, 0.0
        %v4867 = vadd.f32 %v4738, %v4865
        %v4868 = vadd.f32 %v4739, %v4866
        %v4869 = vld [vmem:[#allocation2 + $0x8] sm:$0xff]
        %v4870 = vld [vmem:[#allocation2 + $0x10] sm:$0xff]
        %v4871 = vld [vmem:[#allocation2 + $0x18] sm:$0xff]
        %v4872 = vld [vmem:[#allocation2 + $0x28] sm:$0xff]
        %v4873 = vld [vmem:[#allocation2 + $0x30] sm:$0xff]
        %v4874 = vld [vmem:[#allocation2 + $0x38] sm:$0xff]
        %v4875 = vld [vmem:[#allocation2 + $0x48] sm:$0xf]
        %v4876 = vld [vmem:[#allocation2 + $0x50] sm:$0xf]
        %v4877 = vld [vmem:[#allocation2 + $0x58] sm:$0xf]
        %4879 = vrot.lane.b32.xlu0 %v4142, 12
        %v4880 = vpop.permute.xlu0 %4879
        %4881 = vrot.lane.b32.xlu0 %v232, 12
        %v4882 = vpop.permute.xlu0 %4881
        %v4883 = vsel %vm2038, %v4880, %v4882
        %4893 = vrot.lane.b32.xlu0 %v4869, 112
        %v4894 = vpop.permute.xlu0 %4893
        %4895 = vrot.lane.b32.xlu0 %v4870, 112
        %v4896 = vpop.permute.xlu0 %4895
        %4897 = vrot.lane.b32.xlu0 %v4871, 112
        %v4898 = vpop.permute.xlu0 %4897
        %4899 = vrot.lane.b32.xlu0 %v4872, 112
        %v4900 = vpop.permute.xlu0 %4899
        %4901 = vrot.lane.b32.xlu0 %v4873, 112
        %v4902 = vpop.permute.xlu0 %4901
        %4903 = vrot.lane.b32.xlu0 %v4874, 112
        %v4904 = vpop.permute.xlu0 %4903
        %4905 = vrot.lane.b32.xlu0 %v4875, 112
        %v4906 = vpop.permute.xlu0 %4905
        %4907 = vrot.lane.b32.xlu0 %v4876, 112
        %v4908 = vpop.permute.xlu0 %4907
        %4909 = vrot.lane.b32.xlu0 %v4877, 112
        %v4910 = vpop.permute.xlu0 %4909
        %v4911 = vsel %vm952, %v4894, %v4896
        %v4912 = vsel %vm952, %v4896, %v4898
        %v4913 = vsel %vm952, %v4900, %v4902
        %v4914 = vsel %vm952, %v4902, %v4904
        %v4915 = vsel %vm952, %v4906, %v4908
        %v4916 = vsel %vm952, %v4908, %v4910
        %v4921 = vsel %vm4051, %v4883, 0
        %v4923 = vsel %vm283, %v4915, 0
        %v4925 = vsel %vm283, %v4916, 0
        %4927 = vmatprep.subr.mxu0 0.0
        %4928 = vmatpush1.msra.mxu0 0.0
        %4929 = vmatprep.subr.mxu0 0.0
        %4930 = vmatpush1.msra.mxu0 0.0
        %4931 = vmatprep.subr.mxu0 0.0
        %4932 = vmatpush1.msra.mxu0 0.0
        %4933 = vmatprep.subr.mxu0 0.0
        %4934 = vmatpush1.msra.mxu0 0.0
        %4935 = vmatprep.subr.mxu0 0.0
        %4936 = vmatpush1.msra.mxu0 0.0
        %4937 = vmatprep.subr.mxu0 0.0
        %4938 = vmatpush1.msra.mxu0 0.0
        %4939 = vmatprep.subr.mxu0 0.0
        %4940 = vmatpush1.msra.mxu0 0.0
        %4941 = vmatprep.subr.mxu0 0.0
        %4942 = vmatpush1.msra.mxu0 0.0
        %4943 = vmatprep.subr.mxu0 0.0
        %4944 = vmatpush1.msra.mxu0 0.0
        %4945 = vmatprep.subr.mxu0 0.0
        %4946 = vmatpush1.msra.mxu0 0.0
        %4947 = vmatprep.subr.mxu0 0.0
        %4948 = vmatpush1.msra.mxu0 0.0
        %4949 = vmatprep.subr.mxu0 0.0
        %4950 = vmatpush1.msra.mxu0 0.0
        %4951 = vmatprep.subr.mxu0 0.0
        %4952 = vmatpush1.msra.mxu0 0.0
        %4953 = vmatprep.subr.mxu0 %v4925
        %4954 = vmatpush1.msra.mxu0 %v4923
        %4955 = vmatprep.subr.mxu0 %v4914
        %4956 = vmatpush1.msra.mxu0 %v4913
        %4957 = vmatprep.subr.mxu0 %v4912
        %4958 = vmatpush1.msra.mxu0 %v4911
        %4959 = vmatprep.subr.mxu0 0.0
        %4960 = vmatpush2.msra.mxu0 0.0
        %4961 = vmatprep.subr.mxu0 0.0
        %4962 = vmatpush2.msra.mxu0 0.0
        %4963 = vmatprep.subr.mxu0 0.0
        %4964 = vmatpush2.msra.mxu0 0.0
        %4965 = vmatprep.subr.mxu0 0.0
        %4966 = vmatpush2.msra.mxu0 0.0
        %4967 = vmatprep.subr.mxu0 0.0
        %4968 = vmatpush2.msra.mxu0 0.0
        %4969 = vmatprep.subr.mxu0 0.0
        %4970 = vmatpush2.msra.mxu0 0.0
        %4971 = vmatprep.subr.mxu0 0.0
        %4972 = vmatpush2.msra.mxu0 0.0
        %4973 = vmatprep.subr.mxu0 0.0
        %4974 = vmatpush2.msra.mxu0 0.0
        %4975 = vmatprep.subr.mxu0 0.0
        %4976 = vmatpush2.msra.mxu0 0.0
        %4977 = vmatprep.subr.mxu0 0.0
        %4978 = vmatpush2.msra.mxu0 0.0
        %4979 = vmatprep.subr.mxu0 0.0
        %4980 = vmatpush2.msra.mxu0 0.0
        %4981 = vmatprep.subr.mxu0 0.0
        %4982 = vmatpush2.msra.mxu0 0.0
        %4983 = vmatprep.subr.mxu0 0.0
        %4984 = vmatpush2.msra.mxu0 0.0
        %4985 = vmatprep.subr.mxu0 0.0
        %4986 = vmatpush2.msra.mxu0 0.0
        %4987 = vmatprep.subr.mxu0 0.0
        %4988 = vmatpush2.msra.mxu0 0.0
        %4989 = vmatprep.subr.mxu0 0.0
        %4990 = vmatpush2.msra.mxu0 0.0
        %4991 = vmatprep.mubr.f32.mxu0 0.0
        %4992 = vmatmul.mubr.f32.gmra.mxu0 %v4921
        %v4993 = vpop.f32.mrf.mxu0
        %v4994 = vadd.f32 0.0, %v4993
        %v4995 = vpop.f32.mrf.mxu0
        %v4996 = vadd.f32 0.0, %v4995
        %4997 = vdwg.mxu0
        %v4998 = vadd.f32 %v4867, %v4994
        %v4999 = vadd.f32 %v4868, %v4996
        %v5000 = vld [vmem:[#allocation2 + $0x8] sm:$0xff]
        %v5001 = vld [vmem:[#allocation2 + $0x10] sm:$0xff]
        %v5002 = vld [vmem:[#allocation2 + $0x18] sm:$0xff]
        %v5003 = vld [vmem:[#allocation2 + $0x28] sm:$0xff]
        %v5004 = vld [vmem:[#allocation2 + $0x30] sm:$0xff]
        %v5005 = vld [vmem:[#allocation2 + $0x38] sm:$0xff]
        %v5006 = vld [vmem:[#allocation2 + $0x48] sm:$0xf]
        %v5007 = vld [vmem:[#allocation2 + $0x50] sm:$0xf]
        %v5008 = vld [vmem:[#allocation2 + $0x58] sm:$0xf]
        %5009 = vrot.lane.b32.xlu0 %v232, 120
        %v5010 = vpop.permute.xlu0 %5009
        %5020 = vrot.lane.b32.xlu0 %v5000, 111
        %v5021 = vpop.permute.xlu0 %5020
        %5022 = vrot.lane.b32.xlu0 %v5001, 111
        %v5023 = vpop.permute.xlu0 %5022
        %5024 = vrot.lane.b32.xlu0 %v5002, 111
        %v5025 = vpop.permute.xlu0 %5024
        %5026 = vrot.lane.b32.xlu0 %v5003, 111
        %v5027 = vpop.permute.xlu0 %5026
        %5028 = vrot.lane.b32.xlu0 %v5004, 111
        %v5029 = vpop.permute.xlu0 %5028
        %5030 = vrot.lane.b32.xlu0 %v5005, 111
        %v5031 = vpop.permute.xlu0 %5030
        %5032 = vrot.lane.b32.xlu0 %v5006, 111
        %v5033 = vpop.permute.xlu0 %5032
        %5034 = vrot.lane.b32.xlu0 %v5007, 111
        %v5035 = vpop.permute.xlu0 %5034
        %5036 = vrot.lane.b32.xlu0 %v5008, 111
        %v5037 = vpop.permute.xlu0 %5036
        %v5038 = vsel %vm1048, %v5021, %v5023
        %v5039 = vsel %vm1048, %v5023, %v5025
        %v5040 = vsel %vm1048, %v5027, %v5029
        %v5041 = vsel %vm1048, %v5029, %v5031
        %v5042 = vsel %vm1048, %v5033, %v5035
        %v5043 = vsel %vm1048, %v5035, %v5037
        %v5048 = vsel %vm4051, %v5010, 0
        %v5050 = vsel %vm283, %v5042, 0
        %v5052 = vsel %vm283, %v5043, 0
        %5054 = vmatprep.subr.mxu0 0.0
        %5055 = vmatpush1.msra.mxu0 0.0
        %5056 = vmatprep.subr.mxu0 0.0
        %5057 = vmatpush1.msra.mxu0 0.0
        %5058 = vmatprep.subr.mxu0 0.0
        %5059 = vmatpush1.msra.mxu0 0.0
        %5060 = vmatprep.subr.mxu0 0.0
        %5061 = vmatpush1.msra.mxu0 0.0
        %5062 = vmatprep.subr.mxu0 0.0
        %5063 = vmatpush1.msra.mxu0 0.0
        %5064 = vmatprep.subr.mxu0 0.0
        %5065 = vmatpush1.msra.mxu0 0.0
        %5066 = vmatprep.subr.mxu0 0.0
        %5067 = vmatpush1.msra.mxu0 0.0
        %5068 = vmatprep.subr.mxu0 0.0
        %5069 = vmatpush1.msra.mxu0 0.0
        %5070 = vmatprep.subr.mxu0 0.0
        %5071 = vmatpush1.msra.mxu0 0.0
        %5072 = vmatprep.subr.mxu0 0.0
        %5073 = vmatpush1.msra.mxu0 0.0
        %5074 = vmatprep.subr.mxu0 0.0
        %5075 = vmatpush1.msra.mxu0 0.0
        %5076 = vmatprep.subr.mxu0 0.0
        %5077 = vmatpush1.msra.mxu0 0.0
        %5078 = vmatprep.subr.mxu0 0.0
        %5079 = vmatpush1.msra.mxu0 0.0
        %5080 = vmatprep.subr.mxu0 %v5052
        %5081 = vmatpush1.msra.mxu0 %v5050
        %5082 = vmatprep.subr.mxu0 %v5041
        %5083 = vmatpush1.msra.mxu0 %v5040
        %5084 = vmatprep.subr.mxu0 %v5039
        %5085 = vmatpush1.msra.mxu0 %v5038
        %5086 = vmatprep.subr.mxu0 0.0
        %5087 = vmatpush2.msra.mxu0 0.0
        %5088 = vmatprep.subr.mxu0 0.0
        %5089 = vmatpush2.msra.mxu0 0.0
        %5090 = vmatprep.subr.mxu0 0.0
        %5091 = vmatpush2.msra.mxu0 0.0
        %5092 = vmatprep.subr.mxu0 0.0
        %5093 = vmatpush2.msra.mxu0 0.0
        %5094 = vmatprep.subr.mxu0 0.0
        %5095 = vmatpush2.msra.mxu0 0.0
        %5096 = vmatprep.subr.mxu0 0.0
        %5097 = vmatpush2.msra.mxu0 0.0
        %5098 = vmatprep.subr.mxu0 0.0
        %5099 = vmatpush2.msra.mxu0 0.0
        %5100 = vmatprep.subr.mxu0 0.0
        %5101 = vmatpush2.msra.mxu0 0.0
        %5102 = vmatprep.subr.mxu0 0.0
        %5103 = vmatpush2.msra.mxu0 0.0
        %5104 = vmatprep.subr.mxu0 0.0
        %5105 = vmatpush2.msra.mxu0 0.0
        %5106 = vmatprep.subr.mxu0 0.0
        %5107 = vmatpush2.msra.mxu0 0.0
        %5108 = vmatprep.subr.mxu0 0.0
        %5109 = vmatpush2.msra.mxu0 0.0
        %5110 = vmatprep.subr.mxu0 0.0
        %5111 = vmatpush2.msra.mxu0 0.0
        %5112 = vmatprep.subr.mxu0 0.0
        %5113 = vmatpush2.msra.mxu0 0.0
        %5114 = vmatprep.subr.mxu0 0.0
        %5115 = vmatpush2.msra.mxu0 0.0
        %5116 = vmatprep.subr.mxu0 0.0
        %5117 = vmatpush2.msra.mxu0 0.0
        %5118 = vmatprep.mubr.f32.mxu0 0.0
        %5119 = vmatmul.mubr.f32.gmra.mxu0 %v5048
        %v5120 = vpop.f32.mrf.mxu0
        %v5121 = vadd.f32 0.0, %v5120
        %v5122 = vpop.f32.mrf.mxu0
        %v5123 = vadd.f32 0.0, %v5122
        %5124 = vdwg.mxu0
        %v5125 = vsel %vm553, %v5121, 0.0
        %v5126 = vsel %vm554, %v5123, 0.0
        %v5127 = vadd.f32 %v4998, %v5125
        %v5128 = vadd.f32 %v4999, %v5126
        %v5129 = vld [vmem:[#allocation8] sm:$0xf]
        %5131 = vset.pattern.permute.xlu0 4
        %5132 = vperm.xlu0 %5131, %v5129
        %v5133 = vpop.permute.xlu0 %5132
        %v5135 = vadd.f32 %v5127, %v5133
        %v5136 = vadd.f32 %v5128, %v5133
        %v5137 = vmul.f32 %v5135, 0.2
        %v5138 = vmul.f32 %v5136, 0.2
        %v5139 = vadd.f32 %v5137, %v224
        %v5140 = vadd.f32 %v5138, %v226
        %v5143 = vcombine.low %v5139, %v5140
        %5145 = vst [vmem:[%s211] sm:$0xff] %v5143
        %s5146 = sand.u32 %s97, 1
        %s5147 = scalar_lea.sflag [#allocation5], %s5146
        %s5148 = sand.u32 %s97, 1
        %s5149 = smul.addr %s5148, 8
        %s5150 = scalar_lea.vmem [#allocation9], %s5149
        // Predicated region
        $region45: #{tpu_custom_call.1} parent=31 // pred_check
          %p5151 = pneg %p107
        $region46: #{tpu_custom_call.1} parent=31 // pred_check_branch
          %5153 = sbr.rel (%p5151) target = $region48
        $region47: #{tpu_custom_call.1} parent=31 // pred_region
          %s5155 = ssub.s32 128, 128
          %5156 = vsyncadd %s5147, %s5155
          %s5157 = smul.addr %s21, 2
          %s5158 = smul.addr %s5157, 64
          %s5159 = scalar_lea.hbm %s3, %s5158
          %s5161 = sshll.u32 %s5150, 4
          %s5162 = int_to_ptr.vmem [resolvable:$true] %s5161
          %5164 = dma.vmem_to_hbm [thread:$0]  %s5162, 128, %s5159, %s5147
        $region48: #{tpu_custom_call.1} parent=31 // pred_fallthru
          _
      $region32: #{tpu_custom_call.1} parent=5 // pred_fallthru
        _
      %p5165 = scmp.le.s32.totalorder 2, %s16
      // Predicated region
      $region49: #{tpu_custom_call.1} parent=5 // pred_check
        %p5166 = pneg %p5165
      $region50: #{tpu_custom_call.1} parent=5 // pred_check_branch
        %5168 = sbr.rel (%p5166) target = $region52
      $region51: #{tpu_custom_call.1} parent=5 // pred_region
        %s5169 = ssub.s32 %s16, 2
        // Predicated region
        $region53: #{tpu_custom_call.1} parent=51 // pred_check
          %p5170 = pneg %p113
        $region54: #{tpu_custom_call.1} parent=51 // pred_check_branch
          %5172 = sbr.rel (%p5170) target = $region56
        $region55: #{tpu_custom_call.1} parent=51 // pred_region
          %s5173 = sand.u32 %s98, 1
          %s5174 = scalar_lea.sflag [#allocation5], %s5173
          %s5175 = sand.u32 %s98, 1
          %s5176 = smul.addr %s5175, 8
          %s5177 = scalar_lea.vmem [#allocation9], %s5176
          %5178 = dma.done %s5174, 128
        $region56: #{tpu_custom_call.1} parent=51 // pred_fallthru
          _
      $region52: #{tpu_custom_call.1} parent=5 // pred_fallthru
        _
    $region6: #{tpu_custom_call.1} parent=1 // loop_footer
      %s20 = sadd.s32 1, %s16
    $region7: #{tpu_custom_call.1} parent=1 // loop_footer_branch
      %15 = sbr.rel target = $region3
    $region8: #{tpu_custom_call.1} parent=1 // loop_exit
      _
    %5179 = vsyncpa [#allocation4], 1
    %s5180 = scalar_lea.sflag [#allocation4], 1
    %5181 = vsyncpa %s5180, 1
    %5182 = vsyncpa [#allocation7], 1
    %5183 = vsyncpa [#allocation5], 1
    %s5184 = scalar_lea.sflag [#allocation5], 1
    %5185 = vsyncpa %s5184, 1

</llo_original>
